<compile_context>
chip_gen: v6e
topology: v6e:2x2x1
jax: 0.10.0
libtpu: 0.0.40
codegen_flags: <defaults>
</compile_context>

<pallas_src>
import functools

import jax
import jax.numpy as jnp
from jax import lax
from jax.experimental import pallas as pl
from jax.experimental.pallas import tpu as pltpu

_LANES = 128  # fused lane width of the first-layer / hidden activations


def _round_up(x, m):
    return ((x + m - 1) // m) * m


def _deepfm_kernel(idx_ref, m_ref, b1_ref, w2_ref, b2_ref, w3_ref, b3_ref,
                   out_ref, *, field_num, latent_dim, hidden1, feat_pad):
    tb = idx_ref.shape[0]
    lanes = m_ref.shape[-1]

    idx = idx_ref[...]                                            # (TB, F) int32
    feat_iota = lax.broadcasted_iota(jnp.int32, (tb, feat_pad), 1)

    # Fused per-field gather + first-layer matmul.  For each field f the one-hot
    # row selector hits M_f = [table @ W1_f | table | rowsum(table^2) | 0-pad]:
    #   lanes [0:H1)     -> x2 @ W1            (DNN pre-activation)
    #   lanes [H1:H1+D)  -> sum_f x_emb        (FM field sum)
    #   lane  H1+D       -> sum_f ||x_emb_f||^2 (FM square sum)
    acc = None
    for f in range(field_num):
        onehot = (feat_iota == idx[:, f:f + 1]).astype(jnp.float32)   # (TB, Np)
        part = jnp.dot(onehot, m_ref[f], preferred_element_type=jnp.float32)
        acc = part if acc is None else acc + part                      # (TB, 128)

    # FM second-order term, computed from the pre-activation lanes of `acc`.
    lane = lax.broadcasted_iota(jnp.int32, (1, lanes), 1)
    fm_mask = ((lane >= hidden1) &
               (lane < hidden1 + latent_dim)).astype(jnp.float32)      # (1, 128)
    sq_mask = (lane == hidden1 + latent_dim).astype(jnp.float32)       # (1, 128)
    field_sum = acc * fm_mask
    fm_terms = 0.5 * (field_sum * field_sum - acc * sq_mask)           # (TB, 128)

    # DNN tower.  b1 is zero past lane H1 and W2's rows past H1 are zero, so the
    # FM lanes of `acc` never leak into the MLP; columns past H2 stay exactly 0.
    h = jnp.maximum(acc + b1_ref[...], 0.0)                            # (TB, 128)
    h = jnp.dot(h, w2_ref[...], preferred_element_type=jnp.float32) + b2_ref[...]
    h = jnp.maximum(h, 0.0)                                            # (TB, 128)
    dnn_terms = h * w3_ref[...]                                        # (TB, 128)

    # Final lane reduction + (TB,1)->(1,TB) relayout in one ones-vector MXU
    # contraction (contract last dims of both operands, i.e. ones @ contrib.T),
    # so the store is a lane-dense (1, TB) block.
    contrib = fm_terms + dnn_terms                                     # (TB, 128)
    ones_row = jnp.ones((1, lanes), jnp.float32)
    total = lax.dot_general(ones_row, contrib, (((1,), (1,)), ((), ())),
                            preferred_element_type=jnp.float32)        # (1, TB)
    out_ref[...] = total + b3_ref[...]


def prepare_deepfm(emb_table, params, *, field_num, latent_dim):
    """Precompute fused resident constants once (hoisted out of the hot path)."""
    w1, b1, w2, b2, w3, b3 = params
    feat_num, d = emb_table.shape
    assert d == latent_dim
    h1, h2 = w1.shape[1], w2.shape[1]
    assert w1.shape[0] == field_num * latent_dim
    assert h1 + latent_dim + 1 <= _LANES and h2 <= _LANES, "fused lane budget"

    feat_pad = _round_up(max(feat_num, 8), 128)
    table = jnp.zeros((feat_pad, d), jnp.float32).at[:feat_num].set(
        emb_table.astype(jnp.float32))
    tsq = jnp.sum(table * table, axis=1, keepdims=True)                # (Np, 1)

    blocks = []
    for f in range(field_num):
        w1_f = w1[f * d:(f + 1) * d, :]                                # (D, H1)
        tw1 = jnp.dot(table, w1_f, precision="highest")                # (Np, H1)
        pad = jnp.zeros((feat_pad, _LANES - h1 - d - 1), jnp.float32)
        blocks.append(jnp.concatenate([tw1, table, tsq, pad], axis=1))
    m = jnp.stack(blocks, axis=0)                                      # (F, Np, 128)

    b1_pad = jnp.zeros((1, _LANES), jnp.float32).at[:, :h1].set(b1.reshape(1, h1))
    w2_pad = jnp.zeros((_LANES, _LANES), jnp.float32).at[:h1, :h2].set(w2)
    b2_pad = jnp.zeros((1, _LANES), jnp.float32).at[:, :h2].set(b2.reshape(1, h2))
    w3_pad = jnp.zeros((1, _LANES), jnp.float32).at[:, :h2].set(w3.reshape(1, h2))

    return dict(m=m, b1=b1_pad, w2=w2_pad, b2=b2_pad, w3=w3_pad,
                b3=b3.reshape(1, 1), field_num=field_num,
                latent_dim=latent_dim, hidden1=h1, feat_pad=feat_pad)


def deepfm_forward(x_idx, consts, *, tb=None):
    """x_idx: (B, F) integer feature ids.  Returns (B, 1) float32 logits."""
    bsz, fields = x_idx.shape
    assert fields == consts["field_num"]

    # Batch tiling: one grid step for small batches (per-step overhead ~0.35us
    # dominates on single-TC v5e/v6e); 256-row tiles (multiple of 128 -> lane-
    # dense output blocks, v5e MXU M granularity) for large batches so 2-TC
    # chips (v7x) get several steps per core with DMA/compute overlap.
    b8 = _round_up(bsz, 8)
    if tb is not None:
        tile = max(128, _round_up(tb, 128))
        if tile >= b8:
            tile = b8
    elif b8 <= 512:
        tile = b8
    else:
        tile = 256
    bp = _round_up(bsz, tile)
    n_steps = bp // tile

    idx = x_idx.astype(jnp.int32)
    if bp != bsz:
        idx = jnp.pad(idx, ((0, bp - bsz), (0, 0)))

    kernel = functools.partial(
        _deepfm_kernel,
        field_num=consts["field_num"], latent_dim=consts["latent_dim"],
        hidden1=consts["hidden1"], feat_pad=consts["feat_pad"])

    def _resident(arr):
        nd = arr.ndim
        return pl.BlockSpec(arr.shape, lambda i, _n=nd: (0,) * _n)

    idx_spec = pl.BlockSpec((tile, fields), lambda i: (i, 0))
    if n_steps > 2:
        # Deeper pipelining of the (tiny) id stream for large grids; guarded so
        # environments without BlockSpec.pipeline_mode still run.
        try:
            idx_spec = pl.BlockSpec((tile, fields), lambda i: (i, 0),
                                    pipeline_mode=pl.Buffered(3))
        except (TypeError, AttributeError):
            pass

    m, b1p, w2p = consts["m"], consts["b1"], consts["w2"]
    b2p, w3p, b3s = consts["b2"], consts["w3"], consts["b3"]

    out = pl.pallas_call(
        kernel,
        out_shape=jax.ShapeDtypeStruct((1, bp), jnp.float32),
        grid_spec=pltpu.PrefetchScalarGridSpec(
            num_scalar_prefetch=0,
            grid=(n_steps,),
            in_specs=[idx_spec,
                      _resident(m), _resident(b1p), _resident(w2p),
                      _resident(b2p), _resident(w3p), _resident(b3s)],
            out_specs=pl.BlockSpec((1, tile), lambda i: (0, i)),
        ),
        compiler_params=pltpu.CompilerParams(
            dimension_semantics=("parallel",)),
    )(idx, m, b1p, w2p, b2p, w3p, b3s)

    return out.reshape(bp, 1)[:bsz]


def init_params(key, feature_num, field_num, latent_dim, mlp_dims):
    """Deterministic synthetic parameters (shapes match the torch module)."""
    ks = jax.random.split(key, 8)
    emb_table = jax.random.normal(ks[0], (feature_num, latent_dim), jnp.float32) * 0.1
    dims = [field_num * latent_dim] + list(mlp_dims) + [1]
    weights = []
    ki = 1
    for din, dout in zip(dims[:-1], dims[1:]):
        bound = 1.0 / (din ** 0.5)
        w = jax.random.uniform(ks[ki], (din, dout), jnp.float32, -bound, bound)
        bb = jax.random.uniform(ks[ki + 1], (1, dout), jnp.float32, -bound, bound)
        weights += [w, bb]
        ki += 2
    return emb_table, tuple(weights)


def reference_forward(x_idx, emb_table, params):
    """Pure-JAX reference of the torch DeepFM forward (eval mode)."""
    x_emb = emb_table[x_idx]                                   # (B, F, D)
    sum_f = jnp.sum(x_emb, axis=1)
    sum_sq = jnp.sum(x_emb * x_emb, axis=1)
    fm = 0.5 * jnp.sum(sum_f ** 2 - sum_sq, axis=-1, keepdims=True)
    bsz = x_emb.shape[0]
    h = x_emb.reshape(bsz, -1)
    w1, b1, w2, b2, w3, b3 = params
    h = jnp.maximum(jnp.dot(h, w1, precision="highest") + b1, 0.0)
    h = jnp.maximum(jnp.dot(h, w2, precision="highest") + b2, 0.0)
    dnn = jnp.dot(h, w3, precision="highest") + b3
    return dnn + fm


if __name__ == "__main__":
    # opt = {latent_dim: 16, feat_num: 100, field_num: 8,
    #        mlp_dims: [64, 32], mlp_dropout: 0.0, use_bn: False}
    # TODO(synk): mlp_dropout / BatchNorm1d are training-mode ops (identity here).
    batch, field_num, latent_dim, feature_num = 200, 8, 16, 100
    mlp_dims = (64, 32)

    key = jax.random.PRNGKey(0)
    k_param, k_x = jax.random.split(key)
    emb_table, params = init_params(k_param, feature_num, field_num,
                                    latent_dim, mlp_dims)

    # x: (batch, field_num) integer feature ids (the nn.Embedding lookup input).
    x_idx = jax.random.randint(k_x, (batch, field_num), 0, feature_num, jnp.int32)

    consts = prepare_deepfm(emb_table, params,
                            field_num=field_num, latent_dim=latent_dim)

    # tb=128 -> 2 grid steps even at this small batch (exercises batch tiling,
    # padding and the lane-dense windowed output path).
    logits = deepfm_forward(x_idx, consts, tb=128)
    jax.block_until_ready(logits)

    ref = reference_forward(x_idx, emb_table, params)
    assert logits.shape == (batch, 1)
    assert jnp.allclose(logits, ref, rtol=1e-3, atol=1e-3), \
        float(jnp.max(jnp.abs(logits - ref)))
    print("KERNEL_OK")
</pallas_src>

<mosaic_0001>
module attributes {stable_mosaic.version = 11 : i64} {
  func.func @_deepfm_kernel(%arg0: i32, %arg1: memref<128x8xi32, #tpu.memory_space<vmem>>, %arg2: memref<8x128x128xf32, #tpu.memory_space<vmem>>, %arg3: memref<1x128xf32, #tpu.memory_space<vmem>>, %arg4: memref<128x128xf32, #tpu.memory_space<vmem>>, %arg5: memref<1x128xf32, #tpu.memory_space<vmem>>, %arg6: memref<1x128xf32, #tpu.memory_space<vmem>>, %arg7: memref<1x1xf32, #tpu.memory_space<vmem>>, %arg8: memref<1x128xf32, #tpu.memory_space<vmem>>) attributes {dimension_semantics = [#tpu.dimension_semantics<parallel>], iteration_bounds = array<i64: 2>, scalar_prefetch = 0 : i64, scratch_operands = 0 : i64, tpu.core_type = #tpu.core_type<tc>, window_params = [{transform_indices = @transform_0, window_bounds = array<i64: 128, 8>}, {pipeline_mode = #tpu.pipeline_mode<synchronous>, transform_indices = @transform_1, window_bounds = array<i64: 8, 128, 128>}, {pipeline_mode = #tpu.pipeline_mode<synchronous>, transform_indices = @transform_2, window_bounds = array<i64: 1, 128>}, {pipeline_mode = #tpu.pipeline_mode<synchronous>, transform_indices = @transform_3, window_bounds = array<i64: 128, 128>}, {pipeline_mode = #tpu.pipeline_mode<synchronous>, transform_indices = @transform_4, window_bounds = array<i64: 1, 128>}, {pipeline_mode = #tpu.pipeline_mode<synchronous>, transform_indices = @transform_5, window_bounds = array<i64: 1, 128>}, {pipeline_mode = #tpu.pipeline_mode<synchronous>, transform_indices = @transform_6, window_bounds = array<i64: 1, 1>}, {transform_indices = @transform_7, window_bounds = array<i64: 1, 128>}]} {
    %c0 = arith.constant 0 : index
    %c0_0 = arith.constant 0 : index
    %0 = vector.load %arg1[%c0, %c0_0] : memref<128x8xi32, #tpu.memory_space<vmem>>, vector<128x8xi32>
    %1 = tpu.iota {dimensions = array<i32: 1>} : vector<128x128xi32>
    %2 = vector.extract_strided_slice %0 {offsets = [0, 0], sizes = [128, 1], strides = [1, 1]} : vector<128x8xi32> to vector<128x1xi32>
    %3 = vector.broadcast %2 : vector<128x1xi32> to vector<128x128xi32>
    %4 = arith.cmpi eq, %1, %3 : vector<128x128xi32>
    %5 = arith.extui %4 : vector<128x128xi1> to vector<128x128xi32>
    %6 = arith.sitofp %5 : vector<128x128xi32> to vector<128x128xf32>
    %c0_1 = arith.constant 0 : index
    %c0_2 = arith.constant 0 : index
    %c0_3 = arith.constant 0 : index
    %7 = vector.load %arg2[%c0_1, %c0_2, %c0_3] : memref<8x128x128xf32, #tpu.memory_space<vmem>>, vector<1x128x128xf32>
    %8 = vector.shape_cast %7 : vector<1x128x128xf32> to vector<128x128xf32>
    %cst = arith.constant dense<0.000000e+00> : vector<128x128xf32>
    %9 = tpu.matmul %6, %8, %cst {dimension_numbers = #tpu.dot_dimension_numbers<[1], [0], [0], [1], [0, 0, 1, 1], [], []>} : vector<128x128xf32>, vector<128x128xf32>, vector<128x128xf32> -> vector<128x128xf32>
    %10 = vector.extract_strided_slice %0 {offsets = [0, 1], sizes = [128, 1], strides = [1, 1]} : vector<128x8xi32> to vector<128x1xi32>
    %11 = vector.broadcast %10 : vector<128x1xi32> to vector<128x128xi32>
    %12 = arith.cmpi eq, %1, %11 : vector<128x128xi32>
    %13 = arith.extui %12 : vector<128x128xi1> to vector<128x128xi32>
    %14 = arith.sitofp %13 : vector<128x128xi32> to vector<128x128xf32>
    %c1 = arith.constant 1 : index
    %c0_4 = arith.constant 0 : index
    %c0_5 = arith.constant 0 : index
    %15 = vector.load %arg2[%c1, %c0_4, %c0_5] : memref<8x128x128xf32, #tpu.memory_space<vmem>>, vector<1x128x128xf32>
    %16 = vector.shape_cast %15 : vector<1x128x128xf32> to vector<128x128xf32>
    %cst_6 = arith.constant dense<0.000000e+00> : vector<128x128xf32>
    %17 = tpu.matmul %14, %16, %cst_6 {dimension_numbers = #tpu.dot_dimension_numbers<[1], [0], [0], [1], [0, 0, 1, 1], [], []>} : vector<128x128xf32>, vector<128x128xf32>, vector<128x128xf32> -> vector<128x128xf32>
    %18 = arith.addf %9, %17 : vector<128x128xf32>
    %19 = vector.extract_strided_slice %0 {offsets = [0, 2], sizes = [128, 1], strides = [1, 1]} : vector<128x8xi32> to vector<128x1xi32>
    %20 = vector.broadcast %19 : vector<128x1xi32> to vector<128x128xi32>
    %21 = arith.cmpi eq, %1, %20 : vector<128x128xi32>
    %22 = arith.extui %21 : vector<128x128xi1> to vector<128x128xi32>
    %23 = arith.sitofp %22 : vector<128x128xi32> to vector<128x128xf32>
    %c2 = arith.constant 2 : index
    %c0_7 = arith.constant 0 : index
    %c0_8 = arith.constant 0 : index
    %24 = vector.load %arg2[%c2, %c0_7, %c0_8] : memref<8x128x128xf32, #tpu.memory_space<vmem>>, vector<1x128x128xf32>
    %25 = vector.shape_cast %24 : vector<1x128x128xf32> to vector<128x128xf32>
    %cst_9 = arith.constant dense<0.000000e+00> : vector<128x128xf32>
    %26 = tpu.matmul %23, %25, %cst_9 {dimension_numbers = #tpu.dot_dimension_numbers<[1], [0], [0], [1], [0, 0, 1, 1], [], []>} : vector<128x128xf32>, vector<128x128xf32>, vector<128x128xf32> -> vector<128x128xf32>
    %27 = arith.addf %18, %26 : vector<128x128xf32>
    %28 = vector.extract_strided_slice %0 {offsets = [0, 3], sizes = [128, 1], strides = [1, 1]} : vector<128x8xi32> to vector<128x1xi32>
    %29 = vector.broadcast %28 : vector<128x1xi32> to vector<128x128xi32>
    %30 = arith.cmpi eq, %1, %29 : vector<128x128xi32>
    %31 = arith.extui %30 : vector<128x128xi1> to vector<128x128xi32>
    %32 = arith.sitofp %31 : vector<128x128xi32> to vector<128x128xf32>
    %c3 = arith.constant 3 : index
    %c0_10 = arith.constant 0 : index
    %c0_11 = arith.constant 0 : index
    %33 = vector.load %arg2[%c3, %c0_10, %c0_11] : memref<8x128x128xf32, #tpu.memory_space<vmem>>, vector<1x128x128xf32>
    %34 = vector.shape_cast %33 : vector<1x128x128xf32> to vector<128x128xf32>
    %cst_12 = arith.constant dense<0.000000e+00> : vector<128x128xf32>
    %35 = tpu.matmul %32, %34, %cst_12 {dimension_numbers = #tpu.dot_dimension_numbers<[1], [0], [0], [1], [0, 0, 1, 1], [], []>} : vector<128x128xf32>, vector<128x128xf32>, vector<128x128xf32> -> vector<128x128xf32>
    %36 = arith.addf %27, %35 : vector<128x128xf32>
    %37 = vector.extract_strided_slice %0 {offsets = [0, 4], sizes = [128, 1], strides = [1, 1]} : vector<128x8xi32> to vector<128x1xi32>
    %38 = vector.broadcast %37 : vector<128x1xi32> to vector<128x128xi32>
    %39 = arith.cmpi eq, %1, %38 : vector<128x128xi32>
    %40 = arith.extui %39 : vector<128x128xi1> to vector<128x128xi32>
    %41 = arith.sitofp %40 : vector<128x128xi32> to vector<128x128xf32>
    %c4 = arith.constant 4 : index
    %c0_13 = arith.constant 0 : index
    %c0_14 = arith.constant 0 : index
    %42 = vector.load %arg2[%c4, %c0_13, %c0_14] : memref<8x128x128xf32, #tpu.memory_space<vmem>>, vector<1x128x128xf32>
    %43 = vector.shape_cast %42 : vector<1x128x128xf32> to vector<128x128xf32>
    %cst_15 = arith.constant dense<0.000000e+00> : vector<128x128xf32>
    %44 = tpu.matmul %41, %43, %cst_15 {dimension_numbers = #tpu.dot_dimension_numbers<[1], [0], [0], [1], [0, 0, 1, 1], [], []>} : vector<128x128xf32>, vector<128x128xf32>, vector<128x128xf32> -> vector<128x128xf32>
    %45 = arith.addf %36, %44 : vector<128x128xf32>
    %46 = vector.extract_strided_slice %0 {offsets = [0, 5], sizes = [128, 1], strides = [1, 1]} : vector<128x8xi32> to vector<128x1xi32>
    %47 = vector.broadcast %46 : vector<128x1xi32> to vector<128x128xi32>
    %48 = arith.cmpi eq, %1, %47 : vector<128x128xi32>
    %49 = arith.extui %48 : vector<128x128xi1> to vector<128x128xi32>
    %50 = arith.sitofp %49 : vector<128x128xi32> to vector<128x128xf32>
    %c5 = arith.constant 5 : index
    %c0_16 = arith.constant 0 : index
    %c0_17 = arith.constant 0 : index
    %51 = vector.load %arg2[%c5, %c0_16, %c0_17] : memref<8x128x128xf32, #tpu.memory_space<vmem>>, vector<1x128x128xf32>
    %52 = vector.shape_cast %51 : vector<1x128x128xf32> to vector<128x128xf32>
    %cst_18 = arith.constant dense<0.000000e+00> : vector<128x128xf32>
    %53 = tpu.matmul %50, %52, %cst_18 {dimension_numbers = #tpu.dot_dimension_numbers<[1], [0], [0], [1], [0, 0, 1, 1], [], []>} : vector<128x128xf32>, vector<128x128xf32>, vector<128x128xf32> -> vector<128x128xf32>
    %54 = arith.addf %45, %53 : vector<128x128xf32>
    %55 = vector.extract_strided_slice %0 {offsets = [0, 6], sizes = [128, 1], strides = [1, 1]} : vector<128x8xi32> to vector<128x1xi32>
    %56 = vector.broadcast %55 : vector<128x1xi32> to vector<128x128xi32>
    %57 = arith.cmpi eq, %1, %56 : vector<128x128xi32>
    %58 = arith.extui %57 : vector<128x128xi1> to vector<128x128xi32>
    %59 = arith.sitofp %58 : vector<128x128xi32> to vector<128x128xf32>
    %c6 = arith.constant 6 : index
    %c0_19 = arith.constant 0 : index
    %c0_20 = arith.constant 0 : index
    %60 = vector.load %arg2[%c6, %c0_19, %c0_20] : memref<8x128x128xf32, #tpu.memory_space<vmem>>, vector<1x128x128xf32>
    %61 = vector.shape_cast %60 : vector<1x128x128xf32> to vector<128x128xf32>
    %cst_21 = arith.constant dense<0.000000e+00> : vector<128x128xf32>
    %62 = tpu.matmul %59, %61, %cst_21 {dimension_numbers = #tpu.dot_dimension_numbers<[1], [0], [0], [1], [0, 0, 1, 1], [], []>} : vector<128x128xf32>, vector<128x128xf32>, vector<128x128xf32> -> vector<128x128xf32>
    %63 = arith.addf %54, %62 : vector<128x128xf32>
    %64 = vector.extract_strided_slice %0 {offsets = [0, 7], sizes = [128, 1], strides = [1, 1]} : vector<128x8xi32> to vector<128x1xi32>
    %65 = vector.broadcast %64 : vector<128x1xi32> to vector<128x128xi32>
    %66 = arith.cmpi eq, %1, %65 : vector<128x128xi32>
    %67 = arith.extui %66 : vector<128x128xi1> to vector<128x128xi32>
    %68 = arith.sitofp %67 : vector<128x128xi32> to vector<128x128xf32>
    %c7 = arith.constant 7 : index
    %c0_22 = arith.constant 0 : index
    %c0_23 = arith.constant 0 : index
    %69 = vector.load %arg2[%c7, %c0_22, %c0_23] : memref<8x128x128xf32, #tpu.memory_space<vmem>>, vector<1x128x128xf32>
    %70 = vector.shape_cast %69 : vector<1x128x128xf32> to vector<128x128xf32>
    %cst_24 = arith.constant dense<0.000000e+00> : vector<128x128xf32>
    %71 = tpu.matmul %68, %70, %cst_24 {dimension_numbers = #tpu.dot_dimension_numbers<[1], [0], [0], [1], [0, 0, 1, 1], [], []>} : vector<128x128xf32>, vector<128x128xf32>, vector<128x128xf32> -> vector<128x128xf32>
    %72 = arith.addf %63, %71 : vector<128x128xf32>
    %73 = tpu.iota {dimensions = array<i32: 1>} : vector<1x128xi32>
    %c64_i32 = arith.constant 64 : i32
    %74 = vector.broadcast %c64_i32 : i32 to vector<1x128xi32>
    %75 = arith.cmpi sge, %73, %74 : vector<1x128xi32>
    %c80_i32 = arith.constant 80 : i32
    %76 = vector.broadcast %c80_i32 : i32 to vector<1x128xi32>
    %77 = arith.cmpi slt, %73, %76 : vector<1x128xi32>
    %78 = arith.andi %75, %77 : vector<1x128xi1>
    %79 = arith.extui %78 : vector<1x128xi1> to vector<1x128xi32>
    %80 = arith.sitofp %79 : vector<1x128xi32> to vector<1x128xf32>
    %c80_i32_25 = arith.constant 80 : i32
    %81 = vector.broadcast %c80_i32_25 : i32 to vector<1x128xi32>
    %82 = arith.cmpi eq, %73, %81 : vector<1x128xi32>
    %83 = arith.extui %82 : vector<1x128xi1> to vector<1x128xi32>
    %84 = arith.sitofp %83 : vector<1x128xi32> to vector<1x128xf32>
    %85 = vector.broadcast %80 : vector<1x128xf32> to vector<128x128xf32>
    %86 = arith.mulf %72, %85 : vector<128x128xf32>
    %87 = arith.mulf %86, %86 : vector<128x128xf32>
    %88 = vector.broadcast %84 : vector<1x128xf32> to vector<128x128xf32>
    %89 = arith.mulf %72, %88 : vector<128x128xf32>
    %90 = arith.subf %87, %89 : vector<128x128xf32>
    %cst_26 = arith.constant 5.000000e-01 : f32
    %91 = vector.broadcast %cst_26 : f32 to vector<128x128xf32>
    %92 = arith.mulf %91, %90 : vector<128x128xf32>
    %c0_27 = arith.constant 0 : index
    %c0_28 = arith.constant 0 : index
    %93 = vector.load %arg3[%c0_27, %c0_28] : memref<1x128xf32, #tpu.memory_space<vmem>>, vector<1x128xf32>
    %94 = vector.broadcast %93 : vector<1x128xf32> to vector<128x128xf32>
    %95 = arith.addf %72, %94 : vector<128x128xf32>
    %cst_29 = arith.constant 0.000000e+00 : f32
    %96 = vector.broadcast %cst_29 : f32 to vector<128x128xf32>
    %97 = arith.maximumf %95, %96 : vector<128x128xf32>
    %c0_30 = arith.constant 0 : index
    %c0_31 = arith.constant 0 : index
    %98 = vector.load %arg4[%c0_30, %c0_31] : memref<128x128xf32, #tpu.memory_space<vmem>>, vector<128x128xf32>
    %cst_32 = arith.constant dense<0.000000e+00> : vector<128x128xf32>
    %99 = tpu.matmul %97, %98, %cst_32 {dimension_numbers = #tpu.dot_dimension_numbers<[1], [0], [0], [1], [0, 0, 1, 1], [], []>} : vector<128x128xf32>, vector<128x128xf32>, vector<128x128xf32> -> vector<128x128xf32>
    %c0_33 = arith.constant 0 : index
    %c0_34 = arith.constant 0 : index
    %100 = vector.load %arg5[%c0_33, %c0_34] : memref<1x128xf32, #tpu.memory_space<vmem>>, vector<1x128xf32>
    %101 = vector.broadcast %100 : vector<1x128xf32> to vector<128x128xf32>
    %102 = arith.addf %99, %101 : vector<128x128xf32>
    %cst_35 = arith.constant 0.000000e+00 : f32
    %103 = vector.broadcast %cst_35 : f32 to vector<128x128xf32>
    %104 = arith.maximumf %102, %103 : vector<128x128xf32>
    %c0_36 = arith.constant 0 : index
    %c0_37 = arith.constant 0 : index
    %105 = vector.load %arg6[%c0_36, %c0_37] : memref<1x128xf32, #tpu.memory_space<vmem>>, vector<1x128xf32>
    %106 = vector.broadcast %105 : vector<1x128xf32> to vector<128x128xf32>
    %107 = arith.mulf %104, %106 : vector<128x128xf32>
    %108 = arith.addf %92, %107 : vector<128x128xf32>
    %cst_38 = arith.constant 1.000000e+00 : f32
    %109 = vector.broadcast %cst_38 : f32 to vector<1x128xf32>
    %cst_39 = arith.constant dense<0.000000e+00> : vector<1x128xf32>
    %110 = tpu.matmul %109, %108, %cst_39 {dimension_numbers = #tpu.dot_dimension_numbers<[1], [1], [0], [0], [0, 0, 1, 0], [], []>} : vector<1x128xf32>, vector<128x128xf32>, vector<1x128xf32> -> vector<1x128xf32>
    %c0_40 = arith.constant 0 : index
    %c0_41 = arith.constant 0 : index
    %111 = vector.load %arg7[%c0_40, %c0_41] : memref<1x1xf32, #tpu.memory_space<vmem>>, vector<1x1xf32>
    %112 = vector.broadcast %111 : vector<1x1xf32> to vector<1x128xf32>
    %113 = arith.addf %110, %112 : vector<1x128xf32>
    %c0_42 = arith.constant 0 : index
    %c0_43 = arith.constant 0 : index
    %114 = vector.load %arg8[%c0_42, %c0_43] : memref<1x128xf32, #tpu.memory_space<vmem>>, vector<1x128xf32>
    tpu.vector_store %arg8[%c0_42, %c0_43], %113 {strides = array<i32>} : memref<1x128xf32, #tpu.memory_space<vmem>>, vector<1x128xf32>,
    return
  }
  func.func @transform_0(%arg0: i32) -> (i32, i32) {
    %c0_i32 = arith.constant 0 : i32
    %c0_i32_0 = arith.constant 0 : i32
    return %arg0, %c0_i32 : i32, i32
  }
  func.func @transform_1(%arg0: i32) -> (i32, i32, i32) {
    %c0_i32 = arith.constant 0 : i32
    %c0_i32_0 = arith.constant 0 : i32
    %c0_i32_1 = arith.constant 0 : i32
    %c0_i32_2 = arith.constant 0 : i32
    return %c0_i32, %c0_i32_0, %c0_i32_1 : i32, i32, i32
  }
  func.func @transform_2(%arg0: i32) -> (i32, i32) {
    %c0_i32 = arith.constant 0 : i32
    %c0_i32_0 = arith.constant 0 : i32
    %c0_i32_1 = arith.constant 0 : i32
    return %c0_i32, %c0_i32_0 : i32, i32
  }
  func.func @transform_3(%arg0: i32) -> (i32, i32) {
    %c0_i32 = arith.constant 0 : i32
    %c0_i32_0 = arith.constant 0 : i32
    %c0_i32_1 = arith.constant 0 : i32
    return %c0_i32, %c0_i32_0 : i32, i32
  }
  func.func @transform_4(%arg0: i32) -> (i32, i32) {
    %c0_i32 = arith.constant 0 : i32
    %c0_i32_0 = arith.constant 0 : i32
    %c0_i32_1 = arith.constant 0 : i32
    return %c0_i32, %c0_i32_0 : i32, i32
  }
  func.func @transform_5(%arg0: i32) -> (i32, i32) {
    %c0_i32 = arith.constant 0 : i32
    %c0_i32_0 = arith.constant 0 : i32
    %c0_i32_1 = arith.constant 0 : i32
    return %c0_i32, %c0_i32_0 : i32, i32
  }
  func.func @transform_6(%arg0: i32) -> (i32, i32) {
    %c0_i32 = arith.constant 0 : i32
    %c0_i32_0 = arith.constant 0 : i32
    %c0_i32_1 = arith.constant 0 : i32
    return %c0_i32, %c0_i32_0 : i32, i32
  }
  func.func @transform_7(%arg0: i32) -> (i32, i32) {
    %c0_i32 = arith.constant 0 : i32
    %c0_i32_0 = arith.constant 0 : i32
    return %c0_i32, %arg0 : i32, i32
  }
}

</mosaic_0001>

<llo_original>
// kernel: tpu_custom_call.1
$region0: #{tpu_custom_call.1}
  #allocation0 [shape = 'u32[]', space=smem, size = 0x4, offset = 0x4, fixed_abs, tag = 'smem constant byte address 0x4 - core index']
  #allocation1 [shape = 'u32[144,128]{1,0:T(1,128)}', space=vmem, size = 0x12000, scoped, tag = 'internal scratch']
  #allocation2 [shape = 'f32[1,1]{1,0:T(1,128)S(1)}', space=vmem, size = 0x200, scoped, tag = 'scoped memory for tpu_custom_call.1']
  %s0 = inlined_call_operand.vmem [shape: s32[256,8], index: 0, kind: input, shape index: {}]
  %s1 = inlined_call_operand.hbm [shape: f32[8,128,128], index: 1, kind: input, shape index: {}]
  %s2 = inlined_call_operand.vmem [shape: f32[1,128], index: 2, kind: input, shape index: {}]
  %s3 = inlined_call_operand.vmem [shape: f32[128,128], index: 3, kind: input, shape index: {}]
  %s4 = inlined_call_operand.vmem [shape: f32[1,128], index: 4, kind: input, shape index: {}]
  %s5 = inlined_call_operand.vmem [shape: f32[1,128], index: 5, kind: input, shape index: {}]
  %s6 = inlined_call_operand.<no memory space> [shape: f32[1,1], index: 6, kind: input, shape index: {}]
  %s7 = inlined_call_operand.hbm [shape: f32[1,256], index: 7, kind: output, shape index: {}]
  %s8 = sld [smem:[#allocation0]]
  $region65: #{tpu_custom_call.1} parent=0
    _
  %s10 = ssub.s32 1, %s8
  %s11 = scalar_select 0, %s10, %s8
  %v12 = vstv %s6
  %13 = vst [vmem:[#allocation2] sm:$0x1] %v12
  $region1: #{tpu_custom_call.1} parent=0
    #allocation3 [shape = 'u8[524288]{0}', space=vmem, size = 0x80000, scoped, tag = 'input window, operand 1, single buffered']
    #allocation4 [shape = 's32[2]{0}', space=sflag, size = 0x8, scoped, tag = 'scoped memory for tpu_custom_call.1']
    #allocation5 [shape = 's32[2]{0}', space=sflag, size = 0x8, scoped, tag = 'scoped memory for tpu_custom_call.1']
    #allocation6 [shape = 'u8[1024]{0}', space=vmem, size = 0x400, scoped, tag = 'output window, operand 0']
    %14 = vsyncpa [#allocation4], 0
    %15 = vsyncpa [#allocation5], 0
    %s16 = scalar_lea.sflag [#allocation5], 1
    %17 = vsyncpa %s16, 0
    loop: start=0, step=1, limit=4
    $region2: #{tpu_custom_call.1} parent=1 // loop_pre_header
      _
    $region3: #{tpu_custom_call.1} parent=1 // loop_header
      %s19 = sphi 0, %s23
      %p20 = scmp.ge.s32.totalorder %s19, 4
      %s29 = sphi 0, %s31
      %s32 = sphi 0, %s29
      %s33 = sphi 0, %s32
      %s49 = sphi 0, %s33
      %s53 = sphi 0, %s53
      %s55 = sphi 0, %s53
      %s56 = sphi 0, %s55
      %s70 = sphi 0, %s56
      %s74 = sphi 0, %s74
      %s76 = sphi 0, %s74
      %s77 = sphi 0, %s76
      %s91 = sphi 0, %s77
      %s95 = sphi 0, %s95
      %s97 = sphi 0, %s95
      %s98 = sphi 0, %s97
      %s112 = sphi 0, %s98
      %s116 = sphi 0, %s116
      %s118 = sphi 0, %s116
      %s119 = sphi 0, %s118
      %s133 = sphi 0, %s119
      %s137 = sphi 0, %s137
      %s139 = sphi 0, %s137
      %s140 = sphi 0, %s139
      %s154 = sphi 0, %s140
      %s158 = sphi 0, %s158
      %s160 = sphi 0, %s158
      %s161 = sphi 0, %s160
      %s175 = sphi 0, %s161
      %s181 = sphi 0, %s183
      %s184 = sphi 0, %s181
      %s185 = sphi 0, %s184
      %s201 = sphi 0, %s185
    $region4: #{tpu_custom_call.1} parent=1 // loop_header_branch
      %22 = sbr.rel (%p20) target = $region8
    $region5: #{tpu_custom_call.1} parent=1 // loop_body
      %s24 = ssub.s32 %s19, 1
      %s25 = ssub.s32 %s19, 2
      %s26 = sadd.s32 %s19, 1
      %s27 = ssub.s32 %s19, %s26
      %p28 = scmp.eq.s32.totalorder %s27, 0
      %s30 = sadd.s32 %s29, 1
      %s31 = scalar_select %p28, %s29, %s30
      %p34 = pneg %p28
      %p35 = scmp.eq.s32.totalorder %s19, 1
      %p36 = por %p34, %p35
      %p37 = scmp.ne.s32.totalorder %s29, %s32
      %p38 = scmp.eq.s32.totalorder %s19, 0
      %p39 = por %p37, %p38
      %p40 = scmp.ne.s32.totalorder %s29, %s32
      %p41 = scmp.eq.s32.totalorder %s24, 1
      %p42 = por %p40, %p41
      %p43 = scmp.ne.s32.totalorder %s32, %s33
      %p44 = scmp.eq.s32.totalorder %s24, 0
      %p45 = por %p43, %p44
      %p46 = scmp.ne.s32.totalorder %s32, %s33
      %p47 = scmp.eq.s32.totalorder %s25, 1
      %p48 = por %p46, %p47
      %p50 = scmp.ne.s32.totalorder %s33, %s49
      %p51 = scmp.eq.s32.totalorder %s25, 0
      %p52 = por %p50, %p51
      %s54 = sadd.s32 %s53, 1
      %p57 = scmp.eq.s32.totalorder %s19, 1
      %p58 = scmp.ne.s32.totalorder %s53, %s55
      %p59 = scmp.eq.s32.totalorder %s19, 0
      %p60 = por %p58, %p59
      %p61 = scmp.ne.s32.totalorder %s53, %s55
      %p62 = scmp.eq.s32.totalorder %s24, 1
      %p63 = por %p61, %p62
      %p64 = scmp.ne.s32.totalorder %s55, %s56
      %p65 = scmp.eq.s32.totalorder %s24, 0
      %p66 = por %p64, %p65
      %p67 = scmp.ne.s32.totalorder %s55, %s56
      %p68 = scmp.eq.s32.totalorder %s25, 1
      %p69 = por %p67, %p68
      %p71 = scmp.ne.s32.totalorder %s56, %s70
      %p72 = scmp.eq.s32.totalorder %s25, 0
      %p73 = por %p71, %p72
      %s75 = sadd.s32 %s74, 1
      %p78 = scmp.eq.s32.totalorder %s19, 1
      %p79 = scmp.ne.s32.totalorder %s74, %s76
      %p80 = scmp.eq.s32.totalorder %s19, 0
      %p81 = por %p79, %p80
      %p82 = scmp.ne.s32.totalorder %s74, %s76
      %p83 = scmp.eq.s32.totalorder %s24, 1
      %p84 = por %p82, %p83
      %p85 = scmp.ne.s32.totalorder %s76, %s77
      %p86 = scmp.eq.s32.totalorder %s24, 0
      %p87 = por %p85, %p86
      %p88 = scmp.ne.s32.totalorder %s76, %s77
      %p89 = scmp.eq.s32.totalorder %s25, 1
      %p90 = por %p88, %p89
      %p92 = scmp.ne.s32.totalorder %s77, %s91
      %p93 = scmp.eq.s32.totalorder %s25, 0
      %p94 = por %p92, %p93
      %s96 = sadd.s32 %s95, 1
      %p99 = scmp.eq.s32.totalorder %s19, 1
      %p100 = scmp.ne.s32.totalorder %s95, %s97
      %p101 = scmp.eq.s32.totalorder %s19, 0
      %p102 = por %p100, %p101
      %p103 = scmp.ne.s32.totalorder %s95, %s97
      %p104 = scmp.eq.s32.totalorder %s24, 1
      %p105 = por %p103, %p104
      %p106 = scmp.ne.s32.totalorder %s97, %s98
      %p107 = scmp.eq.s32.totalorder %s24, 0
      %p108 = por %p106, %p107
      %p109 = scmp.ne.s32.totalorder %s97, %s98
      %p110 = scmp.eq.s32.totalorder %s25, 1
      %p111 = por %p109, %p110
      %p113 = scmp.ne.s32.totalorder %s98, %s112
      %p114 = scmp.eq.s32.totalorder %s25, 0
      %p115 = por %p113, %p114
      %s117 = sadd.s32 %s116, 1
      %p120 = scmp.eq.s32.totalorder %s19, 1
      %p121 = scmp.ne.s32.totalorder %s116, %s118
      %p122 = scmp.eq.s32.totalorder %s19, 0
      %p123 = por %p121, %p122
      %p124 = scmp.ne.s32.totalorder %s116, %s118
      %p125 = scmp.eq.s32.totalorder %s24, 1
      %p126 = por %p124, %p125
      %p127 = scmp.ne.s32.totalorder %s118, %s119
      %p128 = scmp.eq.s32.totalorder %s24, 0
      %p129 = por %p127, %p128
      %p130 = scmp.ne.s32.totalorder %s118, %s119
      %p131 = scmp.eq.s32.totalorder %s25, 1
      %p132 = por %p130, %p131
      %p134 = scmp.ne.s32.totalorder %s119, %s133
      %p135 = scmp.eq.s32.totalorder %s25, 0
      %p136 = por %p134, %p135
      %s138 = sadd.s32 %s137, 1
      %p141 = scmp.eq.s32.totalorder %s19, 1
      %p142 = scmp.ne.s32.totalorder %s137, %s139
      %p143 = scmp.eq.s32.totalorder %s19, 0
      %p144 = por %p142, %p143
      %p145 = scmp.ne.s32.totalorder %s137, %s139
      %p146 = scmp.eq.s32.totalorder %s24, 1
      %p147 = por %p145, %p146
      %p148 = scmp.ne.s32.totalorder %s139, %s140
      %p149 = scmp.eq.s32.totalorder %s24, 0
      %p150 = por %p148, %p149
      %p151 = scmp.ne.s32.totalorder %s139, %s140
      %p152 = scmp.eq.s32.totalorder %s25, 1
      %p153 = por %p151, %p152
      %p155 = scmp.ne.s32.totalorder %s140, %s154
      %p156 = scmp.eq.s32.totalorder %s25, 0
      %p157 = por %p155, %p156
      %s159 = sadd.s32 %s158, 1
      %p162 = scmp.eq.s32.totalorder %s19, 1
      %p163 = scmp.ne.s32.totalorder %s158, %s160
      %p164 = scmp.eq.s32.totalorder %s19, 0
      %p165 = por %p163, %p164
      %p166 = scmp.ne.s32.totalorder %s158, %s160
      %p167 = scmp.eq.s32.totalorder %s24, 1
      %p168 = por %p166, %p167
      %p169 = scmp.ne.s32.totalorder %s160, %s161
      %p170 = scmp.eq.s32.totalorder %s24, 0
      %p171 = por %p169, %p170
      %p172 = scmp.ne.s32.totalorder %s160, %s161
      %p173 = scmp.eq.s32.totalorder %s25, 1
      %p174 = por %p172, %p173
      %p176 = scmp.ne.s32.totalorder %s161, %s175
      %p177 = scmp.eq.s32.totalorder %s25, 0
      %p178 = por %p176, %p177
      %s179 = ssub.s32 %s19, %s26
      %p180 = scmp.eq.s32.totalorder %s179, 0
      %s182 = sadd.s32 %s181, 1
      %s183 = scalar_select %p180, %s181, %s182
      %p186 = pneg %p180
      %p187 = scmp.eq.s32.totalorder %s19, 1
      %p188 = por %p186, %p187
      %p189 = scmp.ne.s32.totalorder %s181, %s184
      %p190 = scmp.eq.s32.totalorder %s19, 0
      %p191 = por %p189, %p190
      %p192 = scmp.ne.s32.totalorder %s181, %s184
      %p193 = scmp.eq.s32.totalorder %s24, 1
      %p194 = por %p192, %p193
      %p195 = scmp.ne.s32.totalorder %s184, %s185
      %p196 = scmp.eq.s32.totalorder %s24, 0
      %p197 = por %p195, %p196
      %p198 = scmp.ne.s32.totalorder %s184, %s185
      %p199 = scmp.eq.s32.totalorder %s25, 1
      %p200 = por %p198, %p199
      %p202 = scmp.ne.s32.totalorder %s185, %s201
      %p203 = scmp.eq.s32.totalorder %s25, 0
      %p204 = por %p202, %p203
      %p205 = scmp.le.s32.totalorder 1, %s19
      %p206 = scmp.lt.s32.totalorder %s19, 3
      %p207 = pnand %p205, %p206
      %p208 = pneg %p207
      // Predicated region
      $region9: #{tpu_custom_call.1} parent=5 // pred_check
        _
      $region10: #{tpu_custom_call.1} parent=5 // pred_check_branch
        %210 = sbr.rel (%p207) target = $region12
      $region11: #{tpu_custom_call.1} parent=5 // pred_region
        %s211 = ssub.s32 %s19, 1
        // Predicated region
        $region13: #{tpu_custom_call.1} parent=11 // pred_check
          %p212 = pneg %p66
        $region14: #{tpu_custom_call.1} parent=11 // pred_check_branch
          %214 = sbr.rel (%p212) target = $region16
        $region15: #{tpu_custom_call.1} parent=11 // pred_region
          %s216 = ssub.s32 16384, 16384
          %217 = vsyncadd [#allocation4], %s216
          %s218 = sshll.u32 [#allocation3], 4
          %s219 = int_to_ptr.vmem [resolvable:$true] %s218
          %224 = dma.hbm_to_vmem [thread:$0]  %s1, 16384, %s219, [#allocation4], 128, 128, 8
        $region16: #{tpu_custom_call.1} parent=11 // pred_fallthru
          _
        // Predicated region
        $region17: #{tpu_custom_call.1} parent=11 // pred_check
          %p225 = pneg %p87
        $region18: #{tpu_custom_call.1} parent=11 // pred_check_branch
          %227 = sbr.rel (%p225) target = $region20
        $region19: #{tpu_custom_call.1} parent=11 // pred_region
          _
        $region20: #{tpu_custom_call.1} parent=11 // pred_fallthru
          _
        // Predicated region
        $region21: #{tpu_custom_call.1} parent=11 // pred_check
          %p228 = pneg %p108
        $region22: #{tpu_custom_call.1} parent=11 // pred_check_branch
          %230 = sbr.rel (%p228) target = $region24
        $region23: #{tpu_custom_call.1} parent=11 // pred_region
          _
        $region24: #{tpu_custom_call.1} parent=11 // pred_fallthru
          _
        // Predicated region
        $region25: #{tpu_custom_call.1} parent=11 // pred_check
          %p231 = pneg %p129
        $region26: #{tpu_custom_call.1} parent=11 // pred_check_branch
          %233 = sbr.rel (%p231) target = $region28
        $region27: #{tpu_custom_call.1} parent=11 // pred_region
          _
        $region28: #{tpu_custom_call.1} parent=11 // pred_fallthru
          _
        // Predicated region
        $region29: #{tpu_custom_call.1} parent=11 // pred_check
          %p234 = pneg %p150
        $region30: #{tpu_custom_call.1} parent=11 // pred_check_branch
          %236 = sbr.rel (%p234) target = $region32
        $region31: #{tpu_custom_call.1} parent=11 // pred_region
          _
        $region32: #{tpu_custom_call.1} parent=11 // pred_fallthru
          _
        // Predicated region
        $region33: #{tpu_custom_call.1} parent=11 // pred_check
          %p237 = pneg %p171
        $region34: #{tpu_custom_call.1} parent=11 // pred_check_branch
          %239 = sbr.rel (%p237) target = $region36
        $region35: #{tpu_custom_call.1} parent=11 // pred_region
          _
        $region36: #{tpu_custom_call.1} parent=11 // pred_fallthru
          _
      $region12: #{tpu_custom_call.1} parent=5 // pred_fallthru
        _
      %p240 = scmp.lt.s32.totalorder %s19, 2
      // Predicated region
      $region37: #{tpu_custom_call.1} parent=5 // pred_check
        %p241 = pneg %p240
      $region38: #{tpu_custom_call.1} parent=5 // pred_check_branch
        %243 = sbr.rel (%p241) target = $region40
      $region39: #{tpu_custom_call.1} parent=5 // pred_region
        // Predicated region
        $region41: #{tpu_custom_call.1} parent=39 // pred_check
          %p244 = pneg %p39
        $region42: #{tpu_custom_call.1} parent=39 // pred_check_branch
          %246 = sbr.rel (%p244) target = $region44
        $region43: #{tpu_custom_call.1} parent=39 // pred_region
          %s247 = smul.u32 16, %s19
          %p248 = scmp.lt.s32.totalorder %s247, 31
          %s249 = scalar_select %p248, %s247, 31
          %s250 = smul.addr %s249, 8
          %s251 = scalar_lea.vmem %s0, %s250
          %s252 = smul.u32 16, %s19
        $region44: #{tpu_custom_call.1} parent=39 // pred_fallthru
          _
      $region40: #{tpu_custom_call.1} parent=5 // pred_fallthru
        _
      %p253 = scmp.le.s32.totalorder 1, %s19
      %p254 = scmp.lt.s32.totalorder %s19, 3
      %p255 = pnand %p253, %p254
      %p256 = pneg %p255
      // Predicated region
      $region45: #{tpu_custom_call.1} parent=5 // pred_check
        _
      $region46: #{tpu_custom_call.1} parent=5 // pred_check_branch
        %258 = sbr.rel (%p255) target = $region48
      $region47: #{tpu_custom_call.1} parent=5 // pred_region
        %s259 = ssub.s32 %s19, 1
        // Predicated region
        $region49: #{tpu_custom_call.1} parent=47 // pred_check
          %p260 = pneg %p66
        $region50: #{tpu_custom_call.1} parent=47 // pred_check_branch
          %262 = sbr.rel (%p260) target = $region52
        $region51: #{tpu_custom_call.1} parent=47 // pred_region
          %263 = dma.done [#allocation4], 16384
        $region52: #{tpu_custom_call.1} parent=47 // pred_fallthru
          _
        %s264 = smul.u32 16, %s24
        %p265 = scmp.lt.s32.totalorder %s264, 31
        %s266 = scalar_select %p265, %s264, 31
        %s267 = smul.addr %s266, 8
        %s268 = scalar_lea.vmem %s0, %s267
        %p269 = pneg %p45
        %p270 = pneg %p42
        %p271 = pneg %p66
        %p272 = pneg %p63
        %p273 = pneg %p87
        %p274 = pneg %p84
        %p275 = pneg %p108
        %p276 = pneg %p105
        %p277 = pneg %p129
        %p278 = pneg %p126
        %p279 = pneg %p150
        %p280 = pneg %p147
        %p281 = pneg %p171
        %p282 = pneg %p168
        %p283 = pneg %p197
        %p284 = pneg %p194
        %s285 = sand.u32 %s184, 1
        %s286 = scalar_lea.sflag [#allocation5], %s285
        %s287 = sand.u32 %s184, 1
        %s288 = scalar_lea.vmem [#allocation6], %s287
        %s289 = smul.u32 16, %s24
        %p290 = scmp.lt.s32.totalorder %s289, 31
        %s291 = scalar_select %p290, %s289, 31
        %s292 = smul.addr %s291, 8
        %s293 = scalar_lea.vmem %s0, %s292
        %s294 = smul.u32 16, %s24
        %v295 = vld [vmem:[%s293] sm:$0xff]
        %v296 = vld [vmem:[%s293 + $0x8] sm:$0xff]
        %v297 = vld [vmem:[%s293 + $0x10] sm:$0xff]
        %v298 = vld [vmem:[%s293 + $0x18] sm:$0xff]
        %v299 = vld [vmem:[%s293 + $0x20] sm:$0xff]
        %v300 = vld [vmem:[%s293 + $0x28] sm:$0xff]
        %v301 = vld [vmem:[%s293 + $0x30] sm:$0xff]
        %v302 = vld [vmem:[%s293 + $0x38] sm:$0xff]
        %v303 = vld [vmem:[%s293 + $0x40] sm:$0xff]
        %v304 = vld [vmem:[%s293 + $0x48] sm:$0xff]
        %v305 = vld [vmem:[%s293 + $0x50] sm:$0xff]
        %v306 = vld [vmem:[%s293 + $0x58] sm:$0xff]
        %v307 = vld [vmem:[%s293 + $0x60] sm:$0xff]
        %v308 = vld [vmem:[%s293 + $0x68] sm:$0xff]
        %v309 = vld [vmem:[%s293 + $0x70] sm:$0xff]
        %v310 = vld [vmem:[%s293 + $0x78] sm:$0xff]
        %v311 = vlaneseq
        %v312 = vand.u32 %v311, 127
        %313 = vset.pattern.permute.xlu0 0
        %314 = vperm.xlu0 %313, %v295
        %v315 = vpop.permute.xlu0 %314
        %316 = vset.pattern.permute.xlu0 0
        %317 = vperm.xlu0 %316, %v296
        %v318 = vpop.permute.xlu0 %317
        %319 = vset.pattern.permute.xlu0 0
        %320 = vperm.xlu0 %319, %v297
        %v321 = vpop.permute.xlu0 %320
        %322 = vset.pattern.permute.xlu0 0
        %323 = vperm.xlu0 %322, %v298
        %v324 = vpop.permute.xlu0 %323
        %325 = vset.pattern.permute.xlu0 0
        %326 = vperm.xlu0 %325, %v299
        %v327 = vpop.permute.xlu0 %326
        %328 = vset.pattern.permute.xlu0 0
        %329 = vperm.xlu0 %328, %v300
        %v330 = vpop.permute.xlu0 %329
        %331 = vset.pattern.permute.xlu0 0
        %332 = vperm.xlu0 %331, %v301
        %v333 = vpop.permute.xlu0 %332
        %334 = vset.pattern.permute.xlu0 0
        %335 = vperm.xlu0 %334, %v302
        %v336 = vpop.permute.xlu0 %335
        %337 = vset.pattern.permute.xlu0 0
        %338 = vperm.xlu0 %337, %v303
        %v339 = vpop.permute.xlu0 %338
        %340 = vset.pattern.permute.xlu0 0
        %341 = vperm.xlu0 %340, %v304
        %v342 = vpop.permute.xlu0 %341
        %343 = vset.pattern.permute.xlu0 0
        %344 = vperm.xlu0 %343, %v305
        %v345 = vpop.permute.xlu0 %344
        %346 = vset.pattern.permute.xlu0 0
        %347 = vperm.xlu0 %346, %v306
        %v348 = vpop.permute.xlu0 %347
        %349 = vset.pattern.permute.xlu0 0
        %350 = vperm.xlu0 %349, %v307
        %v351 = vpop.permute.xlu0 %350
        %352 = vset.pattern.permute.xlu0 0
        %353 = vperm.xlu0 %352, %v308
        %v354 = vpop.permute.xlu0 %353
        %355 = vset.pattern.permute.xlu0 0
        %356 = vperm.xlu0 %355, %v309
        %v357 = vpop.permute.xlu0 %356
        %358 = vset.pattern.permute.xlu0 0
        %359 = vperm.xlu0 %358, %v310
        %v360 = vpop.permute.xlu0 %359
        %vm361 = vcmp.eq.s32.totalorder %v312, %v315
        %vm362 = vcmp.eq.s32.totalorder %v312, %v318
        %vm363 = vcmp.eq.s32.totalorder %v312, %v321
        %vm364 = vcmp.eq.s32.totalorder %v312, %v324
        %vm365 = vcmp.eq.s32.totalorder %v312, %v327
        %vm366 = vcmp.eq.s32.totalorder %v312, %v330
        %vm367 = vcmp.eq.s32.totalorder %v312, %v333
        %vm368 = vcmp.eq.s32.totalorder %v312, %v336
        %vm369 = vcmp.eq.s32.totalorder %v312, %v339
        %vm370 = vcmp.eq.s32.totalorder %v312, %v342
        %vm371 = vcmp.eq.s32.totalorder %v312, %v345
        %vm372 = vcmp.eq.s32.totalorder %v312, %v348
        %vm373 = vcmp.eq.s32.totalorder %v312, %v351
        %vm374 = vcmp.eq.s32.totalorder %v312, %v354
        %vm375 = vcmp.eq.s32.totalorder %v312, %v357
        %vm376 = vcmp.eq.s32.totalorder %v312, %v360
        %v377 = vsel %vm361, 1, 0
        %v378 = vsel %vm362, 1, 0
        %v379 = vsel %vm363, 1, 0
        %v380 = vsel %vm364, 1, 0
        %v381 = vsel %vm365, 1, 0
        %v382 = vsel %vm366, 1, 0
        %v383 = vsel %vm367, 1, 0
        %v384 = vsel %vm368, 1, 0
        %v385 = vsel %vm369, 1, 0
        %v386 = vsel %vm370, 1, 0
        %v387 = vsel %vm371, 1, 0
        %v388 = vsel %vm372, 1, 0
        %v389 = vsel %vm373, 1, 0
        %v390 = vsel %vm374, 1, 0
        %v391 = vsel %vm375, 1, 0
        %v392 = vsel %vm376, 1, 0
        %v393 = vcvt.s32.f32 %v377
        %v394 = vcvt.s32.f32 %v378
        %v395 = vcvt.s32.f32 %v379
        %v396 = vcvt.s32.f32 %v380
        %v397 = vcvt.s32.f32 %v381
        %v398 = vcvt.s32.f32 %v382
        %v399 = vcvt.s32.f32 %v383
        %v400 = vcvt.s32.f32 %v384
        %v401 = vcvt.s32.f32 %v385
        %v402 = vcvt.s32.f32 %v386
        %v403 = vcvt.s32.f32 %v387
        %v404 = vcvt.s32.f32 %v388
        %v405 = vcvt.s32.f32 %v389
        %v406 = vcvt.s32.f32 %v390
        %v407 = vcvt.s32.f32 %v391
        %v408 = vcvt.s32.f32 %v392
        %v409 = vld [vmem:[#allocation3] sm:$0xff]
        %v410 = vld [vmem:[#allocation3 + $0x8] sm:$0xff]
        %v411 = vld [vmem:[#allocation3 + $0x10] sm:$0xff]
        %v412 = vld [vmem:[#allocation3 + $0x18] sm:$0xff]
        %v413 = vld [vmem:[#allocation3 + $0x20] sm:$0xff]
        %v414 = vld [vmem:[#allocation3 + $0x28] sm:$0xff]
        %v415 = vld [vmem:[#allocation3 + $0x30] sm:$0xff]
        %v416 = vld [vmem:[#allocation3 + $0x38] sm:$0xff]
        %v417 = vld [vmem:[#allocation3 + $0x40] sm:$0xff]
        %v418 = vld [vmem:[#allocation3 + $0x48] sm:$0xff]
        %v419 = vld [vmem:[#allocation3 + $0x50] sm:$0xff]
        %v420 = vld [vmem:[#allocation3 + $0x58] sm:$0xff]
        %v421 = vld [vmem:[#allocation3 + $0x60] sm:$0xff]
        %v422 = vld [vmem:[#allocation3 + $0x68] sm:$0xff]
        %v423 = vld [vmem:[#allocation3 + $0x70] sm:$0xff]
        %v424 = vld [vmem:[#allocation3 + $0x78] sm:$0xff]
        %425 = vset.pattern.permute.xlu0 1
        %426 = vperm.xlu0 %425, %v295
        %v427 = vpop.permute.xlu0 %426
        %428 = vset.pattern.permute.xlu0 1
        %429 = vperm.xlu0 %428, %v296
        %v430 = vpop.permute.xlu0 %429
        %431 = vset.pattern.permute.xlu0 1
        %432 = vperm.xlu0 %431, %v297
        %v433 = vpop.permute.xlu0 %432
        %434 = vset.pattern.permute.xlu0 1
        %435 = vperm.xlu0 %434, %v298
        %v436 = vpop.permute.xlu0 %435
        %437 = vset.pattern.permute.xlu0 1
        %438 = vperm.xlu0 %437, %v299
        %v439 = vpop.permute.xlu0 %438
        %440 = vset.pattern.permute.xlu0 1
        %441 = vperm.xlu0 %440, %v300
        %v442 = vpop.permute.xlu0 %441
        %443 = vset.pattern.permute.xlu0 1
        %444 = vperm.xlu0 %443, %v301
        %v445 = vpop.permute.xlu0 %444
        %446 = vset.pattern.permute.xlu0 1
        %447 = vperm.xlu0 %446, %v302
        %v448 = vpop.permute.xlu0 %447
        %449 = vset.pattern.permute.xlu0 1
        %450 = vperm.xlu0 %449, %v303
        %v451 = vpop.permute.xlu0 %450
        %452 = vset.pattern.permute.xlu0 1
        %453 = vperm.xlu0 %452, %v304
        %v454 = vpop.permute.xlu0 %453
        %455 = vset.pattern.permute.xlu0 1
        %456 = vperm.xlu0 %455, %v305
        %v457 = vpop.permute.xlu0 %456
        %458 = vset.pattern.permute.xlu0 1
        %459 = vperm.xlu0 %458, %v306
        %v460 = vpop.permute.xlu0 %459
        %461 = vset.pattern.permute.xlu0 1
        %462 = vperm.xlu0 %461, %v307
        %v463 = vpop.permute.xlu0 %462
        %464 = vset.pattern.permute.xlu0 1
        %465 = vperm.xlu0 %464, %v308
        %v466 = vpop.permute.xlu0 %465
        %467 = vset.pattern.permute.xlu0 1
        %468 = vperm.xlu0 %467, %v309
        %v469 = vpop.permute.xlu0 %468
        %470 = vset.pattern.permute.xlu0 1
        %471 = vperm.xlu0 %470, %v310
        %v472 = vpop.permute.xlu0 %471
        %vm473 = vcmp.eq.s32.totalorder %v312, %v427
        %vm474 = vcmp.eq.s32.totalorder %v312, %v430
        %vm475 = vcmp.eq.s32.totalorder %v312, %v433
        %vm476 = vcmp.eq.s32.totalorder %v312, %v436
        %vm477 = vcmp.eq.s32.totalorder %v312, %v439
        %vm478 = vcmp.eq.s32.totalorder %v312, %v442
        %vm479 = vcmp.eq.s32.totalorder %v312, %v445
        %vm480 = vcmp.eq.s32.totalorder %v312, %v448
        %vm481 = vcmp.eq.s32.totalorder %v312, %v451
        %vm482 = vcmp.eq.s32.totalorder %v312, %v454
        %vm483 = vcmp.eq.s32.totalorder %v312, %v457
        %vm484 = vcmp.eq.s32.totalorder %v312, %v460
        %vm485 = vcmp.eq.s32.totalorder %v312, %v463
        %vm486 = vcmp.eq.s32.totalorder %v312, %v466
        %vm487 = vcmp.eq.s32.totalorder %v312, %v469
        %vm488 = vcmp.eq.s32.totalorder %v312, %v472
        %v489 = vsel %vm473, 1, 0
        %v490 = vsel %vm474, 1, 0
        %v491 = vsel %vm475, 1, 0
        %v492 = vsel %vm476, 1, 0
        %v493 = vsel %vm477, 1, 0
        %v494 = vsel %vm478, 1, 0
        %v495 = vsel %vm479, 1, 0
        %v496 = vsel %vm480, 1, 0
        %v497 = vsel %vm481, 1, 0
        %v498 = vsel %vm482, 1, 0
        %v499 = vsel %vm483, 1, 0
        %v500 = vsel %vm484, 1, 0
        %v501 = vsel %vm485, 1, 0
        %v502 = vsel %vm486, 1, 0
        %v503 = vsel %vm487, 1, 0
        %v504 = vsel %vm488, 1, 0
        %v505 = vcvt.s32.f32 %v489
        %v506 = vcvt.s32.f32 %v490
        %v507 = vcvt.s32.f32 %v491
        %v508 = vcvt.s32.f32 %v492
        %v509 = vcvt.s32.f32 %v493
        %v510 = vcvt.s32.f32 %v494
        %v511 = vcvt.s32.f32 %v495
        %v512 = vcvt.s32.f32 %v496
        %v513 = vcvt.s32.f32 %v497
        %v514 = vcvt.s32.f32 %v498
        %v515 = vcvt.s32.f32 %v499
        %v516 = vcvt.s32.f32 %v500
        %v517 = vcvt.s32.f32 %v501
        %v518 = vcvt.s32.f32 %v502
        %v519 = vcvt.s32.f32 %v503
        %v520 = vcvt.s32.f32 %v504
        %s521 = scalar_lea.vmem [#allocation3], 128
        %v522 = vld [vmem:[%s521] sm:$0xff]
        %v523 = vld [vmem:[%s521 + $0x8] sm:$0xff]
        %v524 = vld [vmem:[%s521 + $0x10] sm:$0xff]
        %v525 = vld [vmem:[%s521 + $0x18] sm:$0xff]
        %v526 = vld [vmem:[%s521 + $0x20] sm:$0xff]
        %v527 = vld [vmem:[%s521 + $0x28] sm:$0xff]
        %v528 = vld [vmem:[%s521 + $0x30] sm:$0xff]
        %v529 = vld [vmem:[%s521 + $0x38] sm:$0xff]
        %v530 = vld [vmem:[%s521 + $0x40] sm:$0xff]
        %v531 = vld [vmem:[%s521 + $0x48] sm:$0xff]
        %v532 = vld [vmem:[%s521 + $0x50] sm:$0xff]
        %v533 = vld [vmem:[%s521 + $0x58] sm:$0xff]
        %v534 = vld [vmem:[%s521 + $0x60] sm:$0xff]
        %v535 = vld [vmem:[%s521 + $0x68] sm:$0xff]
        %v536 = vld [vmem:[%s521 + $0x70] sm:$0xff]
        %v537 = vld [vmem:[%s521 + $0x78] sm:$0xff]
        %538 = vmatprep.subr.mxu0 0.0
        %539 = vmatpush1.msra.mxu0 %v537
        %540 = vmatprep.subr.mxu0 0.0
        %541 = vmatpush1.msra.mxu0 %v536
        %542 = vmatprep.subr.mxu0 0.0
        %543 = vmatpush1.msra.mxu0 %v535
        %544 = vmatprep.subr.mxu0 0.0
        %545 = vmatpush1.msra.mxu0 %v534
        %546 = vmatprep.subr.mxu0 0.0
        %547 = vmatpush1.msra.mxu0 %v533
        %548 = vmatprep.subr.mxu0 0.0
        %549 = vmatpush1.msra.mxu0 %v532
        %550 = vmatprep.subr.mxu0 0.0
        %551 = vmatpush1.msra.mxu0 %v531
        %552 = vmatprep.subr.mxu0 0.0
        %553 = vmatpush1.msra.mxu0 %v530
        %554 = vmatprep.subr.mxu0 0.0
        %555 = vmatpush1.msra.mxu0 %v529
        %556 = vmatprep.subr.mxu0 0.0
        %557 = vmatpush1.msra.mxu0 %v528
        %558 = vmatprep.subr.mxu0 0.0
        %559 = vmatpush1.msra.mxu0 %v527
        %560 = vmatprep.subr.mxu0 0.0
        %561 = vmatpush1.msra.mxu0 %v526
        %562 = vmatprep.subr.mxu0 0.0
        %563 = vmatpush1.msra.mxu0 %v525
        %564 = vmatprep.subr.mxu0 0.0
        %565 = vmatpush1.msra.mxu0 %v524
        %566 = vmatprep.subr.mxu0 0.0
        %567 = vmatpush1.msra.mxu0 %v523
        %568 = vmatprep.subr.mxu0 0.0
        %569 = vmatpush1.msra.mxu0 %v522
        %570 = vmatprep.subr.mxu0 0.0
        %571 = vmatpush2.msra.mxu0 0.0
        %572 = vmatprep.subr.mxu0 0.0
        %573 = vmatpush2.msra.mxu0 0.0
        %574 = vmatprep.subr.mxu0 0.0
        %575 = vmatpush2.msra.mxu0 0.0
        %576 = vmatprep.subr.mxu0 0.0
        %577 = vmatpush2.msra.mxu0 0.0
        %578 = vmatprep.subr.mxu0 0.0
        %579 = vmatpush2.msra.mxu0 0.0
        %580 = vmatprep.subr.mxu0 0.0
        %581 = vmatpush2.msra.mxu0 0.0
        %582 = vmatprep.subr.mxu0 0.0
        %583 = vmatpush2.msra.mxu0 0.0
        %584 = vmatprep.subr.mxu0 0.0
        %585 = vmatpush2.msra.mxu0 0.0
        %586 = vmatprep.subr.mxu0 0.0
        %587 = vmatpush2.msra.mxu0 0.0
        %588 = vmatprep.subr.mxu0 0.0
        %589 = vmatpush2.msra.mxu0 0.0
        %590 = vmatprep.subr.mxu0 0.0
        %591 = vmatpush2.msra.mxu0 0.0
        %592 = vmatprep.subr.mxu0 0.0
        %593 = vmatpush2.msra.mxu0 0.0
        %594 = vmatprep.subr.mxu0 0.0
        %595 = vmatpush2.msra.mxu0 0.0
        %596 = vmatprep.subr.mxu0 0.0
        %597 = vmatpush2.msra.mxu0 0.0
        %598 = vmatprep.subr.mxu0 0.0
        %599 = vmatpush2.msra.mxu0 0.0
        %600 = vmatprep.subr.mxu0 0.0
        %601 = vmatpush2.msra.mxu0 0.0
        %602 = vmatprep.mubr.f32.mxu0 0.0
        %603 = vmatmul.mubr.f32.gmra.mxu0 %v505
        %v604 = vpop.f32.mrf.mxu0
        %v605 = vadd.f32 0.0, %v604
        %v606 = vpop.f32.mrf.mxu0
        %607 = vmatprep.mubr.f32.mxu0 0.0
        %608 = vmatmul.mubr.f32.gmra.mxu0 %v506
        %v609 = vpop.f32.mrf.mxu0
        %v610 = vadd.f32 0.0, %v609
        %v611 = vpop.f32.mrf.mxu0
        %612 = vmatprep.mubr.f32.mxu0 0.0
        %613 = vmatmul.mubr.f32.gmra.mxu0 %v507
        %v614 = vpop.f32.mrf.mxu0
        %v615 = vadd.f32 0.0, %v614
        %v616 = vpop.f32.mrf.mxu0
        %617 = vmatprep.mubr.f32.mxu0 0.0
        %618 = vmatmul.mubr.f32.gmra.mxu0 %v508
        %v619 = vpop.f32.mrf.mxu0
        %v620 = vadd.f32 0.0, %v619
        %v621 = vpop.f32.mrf.mxu0
        %622 = vmatprep.mubr.f32.mxu0 0.0
        %623 = vmatmul.mubr.f32.gmra.mxu0 %v509
        %v624 = vpop.f32.mrf.mxu0
        %v625 = vadd.f32 0.0, %v624
        %v626 = vpop.f32.mrf.mxu0
        %627 = vmatprep.mubr.f32.mxu0 0.0
        %628 = vmatmul.mubr.f32.gmra.mxu0 %v510
        %v629 = vpop.f32.mrf.mxu0
        %v630 = vadd.f32 0.0, %v629
        %v631 = vpop.f32.mrf.mxu0
        %632 = vmatprep.mubr.f32.mxu0 0.0
        %633 = vmatmul.mubr.f32.gmra.mxu0 %v511
        %v634 = vpop.f32.mrf.mxu0
        %v635 = vadd.f32 0.0, %v634
        %v636 = vpop.f32.mrf.mxu0
        %637 = vmatprep.mubr.f32.mxu0 0.0
        %638 = vmatmul.mubr.f32.gmra.mxu0 %v512
        %v639 = vpop.f32.mrf.mxu0
        %v640 = vadd.f32 0.0, %v639
        %v641 = vpop.f32.mrf.mxu0
        %642 = vmatprep.mubr.f32.mxu0 0.0
        %643 = vmatmul.mubr.f32.gmra.mxu0 %v513
        %v644 = vpop.f32.mrf.mxu0
        %v645 = vadd.f32 0.0, %v644
        %v646 = vpop.f32.mrf.mxu0
        %647 = vmatprep.mubr.f32.mxu0 0.0
        %648 = vmatmul.mubr.f32.gmra.mxu0 %v514
        %v649 = vpop.f32.mrf.mxu0
        %v650 = vadd.f32 0.0, %v649
        %v651 = vpop.f32.mrf.mxu0
        %652 = vmatprep.mubr.f32.mxu0 0.0
        %653 = vmatmul.mubr.f32.gmra.mxu0 %v515
        %v654 = vpop.f32.mrf.mxu0
        %v655 = vadd.f32 0.0, %v654
        %v656 = vpop.f32.mrf.mxu0
        %657 = vmatprep.mubr.f32.mxu0 0.0
        %658 = vmatmul.mubr.f32.gmra.mxu0 %v516
        %v659 = vpop.f32.mrf.mxu0
        %v660 = vadd.f32 0.0, %v659
        %v661 = vpop.f32.mrf.mxu0
        %662 = vmatprep.mubr.f32.mxu0 0.0
        %663 = vmatmul.mubr.f32.gmra.mxu0 %v517
        %v664 = vpop.f32.mrf.mxu0
        %v665 = vadd.f32 0.0, %v664
        %v666 = vpop.f32.mrf.mxu0
        %667 = vmatprep.mubr.f32.mxu0 0.0
        %668 = vmatmul.mubr.f32.gmra.mxu0 %v518
        %v669 = vpop.f32.mrf.mxu0
        %v670 = vadd.f32 0.0, %v669
        %v671 = vpop.f32.mrf.mxu0
        %672 = vmatprep.mubr.f32.mxu0 0.0
        %673 = vmatmul.mubr.f32.gmra.mxu0 %v519
        %v674 = vpop.f32.mrf.mxu0
        %v675 = vadd.f32 0.0, %v674
        %v676 = vpop.f32.mrf.mxu0
        %677 = vmatprep.mubr.f32.mxu0 0.0
        %678 = vmatmul.mubr.f32.gmra.mxu0 %v520
        %v679 = vpop.f32.mrf.mxu0
        %v680 = vadd.f32 0.0, %v679
        %v681 = vpop.f32.mrf.mxu0
        %682 = vdwg.mxu0
        %683 = vmatprep.subr.mxu0 0.0
        %684 = vmatpush1.msra.mxu0 %v424
        %685 = vmatprep.subr.mxu0 0.0
        %686 = vmatpush1.msra.mxu0 %v423
        %687 = vmatprep.subr.mxu0 0.0
        %688 = vmatpush1.msra.mxu0 %v422
        %689 = vmatprep.subr.mxu0 0.0
        %690 = vmatpush1.msra.mxu0 %v421
        %691 = vmatprep.subr.mxu0 0.0
        %692 = vmatpush1.msra.mxu0 %v420
        %693 = vmatprep.subr.mxu0 0.0
        %694 = vmatpush1.msra.mxu0 %v419
        %695 = vmatprep.subr.mxu0 0.0
        %696 = vmatpush1.msra.mxu0 %v418
        %697 = vmatprep.subr.mxu0 0.0
        %698 = vmatpush1.msra.mxu0 %v417
        %699 = vmatprep.subr.mxu0 0.0
        %700 = vmatpush1.msra.mxu0 %v416
        %701 = vmatprep.subr.mxu0 0.0
        %702 = vmatpush1.msra.mxu0 %v415
        %703 = vmatprep.subr.mxu0 0.0
        %704 = vmatpush1.msra.mxu0 %v414
        %705 = vmatprep.subr.mxu0 0.0
        %706 = vmatpush1.msra.mxu0 %v413
        %707 = vmatprep.subr.mxu0 0.0
        %708 = vmatpush1.msra.mxu0 %v412
        %709 = vmatprep.subr.mxu0 0.0
        %710 = vmatpush1.msra.mxu0 %v411
        %711 = vmatprep.subr.mxu0 0.0
        %712 = vmatpush1.msra.mxu0 %v410
        %713 = vmatprep.subr.mxu0 0.0
        %714 = vmatpush1.msra.mxu0 %v409
        %715 = vmatprep.subr.mxu0 0.0
        %716 = vmatpush2.msra.mxu0 0.0
        %717 = vmatprep.subr.mxu0 0.0
        %718 = vmatpush2.msra.mxu0 0.0
        %719 = vmatprep.subr.mxu0 0.0
        %720 = vmatpush2.msra.mxu0 0.0
        %721 = vmatprep.subr.mxu0 0.0
        %722 = vmatpush2.msra.mxu0 0.0
        %723 = vmatprep.subr.mxu0 0.0
        %724 = vmatpush2.msra.mxu0 0.0
        %725 = vmatprep.subr.mxu0 0.0
        %726 = vmatpush2.msra.mxu0 0.0
        %727 = vmatprep.subr.mxu0 0.0
        %728 = vmatpush2.msra.mxu0 0.0
        %729 = vmatprep.subr.mxu0 0.0
        %730 = vmatpush2.msra.mxu0 0.0
        %731 = vmatprep.subr.mxu0 0.0
        %732 = vmatpush2.msra.mxu0 0.0
        %733 = vmatprep.subr.mxu0 0.0
        %734 = vmatpush2.msra.mxu0 0.0
        %735 = vmatprep.subr.mxu0 0.0
        %736 = vmatpush2.msra.mxu0 0.0
        %737 = vmatprep.subr.mxu0 0.0
        %738 = vmatpush2.msra.mxu0 0.0
        %739 = vmatprep.subr.mxu0 0.0
        %740 = vmatpush2.msra.mxu0 0.0
        %741 = vmatprep.subr.mxu0 0.0
        %742 = vmatpush2.msra.mxu0 0.0
        %743 = vmatprep.subr.mxu0 0.0
        %744 = vmatpush2.msra.mxu0 0.0
        %745 = vmatprep.subr.mxu0 0.0
        %746 = vmatpush2.msra.mxu0 0.0
        %747 = vmatprep.mubr.f32.mxu0 0.0
        %748 = vmatmul.mubr.f32.gmra.mxu0 %v393
        %v749 = vpop.f32.mrf.mxu0
        %v750 = vadd.f32 %v605, %v749
        %v751 = vpop.f32.mrf.mxu0
        %752 = vmatprep.mubr.f32.mxu0 0.0
        %753 = vmatmul.mubr.f32.gmra.mxu0 %v394
        %v754 = vpop.f32.mrf.mxu0
        %v755 = vadd.f32 %v610, %v754
        %v756 = vpop.f32.mrf.mxu0
        %757 = vmatprep.mubr.f32.mxu0 0.0
        %758 = vmatmul.mubr.f32.gmra.mxu0 %v395
        %v759 = vpop.f32.mrf.mxu0
        %v760 = vadd.f32 %v615, %v759
        %v761 = vpop.f32.mrf.mxu0
        %762 = vmatprep.mubr.f32.mxu0 0.0
        %763 = vmatmul.mubr.f32.gmra.mxu0 %v396
        %v764 = vpop.f32.mrf.mxu0
        %v765 = vadd.f32 %v620, %v764
        %v766 = vpop.f32.mrf.mxu0
        %767 = vmatprep.mubr.f32.mxu0 0.0
        %768 = vmatmul.mubr.f32.gmra.mxu0 %v397
        %v769 = vpop.f32.mrf.mxu0
        %v770 = vadd.f32 %v625, %v769
        %v771 = vpop.f32.mrf.mxu0
        %772 = vmatprep.mubr.f32.mxu0 0.0
        %773 = vmatmul.mubr.f32.gmra.mxu0 %v398
        %v774 = vpop.f32.mrf.mxu0
        %v775 = vadd.f32 %v630, %v774
        %v776 = vpop.f32.mrf.mxu0
        %777 = vmatprep.mubr.f32.mxu0 0.0
        %778 = vmatmul.mubr.f32.gmra.mxu0 %v399
        %v779 = vpop.f32.mrf.mxu0
        %v780 = vadd.f32 %v635, %v779
        %v781 = vpop.f32.mrf.mxu0
        %782 = vmatprep.mubr.f32.mxu0 0.0
        %783 = vmatmul.mubr.f32.gmra.mxu0 %v400
        %v784 = vpop.f32.mrf.mxu0
        %v785 = vadd.f32 %v640, %v784
        %v786 = vpop.f32.mrf.mxu0
        %787 = vmatprep.mubr.f32.mxu0 0.0
        %788 = vmatmul.mubr.f32.gmra.mxu0 %v401
        %v789 = vpop.f32.mrf.mxu0
        %v790 = vadd.f32 %v645, %v789
        %v791 = vpop.f32.mrf.mxu0
        %792 = vmatprep.mubr.f32.mxu0 0.0
        %793 = vmatmul.mubr.f32.gmra.mxu0 %v402
        %v794 = vpop.f32.mrf.mxu0
        %v795 = vadd.f32 %v650, %v794
        %v796 = vpop.f32.mrf.mxu0
        %797 = vmatprep.mubr.f32.mxu0 0.0
        %798 = vmatmul.mubr.f32.gmra.mxu0 %v403
        %v799 = vpop.f32.mrf.mxu0
        %v800 = vadd.f32 %v655, %v799
        %v801 = vpop.f32.mrf.mxu0
        %802 = vmatprep.mubr.f32.mxu0 0.0
        %803 = vmatmul.mubr.f32.gmra.mxu0 %v404
        %v804 = vpop.f32.mrf.mxu0
        %v805 = vadd.f32 %v660, %v804
        %v806 = vpop.f32.mrf.mxu0
        %807 = vmatprep.mubr.f32.mxu0 0.0
        %808 = vmatmul.mubr.f32.gmra.mxu0 %v405
        %v809 = vpop.f32.mrf.mxu0
        %v810 = vadd.f32 %v665, %v809
        %v811 = vpop.f32.mrf.mxu0
        %812 = vmatprep.mubr.f32.mxu0 0.0
        %813 = vmatmul.mubr.f32.gmra.mxu0 %v406
        %v814 = vpop.f32.mrf.mxu0
        %v815 = vadd.f32 %v670, %v814
        %v816 = vpop.f32.mrf.mxu0
        %817 = vmatprep.mubr.f32.mxu0 0.0
        %818 = vmatmul.mubr.f32.gmra.mxu0 %v407
        %v819 = vpop.f32.mrf.mxu0
        %v820 = vadd.f32 %v675, %v819
        %v821 = vpop.f32.mrf.mxu0
        %822 = vmatprep.mubr.f32.mxu0 0.0
        %823 = vmatmul.mubr.f32.gmra.mxu0 %v408
        %v824 = vpop.f32.mrf.mxu0
        %v825 = vadd.f32 %v680, %v824
        %v826 = vpop.f32.mrf.mxu0
        %827 = vdwg.mxu0
        %828 = vset.pattern.permute.xlu0 2
        %829 = vperm.xlu0 %828, %v295
        %v830 = vpop.permute.xlu0 %829
        %831 = vset.pattern.permute.xlu0 2
        %832 = vperm.xlu0 %831, %v296
        %v833 = vpop.permute.xlu0 %832
        %834 = vset.pattern.permute.xlu0 2
        %835 = vperm.xlu0 %834, %v297
        %v836 = vpop.permute.xlu0 %835
        %837 = vset.pattern.permute.xlu0 2
        %838 = vperm.xlu0 %837, %v298
        %v839 = vpop.permute.xlu0 %838
        %840 = vset.pattern.permute.xlu0 2
        %841 = vperm.xlu0 %840, %v299
        %v842 = vpop.permute.xlu0 %841
        %843 = vset.pattern.permute.xlu0 2
        %844 = vperm.xlu0 %843, %v300
        %v845 = vpop.permute.xlu0 %844
        %846 = vset.pattern.permute.xlu0 2
        %847 = vperm.xlu0 %846, %v301
        %v848 = vpop.permute.xlu0 %847
        %849 = vset.pattern.permute.xlu0 2
        %850 = vperm.xlu0 %849, %v302
        %v851 = vpop.permute.xlu0 %850
        %852 = vset.pattern.permute.xlu0 2
        %853 = vperm.xlu0 %852, %v303
        %v854 = vpop.permute.xlu0 %853
        %855 = vset.pattern.permute.xlu0 2
        %856 = vperm.xlu0 %855, %v304
        %v857 = vpop.permute.xlu0 %856
        %858 = vset.pattern.permute.xlu0 2
        %859 = vperm.xlu0 %858, %v305
        %v860 = vpop.permute.xlu0 %859
        %861 = vset.pattern.permute.xlu0 2
        %862 = vperm.xlu0 %861, %v306
        %v863 = vpop.permute.xlu0 %862
        %864 = vset.pattern.permute.xlu0 2
        %865 = vperm.xlu0 %864, %v307
        %v866 = vpop.permute.xlu0 %865
        %867 = vset.pattern.permute.xlu0 2
        %868 = vperm.xlu0 %867, %v308
        %v869 = vpop.permute.xlu0 %868
        %870 = vset.pattern.permute.xlu0 2
        %871 = vperm.xlu0 %870, %v309
        %v872 = vpop.permute.xlu0 %871
        %873 = vset.pattern.permute.xlu0 2
        %874 = vperm.xlu0 %873, %v310
        %v875 = vpop.permute.xlu0 %874
        %vm876 = vcmp.eq.s32.totalorder %v312, %v830
        %vm877 = vcmp.eq.s32.totalorder %v312, %v833
        %vm878 = vcmp.eq.s32.totalorder %v312, %v836
        %vm879 = vcmp.eq.s32.totalorder %v312, %v839
        %vm880 = vcmp.eq.s32.totalorder %v312, %v842
        %vm881 = vcmp.eq.s32.totalorder %v312, %v845
        %vm882 = vcmp.eq.s32.totalorder %v312, %v848
        %vm883 = vcmp.eq.s32.totalorder %v312, %v851
        %vm884 = vcmp.eq.s32.totalorder %v312, %v854
        %vm885 = vcmp.eq.s32.totalorder %v312, %v857
        %vm886 = vcmp.eq.s32.totalorder %v312, %v860
        %vm887 = vcmp.eq.s32.totalorder %v312, %v863
        %vm888 = vcmp.eq.s32.totalorder %v312, %v866
        %vm889 = vcmp.eq.s32.totalorder %v312, %v869
        %vm890 = vcmp.eq.s32.totalorder %v312, %v872
        %vm891 = vcmp.eq.s32.totalorder %v312, %v875
        %v892 = vsel %vm876, 1, 0
        %v893 = vsel %vm877, 1, 0
        %v894 = vsel %vm878, 1, 0
        %v895 = vsel %vm879, 1, 0
        %v896 = vsel %vm880, 1, 0
        %v897 = vsel %vm881, 1, 0
        %v898 = vsel %vm882, 1, 0
        %v899 = vsel %vm883, 1, 0
        %v900 = vsel %vm884, 1, 0
        %v901 = vsel %vm885, 1, 0
        %v902 = vsel %vm886, 1, 0
        %v903 = vsel %vm887, 1, 0
        %v904 = vsel %vm888, 1, 0
        %v905 = vsel %vm889, 1, 0
        %v906 = vsel %vm890, 1, 0
        %v907 = vsel %vm891, 1, 0
        %v908 = vcvt.s32.f32 %v892
        %v909 = vcvt.s32.f32 %v893
        %v910 = vcvt.s32.f32 %v894
        %v911 = vcvt.s32.f32 %v895
        %v912 = vcvt.s32.f32 %v896
        %v913 = vcvt.s32.f32 %v897
        %v914 = vcvt.s32.f32 %v898
        %v915 = vcvt.s32.f32 %v899
        %v916 = vcvt.s32.f32 %v900
        %v917 = vcvt.s32.f32 %v901
        %v918 = vcvt.s32.f32 %v902
        %v919 = vcvt.s32.f32 %v903
        %v920 = vcvt.s32.f32 %v904
        %v921 = vcvt.s32.f32 %v905
        %v922 = vcvt.s32.f32 %v906
        %v923 = vcvt.s32.f32 %v907
        %s924 = scalar_lea.vmem [#allocation3], 256
        %v925 = vld [vmem:[%s924] sm:$0xff]
        %v926 = vld [vmem:[%s924 + $0x8] sm:$0xff]
        %v927 = vld [vmem:[%s924 + $0x10] sm:$0xff]
        %v928 = vld [vmem:[%s924 + $0x18] sm:$0xff]
        %v929 = vld [vmem:[%s924 + $0x20] sm:$0xff]
        %v930 = vld [vmem:[%s924 + $0x28] sm:$0xff]
        %v931 = vld [vmem:[%s924 + $0x30] sm:$0xff]
        %v932 = vld [vmem:[%s924 + $0x38] sm:$0xff]
        %v933 = vld [vmem:[%s924 + $0x40] sm:$0xff]
        %v934 = vld [vmem:[%s924 + $0x48] sm:$0xff]
        %v935 = vld [vmem:[%s924 + $0x50] sm:$0xff]
        %v936 = vld [vmem:[%s924 + $0x58] sm:$0xff]
        %v937 = vld [vmem:[%s924 + $0x60] sm:$0xff]
        %v938 = vld [vmem:[%s924 + $0x68] sm:$0xff]
        %v939 = vld [vmem:[%s924 + $0x70] sm:$0xff]
        %v940 = vld [vmem:[%s924 + $0x78] sm:$0xff]
        %941 = vmatprep.subr.mxu0 0.0
        %942 = vmatpush1.msra.mxu0 %v940
        %943 = vmatprep.subr.mxu0 0.0
        %944 = vmatpush1.msra.mxu0 %v939
        %945 = vmatprep.subr.mxu0 0.0
        %946 = vmatpush1.msra.mxu0 %v938
        %947 = vmatprep.subr.mxu0 0.0
        %948 = vmatpush1.msra.mxu0 %v937
        %949 = vmatprep.subr.mxu0 0.0
        %950 = vmatpush1.msra.mxu0 %v936
        %951 = vmatprep.subr.mxu0 0.0
        %952 = vmatpush1.msra.mxu0 %v935
        %953 = vmatprep.subr.mxu0 0.0
        %954 = vmatpush1.msra.mxu0 %v934
        %955 = vmatprep.subr.mxu0 0.0
        %956 = vmatpush1.msra.mxu0 %v933
        %957 = vmatprep.subr.mxu0 0.0
        %958 = vmatpush1.msra.mxu0 %v932
        %959 = vmatprep.subr.mxu0 0.0
        %960 = vmatpush1.msra.mxu0 %v931
        %961 = vmatprep.subr.mxu0 0.0
        %962 = vmatpush1.msra.mxu0 %v930
        %963 = vmatprep.subr.mxu0 0.0
        %964 = vmatpush1.msra.mxu0 %v929
        %965 = vmatprep.subr.mxu0 0.0
        %966 = vmatpush1.msra.mxu0 %v928
        %967 = vmatprep.subr.mxu0 0.0
        %968 = vmatpush1.msra.mxu0 %v927
        %969 = vmatprep.subr.mxu0 0.0
        %970 = vmatpush1.msra.mxu0 %v926
        %971 = vmatprep.subr.mxu0 0.0
        %972 = vmatpush1.msra.mxu0 %v925
        %973 = vmatprep.subr.mxu0 0.0
        %974 = vmatpush2.msra.mxu0 0.0
        %975 = vmatprep.subr.mxu0 0.0
        %976 = vmatpush2.msra.mxu0 0.0
        %977 = vmatprep.subr.mxu0 0.0
        %978 = vmatpush2.msra.mxu0 0.0
        %979 = vmatprep.subr.mxu0 0.0
        %980 = vmatpush2.msra.mxu0 0.0
        %981 = vmatprep.subr.mxu0 0.0
        %982 = vmatpush2.msra.mxu0 0.0
        %983 = vmatprep.subr.mxu0 0.0
        %984 = vmatpush2.msra.mxu0 0.0
        %985 = vmatprep.subr.mxu0 0.0
        %986 = vmatpush2.msra.mxu0 0.0
        %987 = vmatprep.subr.mxu0 0.0
        %988 = vmatpush2.msra.mxu0 0.0
        %989 = vmatprep.subr.mxu0 0.0
        %990 = vmatpush2.msra.mxu0 0.0
        %991 = vmatprep.subr.mxu0 0.0
        %992 = vmatpush2.msra.mxu0 0.0
        %993 = vmatprep.subr.mxu0 0.0
        %994 = vmatpush2.msra.mxu0 0.0
        %995 = vmatprep.subr.mxu0 0.0
        %996 = vmatpush2.msra.mxu0 0.0
        %997 = vmatprep.subr.mxu0 0.0
        %998 = vmatpush2.msra.mxu0 0.0
        %999 = vmatprep.subr.mxu0 0.0
        %1000 = vmatpush2.msra.mxu0 0.0
        %1001 = vmatprep.subr.mxu0 0.0
        %1002 = vmatpush2.msra.mxu0 0.0
        %1003 = vmatprep.subr.mxu0 0.0
        %1004 = vmatpush2.msra.mxu0 0.0
        %1005 = vmatprep.mubr.f32.mxu0 0.0
        %1006 = vmatmul.mubr.f32.gmra.mxu0 %v908
        %v1007 = vpop.f32.mrf.mxu0
        %v1008 = vadd.f32 0.0, %v1007
        %v1009 = vpop.f32.mrf.mxu0
        %1010 = vmatprep.mubr.f32.mxu0 0.0
        %1011 = vmatmul.mubr.f32.gmra.mxu0 %v909
        %v1012 = vpop.f32.mrf.mxu0
        %v1013 = vadd.f32 0.0, %v1012
        %v1014 = vpop.f32.mrf.mxu0
        %1015 = vmatprep.mubr.f32.mxu0 0.0
        %1016 = vmatmul.mubr.f32.gmra.mxu0 %v910
        %v1017 = vpop.f32.mrf.mxu0
        %v1018 = vadd.f32 0.0, %v1017
        %v1019 = vpop.f32.mrf.mxu0
        %1020 = vmatprep.mubr.f32.mxu0 0.0
        %1021 = vmatmul.mubr.f32.gmra.mxu0 %v911
        %v1022 = vpop.f32.mrf.mxu0
        %v1023 = vadd.f32 0.0, %v1022
        %v1024 = vpop.f32.mrf.mxu0
        %1025 = vmatprep.mubr.f32.mxu0 0.0
        %1026 = vmatmul.mubr.f32.gmra.mxu0 %v912
        %v1027 = vpop.f32.mrf.mxu0
        %v1028 = vadd.f32 0.0, %v1027
        %v1029 = vpop.f32.mrf.mxu0
        %1030 = vmatprep.mubr.f32.mxu0 0.0
        %1031 = vmatmul.mubr.f32.gmra.mxu0 %v913
        %v1032 = vpop.f32.mrf.mxu0
        %v1033 = vadd.f32 0.0, %v1032
        %v1034 = vpop.f32.mrf.mxu0
        %1035 = vmatprep.mubr.f32.mxu0 0.0
        %1036 = vmatmul.mubr.f32.gmra.mxu0 %v914
        %v1037 = vpop.f32.mrf.mxu0
        %v1038 = vadd.f32 0.0, %v1037
        %v1039 = vpop.f32.mrf.mxu0
        %1040 = vmatprep.mubr.f32.mxu0 0.0
        %1041 = vmatmul.mubr.f32.gmra.mxu0 %v915
        %v1042 = vpop.f32.mrf.mxu0
        %v1043 = vadd.f32 0.0, %v1042
        %v1044 = vpop.f32.mrf.mxu0
        %1045 = vmatprep.mubr.f32.mxu0 0.0
        %1046 = vmatmul.mubr.f32.gmra.mxu0 %v916
        %v1047 = vpop.f32.mrf.mxu0
        %v1048 = vadd.f32 0.0, %v1047
        %v1049 = vpop.f32.mrf.mxu0
        %1050 = vmatprep.mubr.f32.mxu0 0.0
        %1051 = vmatmul.mubr.f32.gmra.mxu0 %v917
        %v1052 = vpop.f32.mrf.mxu0
        %v1053 = vadd.f32 0.0, %v1052
        %v1054 = vpop.f32.mrf.mxu0
        %1055 = vmatprep.mubr.f32.mxu0 0.0
        %1056 = vmatmul.mubr.f32.gmra.mxu0 %v918
        %v1057 = vpop.f32.mrf.mxu0
        %v1058 = vadd.f32 0.0, %v1057
        %v1059 = vpop.f32.mrf.mxu0
        %1060 = vmatprep.mubr.f32.mxu0 0.0
        %1061 = vmatmul.mubr.f32.gmra.mxu0 %v919
        %v1062 = vpop.f32.mrf.mxu0
        %v1063 = vadd.f32 0.0, %v1062
        %v1064 = vpop.f32.mrf.mxu0
        %1065 = vmatprep.mubr.f32.mxu0 0.0
        %1066 = vmatmul.mubr.f32.gmra.mxu0 %v920
        %v1067 = vpop.f32.mrf.mxu0
        %v1068 = vadd.f32 0.0, %v1067
        %v1069 = vpop.f32.mrf.mxu0
        %1070 = vmatprep.mubr.f32.mxu0 0.0
        %1071 = vmatmul.mubr.f32.gmra.mxu0 %v921
        %v1072 = vpop.f32.mrf.mxu0
        %v1073 = vadd.f32 0.0, %v1072
        %v1074 = vpop.f32.mrf.mxu0
        %1075 = vmatprep.mubr.f32.mxu0 0.0
        %1076 = vmatmul.mubr.f32.gmra.mxu0 %v922
        %v1077 = vpop.f32.mrf.mxu0
        %v1078 = vadd.f32 0.0, %v1077
        %v1079 = vpop.f32.mrf.mxu0
        %1080 = vmatprep.mubr.f32.mxu0 0.0
        %1081 = vmatmul.mubr.f32.gmra.mxu0 %v923
        %v1082 = vpop.f32.mrf.mxu0
        %v1083 = vadd.f32 0.0, %v1082
        %v1084 = vpop.f32.mrf.mxu0
        %1085 = vdwg.mxu0
        %v1086 = vadd.f32 %v750, %v1008
        %v1087 = vadd.f32 %v755, %v1013
        %v1088 = vadd.f32 %v760, %v1018
        %v1089 = vadd.f32 %v765, %v1023
        %v1090 = vadd.f32 %v770, %v1028
        %v1091 = vadd.f32 %v775, %v1033
        %v1092 = vadd.f32 %v780, %v1038
        %v1093 = vadd.f32 %v785, %v1043
        %v1094 = vadd.f32 %v790, %v1048
        %v1095 = vadd.f32 %v795, %v1053
        %v1096 = vadd.f32 %v800, %v1058
        %v1097 = vadd.f32 %v805, %v1063
        %v1098 = vadd.f32 %v810, %v1068
        %v1099 = vadd.f32 %v815, %v1073
        %v1100 = vadd.f32 %v820, %v1078
        %v1101 = vadd.f32 %v825, %v1083
        %1102 = vset.pattern.permute.xlu0 3
        %1103 = vperm.xlu0 %1102, %v295
        %v1104 = vpop.permute.xlu0 %1103
        %1105 = vset.pattern.permute.xlu0 3
        %1106 = vperm.xlu0 %1105, %v296
        %v1107 = vpop.permute.xlu0 %1106
        %1108 = vset.pattern.permute.xlu0 3
        %1109 = vperm.xlu0 %1108, %v297
        %v1110 = vpop.permute.xlu0 %1109
        %1111 = vset.pattern.permute.xlu0 3
        %1112 = vperm.xlu0 %1111, %v298
        %v1113 = vpop.permute.xlu0 %1112
        %1114 = vset.pattern.permute.xlu0 3
        %1115 = vperm.xlu0 %1114, %v299
        %v1116 = vpop.permute.xlu0 %1115
        %1117 = vset.pattern.permute.xlu0 3
        %1118 = vperm.xlu0 %1117, %v300
        %v1119 = vpop.permute.xlu0 %1118
        %1120 = vset.pattern.permute.xlu0 3
        %1121 = vperm.xlu0 %1120, %v301
        %v1122 = vpop.permute.xlu0 %1121
        %1123 = vset.pattern.permute.xlu0 3
        %1124 = vperm.xlu0 %1123, %v302
        %v1125 = vpop.permute.xlu0 %1124
        %1126 = vset.pattern.permute.xlu0 3
        %1127 = vperm.xlu0 %1126, %v303
        %v1128 = vpop.permute.xlu0 %1127
        %1129 = vset.pattern.permute.xlu0 3
        %1130 = vperm.xlu0 %1129, %v304
        %v1131 = vpop.permute.xlu0 %1130
        %1132 = vset.pattern.permute.xlu0 3
        %1133 = vperm.xlu0 %1132, %v305
        %v1134 = vpop.permute.xlu0 %1133
        %1135 = vset.pattern.permute.xlu0 3
        %1136 = vperm.xlu0 %1135, %v306
        %v1137 = vpop.permute.xlu0 %1136
        %1138 = vset.pattern.permute.xlu0 3
        %1139 = vperm.xlu0 %1138, %v307
        %v1140 = vpop.permute.xlu0 %1139
        %1141 = vset.pattern.permute.xlu0 3
        %1142 = vperm.xlu0 %1141, %v308
        %v1143 = vpop.permute.xlu0 %1142
        %1144 = vset.pattern.permute.xlu0 3
        %1145 = vperm.xlu0 %1144, %v309
        %v1146 = vpop.permute.xlu0 %1145
        %1147 = vset.pattern.permute.xlu0 3
        %1148 = vperm.xlu0 %1147, %v310
        %v1149 = vpop.permute.xlu0 %1148
        %vm1150 = vcmp.eq.s32.totalorder %v312, %v1104
        %vm1151 = vcmp.eq.s32.totalorder %v312, %v1107
        %vm1152 = vcmp.eq.s32.totalorder %v312, %v1110
        %vm1153 = vcmp.eq.s32.totalorder %v312, %v1113
        %vm1154 = vcmp.eq.s32.totalorder %v312, %v1116
        %vm1155 = vcmp.eq.s32.totalorder %v312, %v1119
        %vm1156 = vcmp.eq.s32.totalorder %v312, %v1122
        %vm1157 = vcmp.eq.s32.totalorder %v312, %v1125
        %vm1158 = vcmp.eq.s32.totalorder %v312, %v1128
        %vm1159 = vcmp.eq.s32.totalorder %v312, %v1131
        %vm1160 = vcmp.eq.s32.totalorder %v312, %v1134
        %vm1161 = vcmp.eq.s32.totalorder %v312, %v1137
        %vm1162 = vcmp.eq.s32.totalorder %v312, %v1140
        %vm1163 = vcmp.eq.s32.totalorder %v312, %v1143
        %vm1164 = vcmp.eq.s32.totalorder %v312, %v1146
        %vm1165 = vcmp.eq.s32.totalorder %v312, %v1149
        %v1166 = vsel %vm1150, 1, 0
        %v1167 = vsel %vm1151, 1, 0
        %v1168 = vsel %vm1152, 1, 0
        %v1169 = vsel %vm1153, 1, 0
        %v1170 = vsel %vm1154, 1, 0
        %v1171 = vsel %vm1155, 1, 0
        %v1172 = vsel %vm1156, 1, 0
        %v1173 = vsel %vm1157, 1, 0
        %v1174 = vsel %vm1158, 1, 0
        %v1175 = vsel %vm1159, 1, 0
        %v1176 = vsel %vm1160, 1, 0
        %v1177 = vsel %vm1161, 1, 0
        %v1178 = vsel %vm1162, 1, 0
        %v1179 = vsel %vm1163, 1, 0
        %v1180 = vsel %vm1164, 1, 0
        %v1181 = vsel %vm1165, 1, 0
        %v1182 = vcvt.s32.f32 %v1166
        %v1183 = vcvt.s32.f32 %v1167
        %v1184 = vcvt.s32.f32 %v1168
        %v1185 = vcvt.s32.f32 %v1169
        %v1186 = vcvt.s32.f32 %v1170
        %v1187 = vcvt.s32.f32 %v1171
        %v1188 = vcvt.s32.f32 %v1172
        %v1189 = vcvt.s32.f32 %v1173
        %v1190 = vcvt.s32.f32 %v1174
        %v1191 = vcvt.s32.f32 %v1175
        %v1192 = vcvt.s32.f32 %v1176
        %v1193 = vcvt.s32.f32 %v1177
        %v1194 = vcvt.s32.f32 %v1178
        %v1195 = vcvt.s32.f32 %v1179
        %v1196 = vcvt.s32.f32 %v1180
        %v1197 = vcvt.s32.f32 %v1181
        %s1198 = scalar_lea.vmem [#allocation3], 384
        %v1199 = vld [vmem:[%s1198] sm:$0xff]
        %v1200 = vld [vmem:[%s1198 + $0x8] sm:$0xff]
        %v1201 = vld [vmem:[%s1198 + $0x10] sm:$0xff]
        %v1202 = vld [vmem:[%s1198 + $0x18] sm:$0xff]
        %v1203 = vld [vmem:[%s1198 + $0x20] sm:$0xff]
        %v1204 = vld [vmem:[%s1198 + $0x28] sm:$0xff]
        %v1205 = vld [vmem:[%s1198 + $0x30] sm:$0xff]
        %v1206 = vld [vmem:[%s1198 + $0x38] sm:$0xff]
        %v1207 = vld [vmem:[%s1198 + $0x40] sm:$0xff]
        %v1208 = vld [vmem:[%s1198 + $0x48] sm:$0xff]
        %v1209 = vld [vmem:[%s1198 + $0x50] sm:$0xff]
        %v1210 = vld [vmem:[%s1198 + $0x58] sm:$0xff]
        %v1211 = vld [vmem:[%s1198 + $0x60] sm:$0xff]
        %v1212 = vld [vmem:[%s1198 + $0x68] sm:$0xff]
        %v1213 = vld [vmem:[%s1198 + $0x70] sm:$0xff]
        %v1214 = vld [vmem:[%s1198 + $0x78] sm:$0xff]
        %1215 = vmatprep.subr.mxu0 0.0
        %1216 = vmatpush1.msra.mxu0 %v1214
        %1217 = vmatprep.subr.mxu0 0.0
        %1218 = vmatpush1.msra.mxu0 %v1213
        %1219 = vmatprep.subr.mxu0 0.0
        %1220 = vmatpush1.msra.mxu0 %v1212
        %1221 = vmatprep.subr.mxu0 0.0
        %1222 = vmatpush1.msra.mxu0 %v1211
        %1223 = vmatprep.subr.mxu0 0.0
        %1224 = vmatpush1.msra.mxu0 %v1210
        %1225 = vmatprep.subr.mxu0 0.0
        %1226 = vmatpush1.msra.mxu0 %v1209
        %1227 = vmatprep.subr.mxu0 0.0
        %1228 = vmatpush1.msra.mxu0 %v1208
        %1229 = vmatprep.subr.mxu0 0.0
        %1230 = vmatpush1.msra.mxu0 %v1207
        %1231 = vmatprep.subr.mxu0 0.0
        %1232 = vmatpush1.msra.mxu0 %v1206
        %1233 = vmatprep.subr.mxu0 0.0
        %1234 = vmatpush1.msra.mxu0 %v1205
        %1235 = vmatprep.subr.mxu0 0.0
        %1236 = vmatpush1.msra.mxu0 %v1204
        %1237 = vmatprep.subr.mxu0 0.0
        %1238 = vmatpush1.msra.mxu0 %v1203
        %1239 = vmatprep.subr.mxu0 0.0
        %1240 = vmatpush1.msra.mxu0 %v1202
        %1241 = vmatprep.subr.mxu0 0.0
        %1242 = vmatpush1.msra.mxu0 %v1201
        %1243 = vmatprep.subr.mxu0 0.0
        %1244 = vmatpush1.msra.mxu0 %v1200
        %1245 = vmatprep.subr.mxu0 0.0
        %1246 = vmatpush1.msra.mxu0 %v1199
        %1247 = vmatprep.subr.mxu0 0.0
        %1248 = vmatpush2.msra.mxu0 0.0
        %1249 = vmatprep.subr.mxu0 0.0
        %1250 = vmatpush2.msra.mxu0 0.0
        %1251 = vmatprep.subr.mxu0 0.0
        %1252 = vmatpush2.msra.mxu0 0.0
        %1253 = vmatprep.subr.mxu0 0.0
        %1254 = vmatpush2.msra.mxu0 0.0
        %1255 = vmatprep.subr.mxu0 0.0
        %1256 = vmatpush2.msra.mxu0 0.0
        %1257 = vmatprep.subr.mxu0 0.0
        %1258 = vmatpush2.msra.mxu0 0.0
        %1259 = vmatprep.subr.mxu0 0.0
        %1260 = vmatpush2.msra.mxu0 0.0
        %1261 = vmatprep.subr.mxu0 0.0
        %1262 = vmatpush2.msra.mxu0 0.0
        %1263 = vmatprep.subr.mxu0 0.0
        %1264 = vmatpush2.msra.mxu0 0.0
        %1265 = vmatprep.subr.mxu0 0.0
        %1266 = vmatpush2.msra.mxu0 0.0
        %1267 = vmatprep.subr.mxu0 0.0
        %1268 = vmatpush2.msra.mxu0 0.0
        %1269 = vmatprep.subr.mxu0 0.0
        %1270 = vmatpush2.msra.mxu0 0.0
        %1271 = vmatprep.subr.mxu0 0.0
        %1272 = vmatpush2.msra.mxu0 0.0
        %1273 = vmatprep.subr.mxu0 0.0
        %1274 = vmatpush2.msra.mxu0 0.0
        %1275 = vmatprep.subr.mxu0 0.0
        %1276 = vmatpush2.msra.mxu0 0.0
        %1277 = vmatprep.subr.mxu0 0.0
        %1278 = vmatpush2.msra.mxu0 0.0
        %1279 = vmatprep.mubr.f32.mxu0 0.0
        %1280 = vmatmul.mubr.f32.gmra.mxu0 %v1182
        %v1281 = vpop.f32.mrf.mxu0
        %v1282 = vadd.f32 0.0, %v1281
        %v1283 = vpop.f32.mrf.mxu0
        %1284 = vmatprep.mubr.f32.mxu0 0.0
        %1285 = vmatmul.mubr.f32.gmra.mxu0 %v1183
        %v1286 = vpop.f32.mrf.mxu0
        %v1287 = vadd.f32 0.0, %v1286
        %v1288 = vpop.f32.mrf.mxu0
        %1289 = vmatprep.mubr.f32.mxu0 0.0
        %1290 = vmatmul.mubr.f32.gmra.mxu0 %v1184
        %v1291 = vpop.f32.mrf.mxu0
        %v1292 = vadd.f32 0.0, %v1291
        %v1293 = vpop.f32.mrf.mxu0
        %1294 = vmatprep.mubr.f32.mxu0 0.0
        %1295 = vmatmul.mubr.f32.gmra.mxu0 %v1185
        %v1296 = vpop.f32.mrf.mxu0
        %v1297 = vadd.f32 0.0, %v1296
        %v1298 = vpop.f32.mrf.mxu0
        %1299 = vmatprep.mubr.f32.mxu0 0.0
        %1300 = vmatmul.mubr.f32.gmra.mxu0 %v1186
        %v1301 = vpop.f32.mrf.mxu0
        %v1302 = vadd.f32 0.0, %v1301
        %v1303 = vpop.f32.mrf.mxu0
        %1304 = vmatprep.mubr.f32.mxu0 0.0
        %1305 = vmatmul.mubr.f32.gmra.mxu0 %v1187
        %v1306 = vpop.f32.mrf.mxu0
        %v1307 = vadd.f32 0.0, %v1306
        %v1308 = vpop.f32.mrf.mxu0
        %1309 = vmatprep.mubr.f32.mxu0 0.0
        %1310 = vmatmul.mubr.f32.gmra.mxu0 %v1188
        %v1311 = vpop.f32.mrf.mxu0
        %v1312 = vadd.f32 0.0, %v1311
        %v1313 = vpop.f32.mrf.mxu0
        %1314 = vmatprep.mubr.f32.mxu0 0.0
        %1315 = vmatmul.mubr.f32.gmra.mxu0 %v1189
        %v1316 = vpop.f32.mrf.mxu0
        %v1317 = vadd.f32 0.0, %v1316
        %v1318 = vpop.f32.mrf.mxu0
        %1319 = vmatprep.mubr.f32.mxu0 0.0
        %1320 = vmatmul.mubr.f32.gmra.mxu0 %v1190
        %v1321 = vpop.f32.mrf.mxu0
        %v1322 = vadd.f32 0.0, %v1321
        %v1323 = vpop.f32.mrf.mxu0
        %1324 = vmatprep.mubr.f32.mxu0 0.0
        %1325 = vmatmul.mubr.f32.gmra.mxu0 %v1191
        %v1326 = vpop.f32.mrf.mxu0
        %v1327 = vadd.f32 0.0, %v1326
        %v1328 = vpop.f32.mrf.mxu0
        %1329 = vmatprep.mubr.f32.mxu0 0.0
        %1330 = vmatmul.mubr.f32.gmra.mxu0 %v1192
        %v1331 = vpop.f32.mrf.mxu0
        %v1332 = vadd.f32 0.0, %v1331
        %v1333 = vpop.f32.mrf.mxu0
        %1334 = vmatprep.mubr.f32.mxu0 0.0
        %1335 = vmatmul.mubr.f32.gmra.mxu0 %v1193
        %v1336 = vpop.f32.mrf.mxu0
        %v1337 = vadd.f32 0.0, %v1336
        %v1338 = vpop.f32.mrf.mxu0
        %1339 = vmatprep.mubr.f32.mxu0 0.0
        %1340 = vmatmul.mubr.f32.gmra.mxu0 %v1194
        %v1341 = vpop.f32.mrf.mxu0
        %v1342 = vadd.f32 0.0, %v1341
        %v1343 = vpop.f32.mrf.mxu0
        %1344 = vmatprep.mubr.f32.mxu0 0.0
        %1345 = vmatmul.mubr.f32.gmra.mxu0 %v1195
        %v1346 = vpop.f32.mrf.mxu0
        %v1347 = vadd.f32 0.0, %v1346
        %v1348 = vpop.f32.mrf.mxu0
        %1349 = vmatprep.mubr.f32.mxu0 0.0
        %1350 = vmatmul.mubr.f32.gmra.mxu0 %v1196
        %v1351 = vpop.f32.mrf.mxu0
        %v1352 = vadd.f32 0.0, %v1351
        %v1353 = vpop.f32.mrf.mxu0
        %1354 = vmatprep.mubr.f32.mxu0 0.0
        %1355 = vmatmul.mubr.f32.gmra.mxu0 %v1197
        %v1356 = vpop.f32.mrf.mxu0
        %v1357 = vadd.f32 0.0, %v1356
        %v1358 = vpop.f32.mrf.mxu0
        %1359 = vdwg.mxu0
        %v1360 = vadd.f32 %v1086, %v1282
        %v1361 = vadd.f32 %v1087, %v1287
        %v1362 = vadd.f32 %v1088, %v1292
        %v1363 = vadd.f32 %v1089, %v1297
        %v1364 = vadd.f32 %v1090, %v1302
        %v1365 = vadd.f32 %v1091, %v1307
        %v1366 = vadd.f32 %v1092, %v1312
        %v1367 = vadd.f32 %v1093, %v1317
        %v1368 = vadd.f32 %v1094, %v1322
        %v1369 = vadd.f32 %v1095, %v1327
        %v1370 = vadd.f32 %v1096, %v1332
        %v1371 = vadd.f32 %v1097, %v1337
        %v1372 = vadd.f32 %v1098, %v1342
        %v1373 = vadd.f32 %v1099, %v1347
        %v1374 = vadd.f32 %v1100, %v1352
        %v1375 = vadd.f32 %v1101, %v1357
        %1376 = vset.pattern.permute.xlu0 4
        %1377 = vperm.xlu0 %1376, %v295
        %v1378 = vpop.permute.xlu0 %1377
        %1379 = vset.pattern.permute.xlu0 4
        %1380 = vperm.xlu0 %1379, %v296
        %v1381 = vpop.permute.xlu0 %1380
        %1382 = vset.pattern.permute.xlu0 4
        %1383 = vperm.xlu0 %1382, %v297
        %v1384 = vpop.permute.xlu0 %1383
        %1385 = vset.pattern.permute.xlu0 4
        %1386 = vperm.xlu0 %1385, %v298
        %v1387 = vpop.permute.xlu0 %1386
        %1388 = vset.pattern.permute.xlu0 4
        %1389 = vperm.xlu0 %1388, %v299
        %v1390 = vpop.permute.xlu0 %1389
        %1391 = vset.pattern.permute.xlu0 4
        %1392 = vperm.xlu0 %1391, %v300
        %v1393 = vpop.permute.xlu0 %1392
        %1394 = vset.pattern.permute.xlu0 4
        %1395 = vperm.xlu0 %1394, %v301
        %v1396 = vpop.permute.xlu0 %1395
        %1397 = vset.pattern.permute.xlu0 4
        %1398 = vperm.xlu0 %1397, %v302
        %v1399 = vpop.permute.xlu0 %1398
        %1400 = vset.pattern.permute.xlu0 4
        %1401 = vperm.xlu0 %1400, %v303
        %v1402 = vpop.permute.xlu0 %1401
        %1403 = vset.pattern.permute.xlu0 4
        %1404 = vperm.xlu0 %1403, %v304
        %v1405 = vpop.permute.xlu0 %1404
        %1406 = vset.pattern.permute.xlu0 4
        %1407 = vperm.xlu0 %1406, %v305
        %v1408 = vpop.permute.xlu0 %1407
        %1409 = vset.pattern.permute.xlu0 4
        %1410 = vperm.xlu0 %1409, %v306
        %v1411 = vpop.permute.xlu0 %1410
        %1412 = vset.pattern.permute.xlu0 4
        %1413 = vperm.xlu0 %1412, %v307
        %v1414 = vpop.permute.xlu0 %1413
        %1415 = vset.pattern.permute.xlu0 4
        %1416 = vperm.xlu0 %1415, %v308
        %v1417 = vpop.permute.xlu0 %1416
        %1418 = vset.pattern.permute.xlu0 4
        %1419 = vperm.xlu0 %1418, %v309
        %v1420 = vpop.permute.xlu0 %1419
        %1421 = vset.pattern.permute.xlu0 4
        %1422 = vperm.xlu0 %1421, %v310
        %v1423 = vpop.permute.xlu0 %1422
        %vm1424 = vcmp.eq.s32.totalorder %v312, %v1378
        %vm1425 = vcmp.eq.s32.totalorder %v312, %v1381
        %vm1426 = vcmp.eq.s32.totalorder %v312, %v1384
        %vm1427 = vcmp.eq.s32.totalorder %v312, %v1387
        %vm1428 = vcmp.eq.s32.totalorder %v312, %v1390
        %vm1429 = vcmp.eq.s32.totalorder %v312, %v1393
        %vm1430 = vcmp.eq.s32.totalorder %v312, %v1396
        %vm1431 = vcmp.eq.s32.totalorder %v312, %v1399
        %vm1432 = vcmp.eq.s32.totalorder %v312, %v1402
        %vm1433 = vcmp.eq.s32.totalorder %v312, %v1405
        %vm1434 = vcmp.eq.s32.totalorder %v312, %v1408
        %vm1435 = vcmp.eq.s32.totalorder %v312, %v1411
        %vm1436 = vcmp.eq.s32.totalorder %v312, %v1414
        %vm1437 = vcmp.eq.s32.totalorder %v312, %v1417
        %vm1438 = vcmp.eq.s32.totalorder %v312, %v1420
        %vm1439 = vcmp.eq.s32.totalorder %v312, %v1423
        %v1440 = vsel %vm1424, 1, 0
        %v1441 = vsel %vm1425, 1, 0
        %v1442 = vsel %vm1426, 1, 0
        %v1443 = vsel %vm1427, 1, 0
        %v1444 = vsel %vm1428, 1, 0
        %v1445 = vsel %vm1429, 1, 0
        %v1446 = vsel %vm1430, 1, 0
        %v1447 = vsel %vm1431, 1, 0
        %v1448 = vsel %vm1432, 1, 0
        %v1449 = vsel %vm1433, 1, 0
        %v1450 = vsel %vm1434, 1, 0
        %v1451 = vsel %vm1435, 1, 0
        %v1452 = vsel %vm1436, 1, 0
        %v1453 = vsel %vm1437, 1, 0
        %v1454 = vsel %vm1438, 1, 0
        %v1455 = vsel %vm1439, 1, 0
        %v1456 = vcvt.s32.f32 %v1440
        %v1457 = vcvt.s32.f32 %v1441
        %v1458 = vcvt.s32.f32 %v1442
        %v1459 = vcvt.s32.f32 %v1443
        %v1460 = vcvt.s32.f32 %v1444
        %v1461 = vcvt.s32.f32 %v1445
        %v1462 = vcvt.s32.f32 %v1446
        %v1463 = vcvt.s32.f32 %v1447
        %v1464 = vcvt.s32.f32 %v1448
        %v1465 = vcvt.s32.f32 %v1449
        %v1466 = vcvt.s32.f32 %v1450
        %v1467 = vcvt.s32.f32 %v1451
        %v1468 = vcvt.s32.f32 %v1452
        %v1469 = vcvt.s32.f32 %v1453
        %v1470 = vcvt.s32.f32 %v1454
        %v1471 = vcvt.s32.f32 %v1455
        %s1472 = scalar_lea.vmem [#allocation3], 512
        %v1473 = vld [vmem:[%s1472] sm:$0xff]
        %v1474 = vld [vmem:[%s1472 + $0x8] sm:$0xff]
        %v1475 = vld [vmem:[%s1472 + $0x10] sm:$0xff]
        %v1476 = vld [vmem:[%s1472 + $0x18] sm:$0xff]
        %v1477 = vld [vmem:[%s1472 + $0x20] sm:$0xff]
        %v1478 = vld [vmem:[%s1472 + $0x28] sm:$0xff]
        %v1479 = vld [vmem:[%s1472 + $0x30] sm:$0xff]
        %v1480 = vld [vmem:[%s1472 + $0x38] sm:$0xff]
        %v1481 = vld [vmem:[%s1472 + $0x40] sm:$0xff]
        %v1482 = vld [vmem:[%s1472 + $0x48] sm:$0xff]
        %v1483 = vld [vmem:[%s1472 + $0x50] sm:$0xff]
        %v1484 = vld [vmem:[%s1472 + $0x58] sm:$0xff]
        %v1485 = vld [vmem:[%s1472 + $0x60] sm:$0xff]
        %v1486 = vld [vmem:[%s1472 + $0x68] sm:$0xff]
        %v1487 = vld [vmem:[%s1472 + $0x70] sm:$0xff]
        %v1488 = vld [vmem:[%s1472 + $0x78] sm:$0xff]
        %1489 = vmatprep.subr.mxu0 0.0
        %1490 = vmatpush1.msra.mxu0 %v1488
        %1491 = vmatprep.subr.mxu0 0.0
        %1492 = vmatpush1.msra.mxu0 %v1487
        %1493 = vmatprep.subr.mxu0 0.0
        %1494 = vmatpush1.msra.mxu0 %v1486
        %1495 = vmatprep.subr.mxu0 0.0
        %1496 = vmatpush1.msra.mxu0 %v1485
        %1497 = vmatprep.subr.mxu0 0.0
        %1498 = vmatpush1.msra.mxu0 %v1484
        %1499 = vmatprep.subr.mxu0 0.0
        %1500 = vmatpush1.msra.mxu0 %v1483
        %1501 = vmatprep.subr.mxu0 0.0
        %1502 = vmatpush1.msra.mxu0 %v1482
        %1503 = vmatprep.subr.mxu0 0.0
        %1504 = vmatpush1.msra.mxu0 %v1481
        %1505 = vmatprep.subr.mxu0 0.0
        %1506 = vmatpush1.msra.mxu0 %v1480
        %1507 = vmatprep.subr.mxu0 0.0
        %1508 = vmatpush1.msra.mxu0 %v1479
        %1509 = vmatprep.subr.mxu0 0.0
        %1510 = vmatpush1.msra.mxu0 %v1478
        %1511 = vmatprep.subr.mxu0 0.0
        %1512 = vmatpush1.msra.mxu0 %v1477
        %1513 = vmatprep.subr.mxu0 0.0
        %1514 = vmatpush1.msra.mxu0 %v1476
        %1515 = vmatprep.subr.mxu0 0.0
        %1516 = vmatpush1.msra.mxu0 %v1475
        %1517 = vmatprep.subr.mxu0 0.0
        %1518 = vmatpush1.msra.mxu0 %v1474
        %1519 = vmatprep.subr.mxu0 0.0
        %1520 = vmatpush1.msra.mxu0 %v1473
        %1521 = vmatprep.subr.mxu0 0.0
        %1522 = vmatpush2.msra.mxu0 0.0
        %1523 = vmatprep.subr.mxu0 0.0
        %1524 = vmatpush2.msra.mxu0 0.0
        %1525 = vmatprep.subr.mxu0 0.0
        %1526 = vmatpush2.msra.mxu0 0.0
        %1527 = vmatprep.subr.mxu0 0.0
        %1528 = vmatpush2.msra.mxu0 0.0
        %1529 = vmatprep.subr.mxu0 0.0
        %1530 = vmatpush2.msra.mxu0 0.0
        %1531 = vmatprep.subr.mxu0 0.0
        %1532 = vmatpush2.msra.mxu0 0.0
        %1533 = vmatprep.subr.mxu0 0.0
        %1534 = vmatpush2.msra.mxu0 0.0
        %1535 = vmatprep.subr.mxu0 0.0
        %1536 = vmatpush2.msra.mxu0 0.0
        %1537 = vmatprep.subr.mxu0 0.0
        %1538 = vmatpush2.msra.mxu0 0.0
        %1539 = vmatprep.subr.mxu0 0.0
        %1540 = vmatpush2.msra.mxu0 0.0
        %1541 = vmatprep.subr.mxu0 0.0
        %1542 = vmatpush2.msra.mxu0 0.0
        %1543 = vmatprep.subr.mxu0 0.0
        %1544 = vmatpush2.msra.mxu0 0.0
        %1545 = vmatprep.subr.mxu0 0.0
        %1546 = vmatpush2.msra.mxu0 0.0
        %1547 = vmatprep.subr.mxu0 0.0
        %1548 = vmatpush2.msra.mxu0 0.0
        %1549 = vmatprep.subr.mxu0 0.0
        %1550 = vmatpush2.msra.mxu0 0.0
        %1551 = vmatprep.subr.mxu0 0.0
        %1552 = vmatpush2.msra.mxu0 0.0
        %1553 = vmatprep.mubr.f32.mxu0 0.0
        %1554 = vmatmul.mubr.f32.gmra.mxu0 %v1456
        %v1555 = vpop.f32.mrf.mxu0
        %v1556 = vadd.f32 0.0, %v1555
        %v1557 = vpop.f32.mrf.mxu0
        %1558 = vmatprep.mubr.f32.mxu0 0.0
        %1559 = vmatmul.mubr.f32.gmra.mxu0 %v1457
        %v1560 = vpop.f32.mrf.mxu0
        %v1561 = vadd.f32 0.0, %v1560
        %v1562 = vpop.f32.mrf.mxu0
        %1563 = vmatprep.mubr.f32.mxu0 0.0
        %1564 = vmatmul.mubr.f32.gmra.mxu0 %v1458
        %v1565 = vpop.f32.mrf.mxu0
        %v1566 = vadd.f32 0.0, %v1565
        %v1567 = vpop.f32.mrf.mxu0
        %1568 = vmatprep.mubr.f32.mxu0 0.0
        %1569 = vmatmul.mubr.f32.gmra.mxu0 %v1459
        %v1570 = vpop.f32.mrf.mxu0
        %v1571 = vadd.f32 0.0, %v1570
        %v1572 = vpop.f32.mrf.mxu0
        %1573 = vmatprep.mubr.f32.mxu0 0.0
        %1574 = vmatmul.mubr.f32.gmra.mxu0 %v1460
        %v1575 = vpop.f32.mrf.mxu0
        %v1576 = vadd.f32 0.0, %v1575
        %v1577 = vpop.f32.mrf.mxu0
        %1578 = vmatprep.mubr.f32.mxu0 0.0
        %1579 = vmatmul.mubr.f32.gmra.mxu0 %v1461
        %v1580 = vpop.f32.mrf.mxu0
        %v1581 = vadd.f32 0.0, %v1580
        %v1582 = vpop.f32.mrf.mxu0
        %1583 = vmatprep.mubr.f32.mxu0 0.0
        %1584 = vmatmul.mubr.f32.gmra.mxu0 %v1462
        %v1585 = vpop.f32.mrf.mxu0
        %v1586 = vadd.f32 0.0, %v1585
        %v1587 = vpop.f32.mrf.mxu0
        %1588 = vmatprep.mubr.f32.mxu0 0.0
        %1589 = vmatmul.mubr.f32.gmra.mxu0 %v1463
        %v1590 = vpop.f32.mrf.mxu0
        %v1591 = vadd.f32 0.0, %v1590
        %v1592 = vpop.f32.mrf.mxu0
        %1593 = vmatprep.mubr.f32.mxu0 0.0
        %1594 = vmatmul.mubr.f32.gmra.mxu0 %v1464
        %v1595 = vpop.f32.mrf.mxu0
        %v1596 = vadd.f32 0.0, %v1595
        %v1597 = vpop.f32.mrf.mxu0
        %1598 = vmatprep.mubr.f32.mxu0 0.0
        %1599 = vmatmul.mubr.f32.gmra.mxu0 %v1465
        %v1600 = vpop.f32.mrf.mxu0
        %v1601 = vadd.f32 0.0, %v1600
        %v1602 = vpop.f32.mrf.mxu0
        %1603 = vmatprep.mubr.f32.mxu0 0.0
        %1604 = vmatmul.mubr.f32.gmra.mxu0 %v1466
        %v1605 = vpop.f32.mrf.mxu0
        %v1606 = vadd.f32 0.0, %v1605
        %v1607 = vpop.f32.mrf.mxu0
        %1608 = vmatprep.mubr.f32.mxu0 0.0
        %1609 = vmatmul.mubr.f32.gmra.mxu0 %v1467
        %v1610 = vpop.f32.mrf.mxu0
        %v1611 = vadd.f32 0.0, %v1610
        %v1612 = vpop.f32.mrf.mxu0
        %1613 = vmatprep.mubr.f32.mxu0 0.0
        %1614 = vmatmul.mubr.f32.gmra.mxu0 %v1468
        %v1615 = vpop.f32.mrf.mxu0
        %v1616 = vadd.f32 0.0, %v1615
        %v1617 = vpop.f32.mrf.mxu0
        %1618 = vmatprep.mubr.f32.mxu0 0.0
        %1619 = vmatmul.mubr.f32.gmra.mxu0 %v1469
        %v1620 = vpop.f32.mrf.mxu0
        %v1621 = vadd.f32 0.0, %v1620
        %v1622 = vpop.f32.mrf.mxu0
        %1623 = vmatprep.mubr.f32.mxu0 0.0
        %1624 = vmatmul.mubr.f32.gmra.mxu0 %v1470
        %v1625 = vpop.f32.mrf.mxu0
        %v1626 = vadd.f32 0.0, %v1625
        %v1627 = vpop.f32.mrf.mxu0
        %1628 = vmatprep.mubr.f32.mxu0 0.0
        %1629 = vmatmul.mubr.f32.gmra.mxu0 %v1471
        %v1630 = vpop.f32.mrf.mxu0
        %v1631 = vadd.f32 0.0, %v1630
        %v1632 = vpop.f32.mrf.mxu0
        %1633 = vdwg.mxu0
        %v1634 = vadd.f32 %v1360, %v1556
        %v1635 = vadd.f32 %v1361, %v1561
        %v1636 = vadd.f32 %v1362, %v1566
        %v1637 = vadd.f32 %v1363, %v1571
        %v1638 = vadd.f32 %v1364, %v1576
        %v1639 = vadd.f32 %v1365, %v1581
        %v1640 = vadd.f32 %v1366, %v1586
        %v1641 = vadd.f32 %v1367, %v1591
        %v1642 = vadd.f32 %v1368, %v1596
        %v1643 = vadd.f32 %v1369, %v1601
        %v1644 = vadd.f32 %v1370, %v1606
        %v1645 = vadd.f32 %v1371, %v1611
        %v1646 = vadd.f32 %v1372, %v1616
        %v1647 = vadd.f32 %v1373, %v1621
        %v1648 = vadd.f32 %v1374, %v1626
        %v1649 = vadd.f32 %v1375, %v1631
        %1650 = vset.pattern.permute.xlu0 5
        %1651 = vperm.xlu0 %1650, %v295
        %v1652 = vpop.permute.xlu0 %1651
        %1653 = vset.pattern.permute.xlu0 5
        %1654 = vperm.xlu0 %1653, %v296
        %v1655 = vpop.permute.xlu0 %1654
        %1656 = vset.pattern.permute.xlu0 5
        %1657 = vperm.xlu0 %1656, %v297
        %v1658 = vpop.permute.xlu0 %1657
        %1659 = vset.pattern.permute.xlu0 5
        %1660 = vperm.xlu0 %1659, %v298
        %v1661 = vpop.permute.xlu0 %1660
        %1662 = vset.pattern.permute.xlu0 5
        %1663 = vperm.xlu0 %1662, %v299
        %v1664 = vpop.permute.xlu0 %1663
        %1665 = vset.pattern.permute.xlu0 5
        %1666 = vperm.xlu0 %1665, %v300
        %v1667 = vpop.permute.xlu0 %1666
        %1668 = vset.pattern.permute.xlu0 5
        %1669 = vperm.xlu0 %1668, %v301
        %v1670 = vpop.permute.xlu0 %1669
        %1671 = vset.pattern.permute.xlu0 5
        %1672 = vperm.xlu0 %1671, %v302
        %v1673 = vpop.permute.xlu0 %1672
        %1674 = vset.pattern.permute.xlu0 5
        %1675 = vperm.xlu0 %1674, %v303
        %v1676 = vpop.permute.xlu0 %1675
        %1677 = vset.pattern.permute.xlu0 5
        %1678 = vperm.xlu0 %1677, %v304
        %v1679 = vpop.permute.xlu0 %1678
        %1680 = vset.pattern.permute.xlu0 5
        %1681 = vperm.xlu0 %1680, %v305
        %v1682 = vpop.permute.xlu0 %1681
        %1683 = vset.pattern.permute.xlu0 5
        %1684 = vperm.xlu0 %1683, %v306
        %v1685 = vpop.permute.xlu0 %1684
        %1686 = vset.pattern.permute.xlu0 5
        %1687 = vperm.xlu0 %1686, %v307
        %v1688 = vpop.permute.xlu0 %1687
        %1689 = vset.pattern.permute.xlu0 5
        %1690 = vperm.xlu0 %1689, %v308
        %v1691 = vpop.permute.xlu0 %1690
        %1692 = vset.pattern.permute.xlu0 5
        %1693 = vperm.xlu0 %1692, %v309
        %v1694 = vpop.permute.xlu0 %1693
        %1695 = vset.pattern.permute.xlu0 5
        %1696 = vperm.xlu0 %1695, %v310
        %v1697 = vpop.permute.xlu0 %1696
        %vm1698 = vcmp.eq.s32.totalorder %v312, %v1652
        %vm1699 = vcmp.eq.s32.totalorder %v312, %v1655
        %vm1700 = vcmp.eq.s32.totalorder %v312, %v1658
        %vm1701 = vcmp.eq.s32.totalorder %v312, %v1661
        %vm1702 = vcmp.eq.s32.totalorder %v312, %v1664
        %vm1703 = vcmp.eq.s32.totalorder %v312, %v1667
        %vm1704 = vcmp.eq.s32.totalorder %v312, %v1670
        %vm1705 = vcmp.eq.s32.totalorder %v312, %v1673
        %vm1706 = vcmp.eq.s32.totalorder %v312, %v1676
        %vm1707 = vcmp.eq.s32.totalorder %v312, %v1679
        %vm1708 = vcmp.eq.s32.totalorder %v312, %v1682
        %vm1709 = vcmp.eq.s32.totalorder %v312, %v1685
        %vm1710 = vcmp.eq.s32.totalorder %v312, %v1688
        %vm1711 = vcmp.eq.s32.totalorder %v312, %v1691
        %vm1712 = vcmp.eq.s32.totalorder %v312, %v1694
        %vm1713 = vcmp.eq.s32.totalorder %v312, %v1697
        %v1714 = vsel %vm1698, 1, 0
        %v1715 = vsel %vm1699, 1, 0
        %v1716 = vsel %vm1700, 1, 0
        %v1717 = vsel %vm1701, 1, 0
        %v1718 = vsel %vm1702, 1, 0
        %v1719 = vsel %vm1703, 1, 0
        %v1720 = vsel %vm1704, 1, 0
        %v1721 = vsel %vm1705, 1, 0
        %v1722 = vsel %vm1706, 1, 0
        %v1723 = vsel %vm1707, 1, 0
        %v1724 = vsel %vm1708, 1, 0
        %v1725 = vsel %vm1709, 1, 0
        %v1726 = vsel %vm1710, 1, 0
        %v1727 = vsel %vm1711, 1, 0
        %v1728 = vsel %vm1712, 1, 0
        %v1729 = vsel %vm1713, 1, 0
        %v1730 = vcvt.s32.f32 %v1714
        %v1731 = vcvt.s32.f32 %v1715
        %v1732 = vcvt.s32.f32 %v1716
        %v1733 = vcvt.s32.f32 %v1717
        %v1734 = vcvt.s32.f32 %v1718
        %v1735 = vcvt.s32.f32 %v1719
        %v1736 = vcvt.s32.f32 %v1720
        %v1737 = vcvt.s32.f32 %v1721
        %v1738 = vcvt.s32.f32 %v1722
        %v1739 = vcvt.s32.f32 %v1723
        %v1740 = vcvt.s32.f32 %v1724
        %v1741 = vcvt.s32.f32 %v1725
        %v1742 = vcvt.s32.f32 %v1726
        %v1743 = vcvt.s32.f32 %v1727
        %v1744 = vcvt.s32.f32 %v1728
        %v1745 = vcvt.s32.f32 %v1729
        %s1746 = scalar_lea.vmem [#allocation3], 640
        %v1747 = vld [vmem:[%s1746] sm:$0xff]
        %v1748 = vld [vmem:[%s1746 + $0x8] sm:$0xff]
        %v1749 = vld [vmem:[%s1746 + $0x10] sm:$0xff]
        %v1750 = vld [vmem:[%s1746 + $0x18] sm:$0xff]
        %v1751 = vld [vmem:[%s1746 + $0x20] sm:$0xff]
        %v1752 = vld [vmem:[%s1746 + $0x28] sm:$0xff]
        %v1753 = vld [vmem:[%s1746 + $0x30] sm:$0xff]
        %v1754 = vld [vmem:[%s1746 + $0x38] sm:$0xff]
        %v1755 = vld [vmem:[%s1746 + $0x40] sm:$0xff]
        %v1756 = vld [vmem:[%s1746 + $0x48] sm:$0xff]
        %v1757 = vld [vmem:[%s1746 + $0x50] sm:$0xff]
        %v1758 = vld [vmem:[%s1746 + $0x58] sm:$0xff]
        %v1759 = vld [vmem:[%s1746 + $0x60] sm:$0xff]
        %v1760 = vld [vmem:[%s1746 + $0x68] sm:$0xff]
        %v1761 = vld [vmem:[%s1746 + $0x70] sm:$0xff]
        %v1762 = vld [vmem:[%s1746 + $0x78] sm:$0xff]
        %1763 = vmatprep.subr.mxu0 0.0
        %1764 = vmatpush1.msra.mxu0 %v1762
        %1765 = vmatprep.subr.mxu0 0.0
        %1766 = vmatpush1.msra.mxu0 %v1761
        %1767 = vmatprep.subr.mxu0 0.0
        %1768 = vmatpush1.msra.mxu0 %v1760
        %1769 = vmatprep.subr.mxu0 0.0
        %1770 = vmatpush1.msra.mxu0 %v1759
        %1771 = vmatprep.subr.mxu0 0.0
        %1772 = vmatpush1.msra.mxu0 %v1758
        %1773 = vmatprep.subr.mxu0 0.0
        %1774 = vmatpush1.msra.mxu0 %v1757
        %1775 = vmatprep.subr.mxu0 0.0
        %1776 = vmatpush1.msra.mxu0 %v1756
        %1777 = vmatprep.subr.mxu0 0.0
        %1778 = vmatpush1.msra.mxu0 %v1755
        %1779 = vmatprep.subr.mxu0 0.0
        %1780 = vmatpush1.msra.mxu0 %v1754
        %1781 = vmatprep.subr.mxu0 0.0
        %1782 = vmatpush1.msra.mxu0 %v1753
        %1783 = vmatprep.subr.mxu0 0.0
        %1784 = vmatpush1.msra.mxu0 %v1752
        %1785 = vmatprep.subr.mxu0 0.0
        %1786 = vmatpush1.msra.mxu0 %v1751
        %1787 = vmatprep.subr.mxu0 0.0
        %1788 = vmatpush1.msra.mxu0 %v1750
        %1789 = vmatprep.subr.mxu0 0.0
        %1790 = vmatpush1.msra.mxu0 %v1749
        %1791 = vmatprep.subr.mxu0 0.0
        %1792 = vmatpush1.msra.mxu0 %v1748
        %1793 = vmatprep.subr.mxu0 0.0
        %1794 = vmatpush1.msra.mxu0 %v1747
        %1795 = vmatprep.subr.mxu0 0.0
        %1796 = vmatpush2.msra.mxu0 0.0
        %1797 = vmatprep.subr.mxu0 0.0
        %1798 = vmatpush2.msra.mxu0 0.0
        %1799 = vmatprep.subr.mxu0 0.0
        %1800 = vmatpush2.msra.mxu0 0.0
        %1801 = vmatprep.subr.mxu0 0.0
        %1802 = vmatpush2.msra.mxu0 0.0
        %1803 = vmatprep.subr.mxu0 0.0
        %1804 = vmatpush2.msra.mxu0 0.0
        %1805 = vmatprep.subr.mxu0 0.0
        %1806 = vmatpush2.msra.mxu0 0.0
        %1807 = vmatprep.subr.mxu0 0.0
        %1808 = vmatpush2.msra.mxu0 0.0
        %1809 = vmatprep.subr.mxu0 0.0
        %1810 = vmatpush2.msra.mxu0 0.0
        %1811 = vmatprep.subr.mxu0 0.0
        %1812 = vmatpush2.msra.mxu0 0.0
        %1813 = vmatprep.subr.mxu0 0.0
        %1814 = vmatpush2.msra.mxu0 0.0
        %1815 = vmatprep.subr.mxu0 0.0
        %1816 = vmatpush2.msra.mxu0 0.0
        %1817 = vmatprep.subr.mxu0 0.0
        %1818 = vmatpush2.msra.mxu0 0.0
        %1819 = vmatprep.subr.mxu0 0.0
        %1820 = vmatpush2.msra.mxu0 0.0
        %1821 = vmatprep.subr.mxu0 0.0
        %1822 = vmatpush2.msra.mxu0 0.0
        %1823 = vmatprep.subr.mxu0 0.0
        %1824 = vmatpush2.msra.mxu0 0.0
        %1825 = vmatprep.subr.mxu0 0.0
        %1826 = vmatpush2.msra.mxu0 0.0
        %1827 = vmatprep.mubr.f32.mxu0 0.0
        %1828 = vmatmul.mubr.f32.gmra.mxu0 %v1730
        %v1829 = vpop.f32.mrf.mxu0
        %v1830 = vadd.f32 0.0, %v1829
        %v1831 = vpop.f32.mrf.mxu0
        %1832 = vmatprep.mubr.f32.mxu0 0.0
        %1833 = vmatmul.mubr.f32.gmra.mxu0 %v1731
        %v1834 = vpop.f32.mrf.mxu0
        %v1835 = vadd.f32 0.0, %v1834
        %v1836 = vpop.f32.mrf.mxu0
        %1837 = vmatprep.mubr.f32.mxu0 0.0
        %1838 = vmatmul.mubr.f32.gmra.mxu0 %v1732
        %v1839 = vpop.f32.mrf.mxu0
        %v1840 = vadd.f32 0.0, %v1839
        %v1841 = vpop.f32.mrf.mxu0
        %1842 = vmatprep.mubr.f32.mxu0 0.0
        %1843 = vmatmul.mubr.f32.gmra.mxu0 %v1733
        %v1844 = vpop.f32.mrf.mxu0
        %v1845 = vadd.f32 0.0, %v1844
        %v1846 = vpop.f32.mrf.mxu0
        %1847 = vmatprep.mubr.f32.mxu0 0.0
        %1848 = vmatmul.mubr.f32.gmra.mxu0 %v1734
        %v1849 = vpop.f32.mrf.mxu0
        %v1850 = vadd.f32 0.0, %v1849
        %v1851 = vpop.f32.mrf.mxu0
        %1852 = vmatprep.mubr.f32.mxu0 0.0
        %1853 = vmatmul.mubr.f32.gmra.mxu0 %v1735
        %v1854 = vpop.f32.mrf.mxu0
        %v1855 = vadd.f32 0.0, %v1854
        %v1856 = vpop.f32.mrf.mxu0
        %1857 = vmatprep.mubr.f32.mxu0 0.0
        %1858 = vmatmul.mubr.f32.gmra.mxu0 %v1736
        %v1859 = vpop.f32.mrf.mxu0
        %v1860 = vadd.f32 0.0, %v1859
        %v1861 = vpop.f32.mrf.mxu0
        %1862 = vmatprep.mubr.f32.mxu0 0.0
        %1863 = vmatmul.mubr.f32.gmra.mxu0 %v1737
        %v1864 = vpop.f32.mrf.mxu0
        %v1865 = vadd.f32 0.0, %v1864
        %v1866 = vpop.f32.mrf.mxu0
        %1867 = vmatprep.mubr.f32.mxu0 0.0
        %1868 = vmatmul.mubr.f32.gmra.mxu0 %v1738
        %v1869 = vpop.f32.mrf.mxu0
        %v1870 = vadd.f32 0.0, %v1869
        %v1871 = vpop.f32.mrf.mxu0
        %1872 = vmatprep.mubr.f32.mxu0 0.0
        %1873 = vmatmul.mubr.f32.gmra.mxu0 %v1739
        %v1874 = vpop.f32.mrf.mxu0
        %v1875 = vadd.f32 0.0, %v1874
        %v1876 = vpop.f32.mrf.mxu0
        %1877 = vmatprep.mubr.f32.mxu0 0.0
        %1878 = vmatmul.mubr.f32.gmra.mxu0 %v1740
        %v1879 = vpop.f32.mrf.mxu0
        %v1880 = vadd.f32 0.0, %v1879
        %v1881 = vpop.f32.mrf.mxu0
        %1882 = vmatprep.mubr.f32.mxu0 0.0
        %1883 = vmatmul.mubr.f32.gmra.mxu0 %v1741
        %v1884 = vpop.f32.mrf.mxu0
        %v1885 = vadd.f32 0.0, %v1884
        %v1886 = vpop.f32.mrf.mxu0
        %1887 = vmatprep.mubr.f32.mxu0 0.0
        %1888 = vmatmul.mubr.f32.gmra.mxu0 %v1742
        %v1889 = vpop.f32.mrf.mxu0
        %v1890 = vadd.f32 0.0, %v1889
        %v1891 = vpop.f32.mrf.mxu0
        %1892 = vmatprep.mubr.f32.mxu0 0.0
        %1893 = vmatmul.mubr.f32.gmra.mxu0 %v1743
        %v1894 = vpop.f32.mrf.mxu0
        %v1895 = vadd.f32 0.0, %v1894
        %v1896 = vpop.f32.mrf.mxu0
        %1897 = vmatprep.mubr.f32.mxu0 0.0
        %1898 = vmatmul.mubr.f32.gmra.mxu0 %v1744
        %v1899 = vpop.f32.mrf.mxu0
        %v1900 = vadd.f32 0.0, %v1899
        %v1901 = vpop.f32.mrf.mxu0
        %1902 = vmatprep.mubr.f32.mxu0 0.0
        %1903 = vmatmul.mubr.f32.gmra.mxu0 %v1745
        %v1904 = vpop.f32.mrf.mxu0
        %v1905 = vadd.f32 0.0, %v1904
        %v1906 = vpop.f32.mrf.mxu0
        %1907 = vdwg.mxu0
        %v1908 = vadd.f32 %v1634, %v1830
        %v1909 = vadd.f32 %v1635, %v1835
        %v1910 = vadd.f32 %v1636, %v1840
        %v1911 = vadd.f32 %v1637, %v1845
        %v1912 = vadd.f32 %v1638, %v1850
        %v1913 = vadd.f32 %v1639, %v1855
        %v1914 = vadd.f32 %v1640, %v1860
        %v1915 = vadd.f32 %v1641, %v1865
        %v1916 = vadd.f32 %v1642, %v1870
        %v1917 = vadd.f32 %v1643, %v1875
        %v1918 = vadd.f32 %v1644, %v1880
        %v1919 = vadd.f32 %v1645, %v1885
        %v1920 = vadd.f32 %v1646, %v1890
        %v1921 = vadd.f32 %v1647, %v1895
        %v1922 = vadd.f32 %v1648, %v1900
        %v1923 = vadd.f32 %v1649, %v1905
        %1924 = vset.pattern.permute.xlu0 6
        %1925 = vperm.xlu0 %1924, %v295
        %v1926 = vpop.permute.xlu0 %1925
        %1927 = vset.pattern.permute.xlu0 6
        %1928 = vperm.xlu0 %1927, %v296
        %v1929 = vpop.permute.xlu0 %1928
        %1930 = vset.pattern.permute.xlu0 6
        %1931 = vperm.xlu0 %1930, %v297
        %v1932 = vpop.permute.xlu0 %1931
        %1933 = vset.pattern.permute.xlu0 6
        %1934 = vperm.xlu0 %1933, %v298
        %v1935 = vpop.permute.xlu0 %1934
        %1936 = vset.pattern.permute.xlu0 6
        %1937 = vperm.xlu0 %1936, %v299
        %v1938 = vpop.permute.xlu0 %1937
        %1939 = vset.pattern.permute.xlu0 6
        %1940 = vperm.xlu0 %1939, %v300
        %v1941 = vpop.permute.xlu0 %1940
        %1942 = vset.pattern.permute.xlu0 6
        %1943 = vperm.xlu0 %1942, %v301
        %v1944 = vpop.permute.xlu0 %1943
        %1945 = vset.pattern.permute.xlu0 6
        %1946 = vperm.xlu0 %1945, %v302
        %v1947 = vpop.permute.xlu0 %1946
        %1948 = vset.pattern.permute.xlu0 6
        %1949 = vperm.xlu0 %1948, %v303
        %v1950 = vpop.permute.xlu0 %1949
        %1951 = vset.pattern.permute.xlu0 6
        %1952 = vperm.xlu0 %1951, %v304
        %v1953 = vpop.permute.xlu0 %1952
        %1954 = vset.pattern.permute.xlu0 6
        %1955 = vperm.xlu0 %1954, %v305
        %v1956 = vpop.permute.xlu0 %1955
        %1957 = vset.pattern.permute.xlu0 6
        %1958 = vperm.xlu0 %1957, %v306
        %v1959 = vpop.permute.xlu0 %1958
        %1960 = vset.pattern.permute.xlu0 6
        %1961 = vperm.xlu0 %1960, %v307
        %v1962 = vpop.permute.xlu0 %1961
        %1963 = vset.pattern.permute.xlu0 6
        %1964 = vperm.xlu0 %1963, %v308
        %v1965 = vpop.permute.xlu0 %1964
        %1966 = vset.pattern.permute.xlu0 6
        %1967 = vperm.xlu0 %1966, %v309
        %v1968 = vpop.permute.xlu0 %1967
        %1969 = vset.pattern.permute.xlu0 6
        %1970 = vperm.xlu0 %1969, %v310
        %v1971 = vpop.permute.xlu0 %1970
        %vm1972 = vcmp.eq.s32.totalorder %v312, %v1926
        %vm1973 = vcmp.eq.s32.totalorder %v312, %v1929
        %vm1974 = vcmp.eq.s32.totalorder %v312, %v1932
        %vm1975 = vcmp.eq.s32.totalorder %v312, %v1935
        %vm1976 = vcmp.eq.s32.totalorder %v312, %v1938
        %vm1977 = vcmp.eq.s32.totalorder %v312, %v1941
        %vm1978 = vcmp.eq.s32.totalorder %v312, %v1944
        %vm1979 = vcmp.eq.s32.totalorder %v312, %v1947
        %vm1980 = vcmp.eq.s32.totalorder %v312, %v1950
        %vm1981 = vcmp.eq.s32.totalorder %v312, %v1953
        %vm1982 = vcmp.eq.s32.totalorder %v312, %v1956
        %vm1983 = vcmp.eq.s32.totalorder %v312, %v1959
        %vm1984 = vcmp.eq.s32.totalorder %v312, %v1962
        %vm1985 = vcmp.eq.s32.totalorder %v312, %v1965
        %vm1986 = vcmp.eq.s32.totalorder %v312, %v1968
        %vm1987 = vcmp.eq.s32.totalorder %v312, %v1971
        %v1988 = vsel %vm1972, 1, 0
        %v1989 = vsel %vm1973, 1, 0
        %v1990 = vsel %vm1974, 1, 0
        %v1991 = vsel %vm1975, 1, 0
        %v1992 = vsel %vm1976, 1, 0
        %v1993 = vsel %vm1977, 1, 0
        %v1994 = vsel %vm1978, 1, 0
        %v1995 = vsel %vm1979, 1, 0
        %v1996 = vsel %vm1980, 1, 0
        %v1997 = vsel %vm1981, 1, 0
        %v1998 = vsel %vm1982, 1, 0
        %v1999 = vsel %vm1983, 1, 0
        %v2000 = vsel %vm1984, 1, 0
        %v2001 = vsel %vm1985, 1, 0
        %v2002 = vsel %vm1986, 1, 0
        %v2003 = vsel %vm1987, 1, 0
        %v2004 = vcvt.s32.f32 %v1988
        %v2005 = vcvt.s32.f32 %v1989
        %v2006 = vcvt.s32.f32 %v1990
        %v2007 = vcvt.s32.f32 %v1991
        %v2008 = vcvt.s32.f32 %v1992
        %v2009 = vcvt.s32.f32 %v1993
        %v2010 = vcvt.s32.f32 %v1994
        %v2011 = vcvt.s32.f32 %v1995
        %v2012 = vcvt.s32.f32 %v1996
        %v2013 = vcvt.s32.f32 %v1997
        %v2014 = vcvt.s32.f32 %v1998
        %v2015 = vcvt.s32.f32 %v1999
        %v2016 = vcvt.s32.f32 %v2000
        %v2017 = vcvt.s32.f32 %v2001
        %v2018 = vcvt.s32.f32 %v2002
        %v2019 = vcvt.s32.f32 %v2003
        %s2020 = scalar_lea.vmem [#allocation3], 768
        %v2021 = vld [vmem:[%s2020] sm:$0xff]
        %v2022 = vld [vmem:[%s2020 + $0x8] sm:$0xff]
        %v2023 = vld [vmem:[%s2020 + $0x10] sm:$0xff]
        %v2024 = vld [vmem:[%s2020 + $0x18] sm:$0xff]
        %v2025 = vld [vmem:[%s2020 + $0x20] sm:$0xff]
        %v2026 = vld [vmem:[%s2020 + $0x28] sm:$0xff]
        %v2027 = vld [vmem:[%s2020 + $0x30] sm:$0xff]
        %v2028 = vld [vmem:[%s2020 + $0x38] sm:$0xff]
        %v2029 = vld [vmem:[%s2020 + $0x40] sm:$0xff]
        %v2030 = vld [vmem:[%s2020 + $0x48] sm:$0xff]
        %v2031 = vld [vmem:[%s2020 + $0x50] sm:$0xff]
        %v2032 = vld [vmem:[%s2020 + $0x58] sm:$0xff]
        %v2033 = vld [vmem:[%s2020 + $0x60] sm:$0xff]
        %v2034 = vld [vmem:[%s2020 + $0x68] sm:$0xff]
        %v2035 = vld [vmem:[%s2020 + $0x70] sm:$0xff]
        %v2036 = vld [vmem:[%s2020 + $0x78] sm:$0xff]
        %2037 = vmatprep.subr.mxu0 0.0
        %2038 = vmatpush1.msra.mxu0 %v2036
        %2039 = vmatprep.subr.mxu0 0.0
        %2040 = vmatpush1.msra.mxu0 %v2035
        %2041 = vmatprep.subr.mxu0 0.0
        %2042 = vmatpush1.msra.mxu0 %v2034
        %2043 = vmatprep.subr.mxu0 0.0
        %2044 = vmatpush1.msra.mxu0 %v2033
        %2045 = vmatprep.subr.mxu0 0.0
        %2046 = vmatpush1.msra.mxu0 %v2032
        %2047 = vmatprep.subr.mxu0 0.0
        %2048 = vmatpush1.msra.mxu0 %v2031
        %2049 = vmatprep.subr.mxu0 0.0
        %2050 = vmatpush1.msra.mxu0 %v2030
        %2051 = vmatprep.subr.mxu0 0.0
        %2052 = vmatpush1.msra.mxu0 %v2029
        %2053 = vmatprep.subr.mxu0 0.0
        %2054 = vmatpush1.msra.mxu0 %v2028
        %2055 = vmatprep.subr.mxu0 0.0
        %2056 = vmatpush1.msra.mxu0 %v2027
        %2057 = vmatprep.subr.mxu0 0.0
        %2058 = vmatpush1.msra.mxu0 %v2026
        %2059 = vmatprep.subr.mxu0 0.0
        %2060 = vmatpush1.msra.mxu0 %v2025
        %2061 = vmatprep.subr.mxu0 0.0
        %2062 = vmatpush1.msra.mxu0 %v2024
        %2063 = vmatprep.subr.mxu0 0.0
        %2064 = vmatpush1.msra.mxu0 %v2023
        %2065 = vmatprep.subr.mxu0 0.0
        %2066 = vmatpush1.msra.mxu0 %v2022
        %2067 = vmatprep.subr.mxu0 0.0
        %2068 = vmatpush1.msra.mxu0 %v2021
        %2069 = vmatprep.subr.mxu0 0.0
        %2070 = vmatpush2.msra.mxu0 0.0
        %2071 = vmatprep.subr.mxu0 0.0
        %2072 = vmatpush2.msra.mxu0 0.0
        %2073 = vmatprep.subr.mxu0 0.0
        %2074 = vmatpush2.msra.mxu0 0.0
        %2075 = vmatprep.subr.mxu0 0.0
        %2076 = vmatpush2.msra.mxu0 0.0
        %2077 = vmatprep.subr.mxu0 0.0
        %2078 = vmatpush2.msra.mxu0 0.0
        %2079 = vmatprep.subr.mxu0 0.0
        %2080 = vmatpush2.msra.mxu0 0.0
        %2081 = vmatprep.subr.mxu0 0.0
        %2082 = vmatpush2.msra.mxu0 0.0
        %2083 = vmatprep.subr.mxu0 0.0
        %2084 = vmatpush2.msra.mxu0 0.0
        %2085 = vmatprep.subr.mxu0 0.0
        %2086 = vmatpush2.msra.mxu0 0.0
        %2087 = vmatprep.subr.mxu0 0.0
        %2088 = vmatpush2.msra.mxu0 0.0
        %2089 = vmatprep.subr.mxu0 0.0
        %2090 = vmatpush2.msra.mxu0 0.0
        %2091 = vmatprep.subr.mxu0 0.0
        %2092 = vmatpush2.msra.mxu0 0.0
        %2093 = vmatprep.subr.mxu0 0.0
        %2094 = vmatpush2.msra.mxu0 0.0
        %2095 = vmatprep.subr.mxu0 0.0
        %2096 = vmatpush2.msra.mxu0 0.0
        %2097 = vmatprep.subr.mxu0 0.0
        %2098 = vmatpush2.msra.mxu0 0.0
        %2099 = vmatprep.subr.mxu0 0.0
        %2100 = vmatpush2.msra.mxu0 0.0
        %2101 = vmatprep.mubr.f32.mxu0 0.0
        %2102 = vmatmul.mubr.f32.gmra.mxu0 %v2004
        %v2103 = vpop.f32.mrf.mxu0
        %v2104 = vadd.f32 0.0, %v2103
        %v2105 = vpop.f32.mrf.mxu0
        %2106 = vmatprep.mubr.f32.mxu0 0.0
        %2107 = vmatmul.mubr.f32.gmra.mxu0 %v2005
        %v2108 = vpop.f32.mrf.mxu0
        %v2109 = vadd.f32 0.0, %v2108
        %v2110 = vpop.f32.mrf.mxu0
        %2111 = vmatprep.mubr.f32.mxu0 0.0
        %2112 = vmatmul.mubr.f32.gmra.mxu0 %v2006
        %v2113 = vpop.f32.mrf.mxu0
        %v2114 = vadd.f32 0.0, %v2113
        %v2115 = vpop.f32.mrf.mxu0
        %2116 = vmatprep.mubr.f32.mxu0 0.0
        %2117 = vmatmul.mubr.f32.gmra.mxu0 %v2007
        %v2118 = vpop.f32.mrf.mxu0
        %v2119 = vadd.f32 0.0, %v2118
        %v2120 = vpop.f32.mrf.mxu0
        %2121 = vmatprep.mubr.f32.mxu0 0.0
        %2122 = vmatmul.mubr.f32.gmra.mxu0 %v2008
        %v2123 = vpop.f32.mrf.mxu0
        %v2124 = vadd.f32 0.0, %v2123
        %v2125 = vpop.f32.mrf.mxu0
        %2126 = vmatprep.mubr.f32.mxu0 0.0
        %2127 = vmatmul.mubr.f32.gmra.mxu0 %v2009
        %v2128 = vpop.f32.mrf.mxu0
        %v2129 = vadd.f32 0.0, %v2128
        %v2130 = vpop.f32.mrf.mxu0
        %2131 = vmatprep.mubr.f32.mxu0 0.0
        %2132 = vmatmul.mubr.f32.gmra.mxu0 %v2010
        %v2133 = vpop.f32.mrf.mxu0
        %v2134 = vadd.f32 0.0, %v2133
        %v2135 = vpop.f32.mrf.mxu0
        %2136 = vmatprep.mubr.f32.mxu0 0.0
        %2137 = vmatmul.mubr.f32.gmra.mxu0 %v2011
        %v2138 = vpop.f32.mrf.mxu0
        %v2139 = vadd.f32 0.0, %v2138
        %v2140 = vpop.f32.mrf.mxu0
        %2141 = vmatprep.mubr.f32.mxu0 0.0
        %2142 = vmatmul.mubr.f32.gmra.mxu0 %v2012
        %v2143 = vpop.f32.mrf.mxu0
        %v2144 = vadd.f32 0.0, %v2143
        %v2145 = vpop.f32.mrf.mxu0
        %2146 = vmatprep.mubr.f32.mxu0 0.0
        %2147 = vmatmul.mubr.f32.gmra.mxu0 %v2013
        %v2148 = vpop.f32.mrf.mxu0
        %v2149 = vadd.f32 0.0, %v2148
        %v2150 = vpop.f32.mrf.mxu0
        %2151 = vmatprep.mubr.f32.mxu0 0.0
        %2152 = vmatmul.mubr.f32.gmra.mxu0 %v2014
        %v2153 = vpop.f32.mrf.mxu0
        %v2154 = vadd.f32 0.0, %v2153
        %v2155 = vpop.f32.mrf.mxu0
        %2156 = vmatprep.mubr.f32.mxu0 0.0
        %2157 = vmatmul.mubr.f32.gmra.mxu0 %v2015
        %v2158 = vpop.f32.mrf.mxu0
        %v2159 = vadd.f32 0.0, %v2158
        %v2160 = vpop.f32.mrf.mxu0
        %2161 = vmatprep.mubr.f32.mxu0 0.0
        %2162 = vmatmul.mubr.f32.gmra.mxu0 %v2016
        %v2163 = vpop.f32.mrf.mxu0
        %v2164 = vadd.f32 0.0, %v2163
        %v2165 = vpop.f32.mrf.mxu0
        %2166 = vmatprep.mubr.f32.mxu0 0.0
        %2167 = vmatmul.mubr.f32.gmra.mxu0 %v2017
        %v2168 = vpop.f32.mrf.mxu0
        %v2169 = vadd.f32 0.0, %v2168
        %v2170 = vpop.f32.mrf.mxu0
        %2171 = vmatprep.mubr.f32.mxu0 0.0
        %2172 = vmatmul.mubr.f32.gmra.mxu0 %v2018
        %v2173 = vpop.f32.mrf.mxu0
        %v2174 = vadd.f32 0.0, %v2173
        %v2175 = vpop.f32.mrf.mxu0
        %2176 = vmatprep.mubr.f32.mxu0 0.0
        %2177 = vmatmul.mubr.f32.gmra.mxu0 %v2019
        %v2178 = vpop.f32.mrf.mxu0
        %v2179 = vadd.f32 0.0, %v2178
        %v2180 = vpop.f32.mrf.mxu0
        %2181 = vdwg.mxu0
        %v2182 = vadd.f32 %v1908, %v2104
        %v2183 = vadd.f32 %v1909, %v2109
        %v2184 = vadd.f32 %v1910, %v2114
        %v2185 = vadd.f32 %v1911, %v2119
        %v2186 = vadd.f32 %v1912, %v2124
        %v2187 = vadd.f32 %v1913, %v2129
        %v2188 = vadd.f32 %v1914, %v2134
        %v2189 = vadd.f32 %v1915, %v2139
        %v2190 = vadd.f32 %v1916, %v2144
        %v2191 = vadd.f32 %v1917, %v2149
        %v2192 = vadd.f32 %v1918, %v2154
        %v2193 = vadd.f32 %v1919, %v2159
        %v2194 = vadd.f32 %v1920, %v2164
        %v2195 = vadd.f32 %v1921, %v2169
        %v2196 = vadd.f32 %v1922, %v2174
        %v2197 = vadd.f32 %v1923, %v2179
        %2198 = vset.pattern.permute.xlu0 7
        %2199 = vperm.xlu0 %2198, %v295
        %v2200 = vpop.permute.xlu0 %2199
        %2201 = vset.pattern.permute.xlu0 7
        %2202 = vperm.xlu0 %2201, %v296
        %v2203 = vpop.permute.xlu0 %2202
        %2204 = vset.pattern.permute.xlu0 7
        %2205 = vperm.xlu0 %2204, %v297
        %v2206 = vpop.permute.xlu0 %2205
        %2207 = vset.pattern.permute.xlu0 7
        %2208 = vperm.xlu0 %2207, %v298
        %v2209 = vpop.permute.xlu0 %2208
        %2210 = vset.pattern.permute.xlu0 7
        %2211 = vperm.xlu0 %2210, %v299
        %v2212 = vpop.permute.xlu0 %2211
        %2213 = vset.pattern.permute.xlu0 7
        %2214 = vperm.xlu0 %2213, %v300
        %v2215 = vpop.permute.xlu0 %2214
        %2216 = vset.pattern.permute.xlu0 7
        %2217 = vperm.xlu0 %2216, %v301
        %v2218 = vpop.permute.xlu0 %2217
        %2219 = vset.pattern.permute.xlu0 7
        %2220 = vperm.xlu0 %2219, %v302
        %v2221 = vpop.permute.xlu0 %2220
        %2222 = vset.pattern.permute.xlu0 7
        %2223 = vperm.xlu0 %2222, %v303
        %v2224 = vpop.permute.xlu0 %2223
        %2225 = vset.pattern.permute.xlu0 7
        %2226 = vperm.xlu0 %2225, %v304
        %v2227 = vpop.permute.xlu0 %2226
        %2228 = vset.pattern.permute.xlu0 7
        %2229 = vperm.xlu0 %2228, %v305
        %v2230 = vpop.permute.xlu0 %2229
        %2231 = vset.pattern.permute.xlu0 7
        %2232 = vperm.xlu0 %2231, %v306
        %v2233 = vpop.permute.xlu0 %2232
        %2234 = vset.pattern.permute.xlu0 7
        %2235 = vperm.xlu0 %2234, %v307
        %v2236 = vpop.permute.xlu0 %2235
        %2237 = vset.pattern.permute.xlu0 7
        %2238 = vperm.xlu0 %2237, %v308
        %v2239 = vpop.permute.xlu0 %2238
        %2240 = vset.pattern.permute.xlu0 7
        %2241 = vperm.xlu0 %2240, %v309
        %v2242 = vpop.permute.xlu0 %2241
        %2243 = vset.pattern.permute.xlu0 7
        %2244 = vperm.xlu0 %2243, %v310
        %v2245 = vpop.permute.xlu0 %2244
        %vm2246 = vcmp.eq.s32.totalorder %v312, %v2200
        %vm2247 = vcmp.eq.s32.totalorder %v312, %v2203
        %vm2248 = vcmp.eq.s32.totalorder %v312, %v2206
        %vm2249 = vcmp.eq.s32.totalorder %v312, %v2209
        %vm2250 = vcmp.eq.s32.totalorder %v312, %v2212
        %vm2251 = vcmp.eq.s32.totalorder %v312, %v2215
        %vm2252 = vcmp.eq.s32.totalorder %v312, %v2218
        %vm2253 = vcmp.eq.s32.totalorder %v312, %v2221
        %vm2254 = vcmp.eq.s32.totalorder %v312, %v2224
        %vm2255 = vcmp.eq.s32.totalorder %v312, %v2227
        %vm2256 = vcmp.eq.s32.totalorder %v312, %v2230
        %vm2257 = vcmp.eq.s32.totalorder %v312, %v2233
        %vm2258 = vcmp.eq.s32.totalorder %v312, %v2236
        %vm2259 = vcmp.eq.s32.totalorder %v312, %v2239
        %vm2260 = vcmp.eq.s32.totalorder %v312, %v2242
        %vm2261 = vcmp.eq.s32.totalorder %v312, %v2245
        %v2262 = vsel %vm2246, 1, 0
        %v2263 = vsel %vm2247, 1, 0
        %v2264 = vsel %vm2248, 1, 0
        %v2265 = vsel %vm2249, 1, 0
        %v2266 = vsel %vm2250, 1, 0
        %v2267 = vsel %vm2251, 1, 0
        %v2268 = vsel %vm2252, 1, 0
        %v2269 = vsel %vm2253, 1, 0
        %v2270 = vsel %vm2254, 1, 0
        %v2271 = vsel %vm2255, 1, 0
        %v2272 = vsel %vm2256, 1, 0
        %v2273 = vsel %vm2257, 1, 0
        %v2274 = vsel %vm2258, 1, 0
        %v2275 = vsel %vm2259, 1, 0
        %v2276 = vsel %vm2260, 1, 0
        %v2277 = vsel %vm2261, 1, 0
        %v2278 = vcvt.s32.f32 %v2262
        %v2279 = vcvt.s32.f32 %v2263
        %v2280 = vcvt.s32.f32 %v2264
        %v2281 = vcvt.s32.f32 %v2265
        %v2282 = vcvt.s32.f32 %v2266
        %v2283 = vcvt.s32.f32 %v2267
        %v2284 = vcvt.s32.f32 %v2268
        %v2285 = vcvt.s32.f32 %v2269
        %v2286 = vcvt.s32.f32 %v2270
        %v2287 = vcvt.s32.f32 %v2271
        %v2288 = vcvt.s32.f32 %v2272
        %v2289 = vcvt.s32.f32 %v2273
        %v2290 = vcvt.s32.f32 %v2274
        %v2291 = vcvt.s32.f32 %v2275
        %v2292 = vcvt.s32.f32 %v2276
        %v2293 = vcvt.s32.f32 %v2277
        %s2294 = scalar_lea.vmem [#allocation3], 896
        %v2295 = vld [vmem:[%s2294] sm:$0xff]
        %v2296 = vld [vmem:[%s2294 + $0x8] sm:$0xff]
        %v2297 = vld [vmem:[%s2294 + $0x10] sm:$0xff]
        %v2298 = vld [vmem:[%s2294 + $0x18] sm:$0xff]
        %v2299 = vld [vmem:[%s2294 + $0x20] sm:$0xff]
        %v2300 = vld [vmem:[%s2294 + $0x28] sm:$0xff]
        %v2301 = vld [vmem:[%s2294 + $0x30] sm:$0xff]
        %v2302 = vld [vmem:[%s2294 + $0x38] sm:$0xff]
        %v2303 = vld [vmem:[%s2294 + $0x40] sm:$0xff]
        %v2304 = vld [vmem:[%s2294 + $0x48] sm:$0xff]
        %v2305 = vld [vmem:[%s2294 + $0x50] sm:$0xff]
        %v2306 = vld [vmem:[%s2294 + $0x58] sm:$0xff]
        %v2307 = vld [vmem:[%s2294 + $0x60] sm:$0xff]
        %v2308 = vld [vmem:[%s2294 + $0x68] sm:$0xff]
        %v2309 = vld [vmem:[%s2294 + $0x70] sm:$0xff]
        %v2310 = vld [vmem:[%s2294 + $0x78] sm:$0xff]
        %2311 = vmatprep.subr.mxu0 0.0
        %2312 = vmatpush1.msra.mxu0 %v2310
        %2313 = vmatprep.subr.mxu0 0.0
        %2314 = vmatpush1.msra.mxu0 %v2309
        %2315 = vmatprep.subr.mxu0 0.0
        %2316 = vmatpush1.msra.mxu0 %v2308
        %2317 = vmatprep.subr.mxu0 0.0
        %2318 = vmatpush1.msra.mxu0 %v2307
        %2319 = vmatprep.subr.mxu0 0.0
        %2320 = vmatpush1.msra.mxu0 %v2306
        %2321 = vmatprep.subr.mxu0 0.0
        %2322 = vmatpush1.msra.mxu0 %v2305
        %2323 = vmatprep.subr.mxu0 0.0
        %2324 = vmatpush1.msra.mxu0 %v2304
        %2325 = vmatprep.subr.mxu0 0.0
        %2326 = vmatpush1.msra.mxu0 %v2303
        %2327 = vmatprep.subr.mxu0 0.0
        %2328 = vmatpush1.msra.mxu0 %v2302
        %2329 = vmatprep.subr.mxu0 0.0
        %2330 = vmatpush1.msra.mxu0 %v2301
        %2331 = vmatprep.subr.mxu0 0.0
        %2332 = vmatpush1.msra.mxu0 %v2300
        %2333 = vmatprep.subr.mxu0 0.0
        %2334 = vmatpush1.msra.mxu0 %v2299
        %2335 = vmatprep.subr.mxu0 0.0
        %2336 = vmatpush1.msra.mxu0 %v2298
        %2337 = vmatprep.subr.mxu0 0.0
        %2338 = vmatpush1.msra.mxu0 %v2297
        %2339 = vmatprep.subr.mxu0 0.0
        %2340 = vmatpush1.msra.mxu0 %v2296
        %2341 = vmatprep.subr.mxu0 0.0
        %2342 = vmatpush1.msra.mxu0 %v2295
        %2343 = vmatprep.subr.mxu0 0.0
        %2344 = vmatpush2.msra.mxu0 0.0
        %2345 = vmatprep.subr.mxu0 0.0
        %2346 = vmatpush2.msra.mxu0 0.0
        %2347 = vmatprep.subr.mxu0 0.0
        %2348 = vmatpush2.msra.mxu0 0.0
        %2349 = vmatprep.subr.mxu0 0.0
        %2350 = vmatpush2.msra.mxu0 0.0
        %2351 = vmatprep.subr.mxu0 0.0
        %2352 = vmatpush2.msra.mxu0 0.0
        %2353 = vmatprep.subr.mxu0 0.0
        %2354 = vmatpush2.msra.mxu0 0.0
        %2355 = vmatprep.subr.mxu0 0.0
        %2356 = vmatpush2.msra.mxu0 0.0
        %2357 = vmatprep.subr.mxu0 0.0
        %2358 = vmatpush2.msra.mxu0 0.0
        %2359 = vmatprep.subr.mxu0 0.0
        %2360 = vmatpush2.msra.mxu0 0.0
        %2361 = vmatprep.subr.mxu0 0.0
        %2362 = vmatpush2.msra.mxu0 0.0
        %2363 = vmatprep.subr.mxu0 0.0
        %2364 = vmatpush2.msra.mxu0 0.0
        %2365 = vmatprep.subr.mxu0 0.0
        %2366 = vmatpush2.msra.mxu0 0.0
        %2367 = vmatprep.subr.mxu0 0.0
        %2368 = vmatpush2.msra.mxu0 0.0
        %2369 = vmatprep.subr.mxu0 0.0
        %2370 = vmatpush2.msra.mxu0 0.0
        %2371 = vmatprep.subr.mxu0 0.0
        %2372 = vmatpush2.msra.mxu0 0.0
        %2373 = vmatprep.subr.mxu0 0.0
        %2374 = vmatpush2.msra.mxu0 0.0
        %2375 = vmatprep.mubr.f32.mxu0 0.0
        %2376 = vmatmul.mubr.f32.gmra.mxu0 %v2278
        %v2377 = vpop.f32.mrf.mxu0
        %v2378 = vadd.f32 0.0, %v2377
        %v2379 = vpop.f32.mrf.mxu0
        %2380 = vmatprep.mubr.f32.mxu0 0.0
        %2381 = vmatmul.mubr.f32.gmra.mxu0 %v2279
        %v2382 = vpop.f32.mrf.mxu0
        %v2383 = vadd.f32 0.0, %v2382
        %v2384 = vpop.f32.mrf.mxu0
        %2385 = vmatprep.mubr.f32.mxu0 0.0
        %2386 = vmatmul.mubr.f32.gmra.mxu0 %v2280
        %v2387 = vpop.f32.mrf.mxu0
        %v2388 = vadd.f32 0.0, %v2387
        %v2389 = vpop.f32.mrf.mxu0
        %2390 = vmatprep.mubr.f32.mxu0 0.0
        %2391 = vmatmul.mubr.f32.gmra.mxu0 %v2281
        %v2392 = vpop.f32.mrf.mxu0
        %v2393 = vadd.f32 0.0, %v2392
        %v2394 = vpop.f32.mrf.mxu0
        %2395 = vmatprep.mubr.f32.mxu0 0.0
        %2396 = vmatmul.mubr.f32.gmra.mxu0 %v2282
        %v2397 = vpop.f32.mrf.mxu0
        %v2398 = vadd.f32 0.0, %v2397
        %v2399 = vpop.f32.mrf.mxu0
        %2400 = vmatprep.mubr.f32.mxu0 0.0
        %2401 = vmatmul.mubr.f32.gmra.mxu0 %v2283
        %v2402 = vpop.f32.mrf.mxu0
        %v2403 = vadd.f32 0.0, %v2402
        %v2404 = vpop.f32.mrf.mxu0
        %2405 = vmatprep.mubr.f32.mxu0 0.0
        %2406 = vmatmul.mubr.f32.gmra.mxu0 %v2284
        %v2407 = vpop.f32.mrf.mxu0
        %v2408 = vadd.f32 0.0, %v2407
        %v2409 = vpop.f32.mrf.mxu0
        %2410 = vmatprep.mubr.f32.mxu0 0.0
        %2411 = vmatmul.mubr.f32.gmra.mxu0 %v2285
        %v2412 = vpop.f32.mrf.mxu0
        %v2413 = vadd.f32 0.0, %v2412
        %v2414 = vpop.f32.mrf.mxu0
        %2415 = vmatprep.mubr.f32.mxu0 0.0
        %2416 = vmatmul.mubr.f32.gmra.mxu0 %v2286
        %v2417 = vpop.f32.mrf.mxu0
        %v2418 = vadd.f32 0.0, %v2417
        %v2419 = vpop.f32.mrf.mxu0
        %2420 = vmatprep.mubr.f32.mxu0 0.0
        %2421 = vmatmul.mubr.f32.gmra.mxu0 %v2287
        %v2422 = vpop.f32.mrf.mxu0
        %v2423 = vadd.f32 0.0, %v2422
        %v2424 = vpop.f32.mrf.mxu0
        %2425 = vmatprep.mubr.f32.mxu0 0.0
        %2426 = vmatmul.mubr.f32.gmra.mxu0 %v2288
        %v2427 = vpop.f32.mrf.mxu0
        %v2428 = vadd.f32 0.0, %v2427
        %v2429 = vpop.f32.mrf.mxu0
        %2430 = vmatprep.mubr.f32.mxu0 0.0
        %2431 = vmatmul.mubr.f32.gmra.mxu0 %v2289
        %v2432 = vpop.f32.mrf.mxu0
        %v2433 = vadd.f32 0.0, %v2432
        %v2434 = vpop.f32.mrf.mxu0
        %2435 = vmatprep.mubr.f32.mxu0 0.0
        %2436 = vmatmul.mubr.f32.gmra.mxu0 %v2290
        %v2437 = vpop.f32.mrf.mxu0
        %v2438 = vadd.f32 0.0, %v2437
        %v2439 = vpop.f32.mrf.mxu0
        %2440 = vmatprep.mubr.f32.mxu0 0.0
        %2441 = vmatmul.mubr.f32.gmra.mxu0 %v2291
        %v2442 = vpop.f32.mrf.mxu0
        %v2443 = vadd.f32 0.0, %v2442
        %v2444 = vpop.f32.mrf.mxu0
        %2445 = vmatprep.mubr.f32.mxu0 0.0
        %2446 = vmatmul.mubr.f32.gmra.mxu0 %v2292
        %v2447 = vpop.f32.mrf.mxu0
        %v2448 = vadd.f32 0.0, %v2447
        %v2449 = vpop.f32.mrf.mxu0
        %2450 = vmatprep.mubr.f32.mxu0 0.0
        %2451 = vmatmul.mubr.f32.gmra.mxu0 %v2293
        %v2452 = vpop.f32.mrf.mxu0
        %v2453 = vadd.f32 0.0, %v2452
        %v2454 = vpop.f32.mrf.mxu0
        %2455 = vdwg.mxu0
        %v2456 = vadd.f32 %v2182, %v2378
        %v2457 = vadd.f32 %v2183, %v2383
        %v2458 = vadd.f32 %v2184, %v2388
        %v2459 = vadd.f32 %v2185, %v2393
        %v2460 = vadd.f32 %v2186, %v2398
        %v2461 = vadd.f32 %v2187, %v2403
        %v2462 = vadd.f32 %v2188, %v2408
        %v2463 = vadd.f32 %v2189, %v2413
        %v2464 = vadd.f32 %v2190, %v2418
        %v2465 = vadd.f32 %v2191, %v2423
        %v2466 = vadd.f32 %v2192, %v2428
        %v2467 = vadd.f32 %v2193, %v2433
        %v2468 = vadd.f32 %v2194, %v2438
        %v2469 = vadd.f32 %v2195, %v2443
        %v2470 = vadd.f32 %v2196, %v2448
        %v2471 = vadd.f32 %v2197, %v2453
        %vm2472 = vcmp.ge.s32.totalorder %v312, 64
        %vm2473 = vcmp.lt.s32.totalorder %v312, 80
        %vm2474 = vmand %vm2472, %vm2473
        %v2475 = vsel %vm2474, 1, 0
        %v2476 = vcvt.s32.f32 %v2475
        %vm2477 = vcmp.eq.s32.totalorder %v312, 80
        %v2478 = vsel %vm2477, 1, 0
        %v2479 = vcvt.s32.f32 %v2478
        %v2480 = vmul.f32 %v2456, %v2476
        %v2481 = vmul.f32 %v2457, %v2476
        %v2482 = vmul.f32 %v2458, %v2476
        %v2483 = vmul.f32 %v2459, %v2476
        %v2484 = vmul.f32 %v2460, %v2476
        %v2485 = vmul.f32 %v2461, %v2476
        %v2486 = vmul.f32 %v2462, %v2476
        %v2487 = vmul.f32 %v2463, %v2476
        %v2488 = vmul.f32 %v2464, %v2476
        %v2489 = vmul.f32 %v2465, %v2476
        %v2490 = vmul.f32 %v2466, %v2476
        %v2491 = vmul.f32 %v2467, %v2476
        %v2492 = vmul.f32 %v2468, %v2476
        %v2493 = vmul.f32 %v2469, %v2476
        %v2494 = vmul.f32 %v2470, %v2476
        %v2495 = vmul.f32 %v2471, %v2476
        %v2496 = vmul.f32 %v2480, %v2480
        %v2497 = vmul.f32 %v2481, %v2481
        %v2498 = vmul.f32 %v2482, %v2482
        %v2499 = vmul.f32 %v2483, %v2483
        %v2500 = vmul.f32 %v2484, %v2484
        %v2501 = vmul.f32 %v2485, %v2485
        %v2502 = vmul.f32 %v2486, %v2486
        %v2503 = vmul.f32 %v2487, %v2487
        %v2504 = vmul.f32 %v2488, %v2488
        %v2505 = vmul.f32 %v2489, %v2489
        %v2506 = vmul.f32 %v2490, %v2490
        %v2507 = vmul.f32 %v2491, %v2491
        %v2508 = vmul.f32 %v2492, %v2492
        %v2509 = vmul.f32 %v2493, %v2493
        %v2510 = vmul.f32 %v2494, %v2494
        %v2511 = vmul.f32 %v2495, %v2495
        %v2512 = vmul.f32 %v2456, %v2479
        %v2513 = vmul.f32 %v2457, %v2479
        %v2514 = vmul.f32 %v2458, %v2479
        %v2515 = vmul.f32 %v2459, %v2479
        %v2516 = vmul.f32 %v2460, %v2479
        %v2517 = vmul.f32 %v2461, %v2479
        %v2518 = vmul.f32 %v2462, %v2479
        %v2519 = vmul.f32 %v2463, %v2479
        %v2520 = vmul.f32 %v2464, %v2479
        %v2521 = vmul.f32 %v2465, %v2479
        %v2522 = vmul.f32 %v2466, %v2479
        %v2523 = vmul.f32 %v2467, %v2479
        %v2524 = vmul.f32 %v2468, %v2479
        %v2525 = vmul.f32 %v2469, %v2479
        %v2526 = vmul.f32 %v2470, %v2479
        %v2527 = vmul.f32 %v2471, %v2479
        %v2528 = vsub.f32 %v2496, %v2512
        %v2529 = vsub.f32 %v2497, %v2513
        %v2530 = vsub.f32 %v2498, %v2514
        %v2531 = vsub.f32 %v2499, %v2515
        %v2532 = vsub.f32 %v2500, %v2516
        %v2533 = vsub.f32 %v2501, %v2517
        %v2534 = vsub.f32 %v2502, %v2518
        %v2535 = vsub.f32 %v2503, %v2519
        %v2536 = vsub.f32 %v2504, %v2520
        %v2537 = vsub.f32 %v2505, %v2521
        %v2538 = vsub.f32 %v2506, %v2522
        %v2539 = vsub.f32 %v2507, %v2523
        %v2540 = vsub.f32 %v2508, %v2524
        %v2541 = vsub.f32 %v2509, %v2525
        %v2542 = vsub.f32 %v2510, %v2526
        %v2543 = vsub.f32 %v2511, %v2527
        %v2544 = vmul.f32 %v2528, 0.5
        %v2545 = vmul.f32 %v2529, 0.5
        %v2546 = vmul.f32 %v2530, 0.5
        %v2547 = vmul.f32 %v2531, 0.5
        %v2548 = vmul.f32 %v2532, 0.5
        %v2549 = vmul.f32 %v2533, 0.5
        %v2550 = vmul.f32 %v2534, 0.5
        %v2551 = vmul.f32 %v2535, 0.5
        %v2552 = vmul.f32 %v2536, 0.5
        %v2553 = vmul.f32 %v2537, 0.5
        %v2554 = vmul.f32 %v2538, 0.5
        %v2555 = vmul.f32 %v2539, 0.5
        %v2556 = vmul.f32 %v2540, 0.5
        %v2557 = vmul.f32 %v2541, 0.5
        %v2558 = vmul.f32 %v2542, 0.5
        %v2559 = vmul.f32 %v2543, 0.5
        %v2560 = vld [vmem:[%s2] sm:$0x1]
        %v2562 = vlaneseq
        %v2563 = vshrl.u32 %v2562, 7
        %v2564 = vsub.s32 0, %v2563
        %v2565 = vrot.slane %v2560, %v2564
        %v2567 = vadd.f32 %v2456, %v2565
        %v2568 = vadd.f32 %v2457, %v2565
        %v2569 = vadd.f32 %v2458, %v2565
        %v2570 = vadd.f32 %v2459, %v2565
        %v2571 = vadd.f32 %v2460, %v2565
        %v2572 = vadd.f32 %v2461, %v2565
        %v2573 = vadd.f32 %v2462, %v2565
        %v2574 = vadd.f32 %v2463, %v2565
        %v2575 = vadd.f32 %v2464, %v2565
        %v2576 = vadd.f32 %v2465, %v2565
        %v2577 = vadd.f32 %v2466, %v2565
        %v2578 = vadd.f32 %v2467, %v2565
        %v2579 = vadd.f32 %v2468, %v2565
        %v2580 = vadd.f32 %v2469, %v2565
        %v2581 = vadd.f32 %v2470, %v2565
        %v2582 = vadd.f32 %v2471, %v2565
        %v2583 = vmax.f32 %v2567, 0.0
        %v2584 = vmax.f32 %v2568, 0.0
        %v2585 = vmax.f32 %v2569, 0.0
        %v2586 = vmax.f32 %v2570, 0.0
        %v2587 = vmax.f32 %v2571, 0.0
        %v2588 = vmax.f32 %v2572, 0.0
        %v2589 = vmax.f32 %v2573, 0.0
        %v2590 = vmax.f32 %v2574, 0.0
        %v2591 = vmax.f32 %v2575, 0.0
        %v2592 = vmax.f32 %v2576, 0.0
        %v2593 = vmax.f32 %v2577, 0.0
        %v2594 = vmax.f32 %v2578, 0.0
        %v2595 = vmax.f32 %v2579, 0.0
        %v2596 = vmax.f32 %v2580, 0.0
        %v2597 = vmax.f32 %v2581, 0.0
        %v2598 = vmax.f32 %v2582, 0.0
        %v2599 = vld [vmem:[%s3] sm:$0xff]
        %v2600 = vld [vmem:[%s3 + $0x8] sm:$0xff]
        %v2601 = vld [vmem:[%s3 + $0x10] sm:$0xff]
        %v2602 = vld [vmem:[%s3 + $0x18] sm:$0xff]
        %v2603 = vld [vmem:[%s3 + $0x20] sm:$0xff]
        %v2604 = vld [vmem:[%s3 + $0x28] sm:$0xff]
        %v2605 = vld [vmem:[%s3 + $0x30] sm:$0xff]
        %v2606 = vld [vmem:[%s3 + $0x38] sm:$0xff]
        %v2607 = vld [vmem:[%s3 + $0x40] sm:$0xff]
        %v2608 = vld [vmem:[%s3 + $0x48] sm:$0xff]
        %v2609 = vld [vmem:[%s3 + $0x50] sm:$0xff]
        %v2610 = vld [vmem:[%s3 + $0x58] sm:$0xff]
        %v2611 = vld [vmem:[%s3 + $0x60] sm:$0xff]
        %v2612 = vld [vmem:[%s3 + $0x68] sm:$0xff]
        %v2613 = vld [vmem:[%s3 + $0x70] sm:$0xff]
        %v2614 = vld [vmem:[%s3 + $0x78] sm:$0xff]
        %v2615 = vld [vmem:[%s4] sm:$0x1]
        %v2617 = vlaneseq
        %v2618 = vshrl.u32 %v2617, 7
        %v2619 = vsub.s32 0, %v2618
        %v2620 = vrot.slane %v2615, %v2619
        %2622 = vmatprep.subr.mxu0 0.0
        %2623 = vmatpush1.msra.mxu0 %v2614
        %2624 = vmatprep.subr.mxu0 0.0
        %2625 = vmatpush1.msra.mxu0 %v2613
        %2626 = vmatprep.subr.mxu0 0.0
        %2627 = vmatpush1.msra.mxu0 %v2612
        %2628 = vmatprep.subr.mxu0 0.0
        %2629 = vmatpush1.msra.mxu0 %v2611
        %2630 = vmatprep.subr.mxu0 0.0
        %2631 = vmatpush1.msra.mxu0 %v2610
        %2632 = vmatprep.subr.mxu0 0.0
        %2633 = vmatpush1.msra.mxu0 %v2609
        %2634 = vmatprep.subr.mxu0 0.0
        %2635 = vmatpush1.msra.mxu0 %v2608
        %2636 = vmatprep.subr.mxu0 0.0
        %2637 = vmatpush1.msra.mxu0 %v2607
        %2638 = vmatprep.subr.mxu0 0.0
        %2639 = vmatpush1.msra.mxu0 %v2606
        %2640 = vmatprep.subr.mxu0 0.0
        %2641 = vmatpush1.msra.mxu0 %v2605
        %2642 = vmatprep.subr.mxu0 0.0
        %2643 = vmatpush1.msra.mxu0 %v2604
        %2644 = vmatprep.subr.mxu0 0.0
        %2645 = vmatpush1.msra.mxu0 %v2603
        %2646 = vmatprep.subr.mxu0 0.0
        %2647 = vmatpush1.msra.mxu0 %v2602
        %2648 = vmatprep.subr.mxu0 0.0
        %2649 = vmatpush1.msra.mxu0 %v2601
        %2650 = vmatprep.subr.mxu0 0.0
        %2651 = vmatpush1.msra.mxu0 %v2600
        %2652 = vmatprep.subr.mxu0 0.0
        %2653 = vmatpush1.msra.mxu0 %v2599
        %2654 = vmatprep.subr.mxu0 0.0
        %2655 = vmatpush2.msra.mxu0 0.0
        %2656 = vmatprep.subr.mxu0 0.0
        %2657 = vmatpush2.msra.mxu0 0.0
        %2658 = vmatprep.subr.mxu0 0.0
        %2659 = vmatpush2.msra.mxu0 0.0
        %2660 = vmatprep.subr.mxu0 0.0
        %2661 = vmatpush2.msra.mxu0 0.0
        %2662 = vmatprep.subr.mxu0 0.0
        %2663 = vmatpush2.msra.mxu0 0.0
        %2664 = vmatprep.subr.mxu0 0.0
        %2665 = vmatpush2.msra.mxu0 0.0
        %2666 = vmatprep.subr.mxu0 0.0
        %2667 = vmatpush2.msra.mxu0 0.0
        %2668 = vmatprep.subr.mxu0 0.0
        %2669 = vmatpush2.msra.mxu0 0.0
        %2670 = vmatprep.subr.mxu0 0.0
        %2671 = vmatpush2.msra.mxu0 0.0
        %2672 = vmatprep.subr.mxu0 0.0
        %2673 = vmatpush2.msra.mxu0 0.0
        %2674 = vmatprep.subr.mxu0 0.0
        %2675 = vmatpush2.msra.mxu0 0.0
        %2676 = vmatprep.subr.mxu0 0.0
        %2677 = vmatpush2.msra.mxu0 0.0
        %2678 = vmatprep.subr.mxu0 0.0
        %2679 = vmatpush2.msra.mxu0 0.0
        %2680 = vmatprep.subr.mxu0 0.0
        %2681 = vmatpush2.msra.mxu0 0.0
        %2682 = vmatprep.subr.mxu0 0.0
        %2683 = vmatpush2.msra.mxu0 0.0
        %2684 = vmatprep.subr.mxu0 0.0
        %2685 = vmatpush2.msra.mxu0 0.0
        %2686 = vmatprep.mubr.f32.mxu0 0.0
        %2687 = vmatmul.mubr.f32.gmra.mxu0 %v2583
        %v2688 = vpop.f32.mrf.mxu0
        %v2689 = vadd.f32 %v2620, %v2688
        %v2690 = vpop.f32.mrf.mxu0
        %2691 = vmatprep.mubr.f32.mxu0 0.0
        %2692 = vmatmul.mubr.f32.gmra.mxu0 %v2584
        %v2693 = vpop.f32.mrf.mxu0
        %v2694 = vadd.f32 %v2620, %v2693
        %v2695 = vpop.f32.mrf.mxu0
        %2696 = vmatprep.mubr.f32.mxu0 0.0
        %2697 = vmatmul.mubr.f32.gmra.mxu0 %v2585
        %v2698 = vpop.f32.mrf.mxu0
        %v2699 = vadd.f32 %v2620, %v2698
        %v2700 = vpop.f32.mrf.mxu0
        %2701 = vmatprep.mubr.f32.mxu0 0.0
        %2702 = vmatmul.mubr.f32.gmra.mxu0 %v2586
        %v2703 = vpop.f32.mrf.mxu0
        %v2704 = vadd.f32 %v2620, %v2703
        %v2705 = vpop.f32.mrf.mxu0
        %2706 = vmatprep.mubr.f32.mxu0 0.0
        %2707 = vmatmul.mubr.f32.gmra.mxu0 %v2587
        %v2708 = vpop.f32.mrf.mxu0
        %v2709 = vadd.f32 %v2620, %v2708
        %v2710 = vpop.f32.mrf.mxu0
        %2711 = vmatprep.mubr.f32.mxu0 0.0
        %2712 = vmatmul.mubr.f32.gmra.mxu0 %v2588
        %v2713 = vpop.f32.mrf.mxu0
        %v2714 = vadd.f32 %v2620, %v2713
        %v2715 = vpop.f32.mrf.mxu0
        %2716 = vmatprep.mubr.f32.mxu0 0.0
        %2717 = vmatmul.mubr.f32.gmra.mxu0 %v2589
        %v2718 = vpop.f32.mrf.mxu0
        %v2719 = vadd.f32 %v2620, %v2718
        %v2720 = vpop.f32.mrf.mxu0
        %2721 = vmatprep.mubr.f32.mxu0 0.0
        %2722 = vmatmul.mubr.f32.gmra.mxu0 %v2590
        %v2723 = vpop.f32.mrf.mxu0
        %v2724 = vadd.f32 %v2620, %v2723
        %v2725 = vpop.f32.mrf.mxu0
        %2726 = vmatprep.mubr.f32.mxu0 0.0
        %2727 = vmatmul.mubr.f32.gmra.mxu0 %v2591
        %v2728 = vpop.f32.mrf.mxu0
        %v2729 = vadd.f32 %v2620, %v2728
        %v2730 = vpop.f32.mrf.mxu0
        %2731 = vmatprep.mubr.f32.mxu0 0.0
        %2732 = vmatmul.mubr.f32.gmra.mxu0 %v2592
        %v2733 = vpop.f32.mrf.mxu0
        %v2734 = vadd.f32 %v2620, %v2733
        %v2735 = vpop.f32.mrf.mxu0
        %2736 = vmatprep.mubr.f32.mxu0 0.0
        %2737 = vmatmul.mubr.f32.gmra.mxu0 %v2593
        %v2738 = vpop.f32.mrf.mxu0
        %v2739 = vadd.f32 %v2620, %v2738
        %v2740 = vpop.f32.mrf.mxu0
        %2741 = vmatprep.mubr.f32.mxu0 0.0
        %2742 = vmatmul.mubr.f32.gmra.mxu0 %v2594
        %v2743 = vpop.f32.mrf.mxu0
        %v2744 = vadd.f32 %v2620, %v2743
        %v2745 = vpop.f32.mrf.mxu0
        %2746 = vmatprep.mubr.f32.mxu0 0.0
        %2747 = vmatmul.mubr.f32.gmra.mxu0 %v2595
        %v2748 = vpop.f32.mrf.mxu0
        %v2749 = vadd.f32 %v2620, %v2748
        %v2750 = vpop.f32.mrf.mxu0
        %2751 = vmatprep.mubr.f32.mxu0 0.0
        %2752 = vmatmul.mubr.f32.gmra.mxu0 %v2596
        %v2753 = vpop.f32.mrf.mxu0
        %v2754 = vadd.f32 %v2620, %v2753
        %v2755 = vpop.f32.mrf.mxu0
        %2756 = vmatprep.mubr.f32.mxu0 0.0
        %2757 = vmatmul.mubr.f32.gmra.mxu0 %v2597
        %v2758 = vpop.f32.mrf.mxu0
        %v2759 = vadd.f32 %v2620, %v2758
        %v2760 = vpop.f32.mrf.mxu0
        %2761 = vmatprep.mubr.f32.mxu0 0.0
        %2762 = vmatmul.mubr.f32.gmra.mxu0 %v2598
        %v2763 = vpop.f32.mrf.mxu0
        %v2764 = vadd.f32 %v2620, %v2763
        %v2765 = vpop.f32.mrf.mxu0
        %2766 = vdwg.mxu0
        %v2767 = vmax.f32 %v2689, 0.0
        %v2768 = vmax.f32 %v2694, 0.0
        %v2769 = vmax.f32 %v2699, 0.0
        %v2770 = vmax.f32 %v2704, 0.0
        %v2771 = vmax.f32 %v2709, 0.0
        %v2772 = vmax.f32 %v2714, 0.0
        %v2773 = vmax.f32 %v2719, 0.0
        %v2774 = vmax.f32 %v2724, 0.0
        %v2775 = vmax.f32 %v2729, 0.0
        %v2776 = vmax.f32 %v2734, 0.0
        %v2777 = vmax.f32 %v2739, 0.0
        %v2778 = vmax.f32 %v2744, 0.0
        %v2779 = vmax.f32 %v2749, 0.0
        %v2780 = vmax.f32 %v2754, 0.0
        %v2781 = vmax.f32 %v2759, 0.0
        %v2782 = vmax.f32 %v2764, 0.0
        %v2783 = vld [vmem:[%s5] sm:$0x1]
        %v2785 = vlaneseq
        %v2786 = vshrl.u32 %v2785, 7
        %v2787 = vsub.s32 0, %v2786
        %v2788 = vrot.slane %v2783, %v2787
        %v2790 = vmul.f32 %v2767, %v2788
        %v2791 = vmul.f32 %v2768, %v2788
        %v2792 = vmul.f32 %v2769, %v2788
        %v2793 = vmul.f32 %v2770, %v2788
        %v2794 = vmul.f32 %v2771, %v2788
        %v2795 = vmul.f32 %v2772, %v2788
        %v2796 = vmul.f32 %v2773, %v2788
        %v2797 = vmul.f32 %v2774, %v2788
        %v2798 = vmul.f32 %v2775, %v2788
        %v2799 = vmul.f32 %v2776, %v2788
        %v2800 = vmul.f32 %v2777, %v2788
        %v2801 = vmul.f32 %v2778, %v2788
        %v2802 = vmul.f32 %v2779, %v2788
        %v2803 = vmul.f32 %v2780, %v2788
        %v2804 = vmul.f32 %v2781, %v2788
        %v2805 = vmul.f32 %v2782, %v2788
        %v2806 = vadd.f32 %v2544, %v2790
        %v2807 = vadd.f32 %v2545, %v2791
        %v2808 = vadd.f32 %v2546, %v2792
        %v2809 = vadd.f32 %v2547, %v2793
        %v2810 = vadd.f32 %v2548, %v2794
        %v2811 = vadd.f32 %v2549, %v2795
        %v2812 = vadd.f32 %v2550, %v2796
        %v2813 = vadd.f32 %v2551, %v2797
        %v2814 = vadd.f32 %v2552, %v2798
        %v2815 = vadd.f32 %v2553, %v2799
        %v2816 = vadd.f32 %v2554, %v2800
        %v2817 = vadd.f32 %v2555, %v2801
        %v2818 = vadd.f32 %v2556, %v2802
        %v2819 = vadd.f32 %v2557, %v2803
        %v2820 = vadd.f32 %v2558, %v2804
        %v2821 = vadd.f32 %v2559, %v2805
        %v2822 = vld [vmem:[#allocation2] sm:$0x1]
        %2824 = vset.pattern.permute.xlu0 0
        %2825 = vperm.xlu0 %2824, %v2822
        %v2826 = vpop.permute.xlu0 %2825
        %v2828 = vlaneseq
        %v2829 = vshrl.u32 %v2828, 7
        %v2830 = vsub.s32 0, %v2829
        %v2831 = vrot.slane %v2826, %v2830
        %2832 = vmatprep.subr.mxu0 0.0
        %2833 = vmatpush1.xpose.msra.mxu0 %v2821
        %2834 = vmatprep.subr.mxu0 0.0
        %2835 = vmatpush1.xpose.msra.mxu0 %v2820
        %2836 = vmatprep.subr.mxu0 0.0
        %2837 = vmatpush1.xpose.msra.mxu0 %v2819
        %2838 = vmatprep.subr.mxu0 0.0
        %2839 = vmatpush1.xpose.msra.mxu0 %v2818
        %2840 = vmatprep.subr.mxu0 0.0
        %2841 = vmatpush1.xpose.msra.mxu0 %v2817
        %2842 = vmatprep.subr.mxu0 0.0
        %2843 = vmatpush1.xpose.msra.mxu0 %v2816
        %2844 = vmatprep.subr.mxu0 0.0
        %2845 = vmatpush1.xpose.msra.mxu0 %v2815
        %2846 = vmatprep.subr.mxu0 0.0
        %2847 = vmatpush1.xpose.msra.mxu0 %v2814
        %2848 = vmatprep.subr.mxu0 0.0
        %2849 = vmatpush1.xpose.msra.mxu0 %v2813
        %2850 = vmatprep.subr.mxu0 0.0
        %2851 = vmatpush1.xpose.msra.mxu0 %v2812
        %2852 = vmatprep.subr.mxu0 0.0
        %2853 = vmatpush1.xpose.msra.mxu0 %v2811
        %2854 = vmatprep.subr.mxu0 0.0
        %2855 = vmatpush1.xpose.msra.mxu0 %v2810
        %2856 = vmatprep.subr.mxu0 0.0
        %2857 = vmatpush1.xpose.msra.mxu0 %v2809
        %2858 = vmatprep.subr.mxu0 0.0
        %2859 = vmatpush1.xpose.msra.mxu0 %v2808
        %2860 = vmatprep.subr.mxu0 0.0
        %2861 = vmatpush1.xpose.msra.mxu0 %v2807
        %2862 = vmatprep.subr.mxu0 0.0
        %2863 = vmatpush1.xpose.msra.mxu0 %v2806
        %2864 = vmatprep.subr.mxu0 0.0
        %2865 = vmatpush2.xpose.msra.mxu0 0.0
        %2866 = vmatprep.subr.mxu0 0.0
        %2867 = vmatpush2.xpose.msra.mxu0 0.0
        %2868 = vmatprep.subr.mxu0 0.0
        %2869 = vmatpush2.xpose.msra.mxu0 0.0
        %2870 = vmatprep.subr.mxu0 0.0
        %2871 = vmatpush2.xpose.msra.mxu0 0.0
        %2872 = vmatprep.subr.mxu0 0.0
        %2873 = vmatpush2.xpose.msra.mxu0 0.0
        %2874 = vmatprep.subr.mxu0 0.0
        %2875 = vmatpush2.xpose.msra.mxu0 0.0
        %2876 = vmatprep.subr.mxu0 0.0
        %2877 = vmatpush2.xpose.msra.mxu0 0.0
        %2878 = vmatprep.subr.mxu0 0.0
        %2879 = vmatpush2.xpose.msra.mxu0 0.0
        %2880 = vmatprep.subr.mxu0 0.0
        %2881 = vmatpush2.xpose.msra.mxu0 0.0
        %2882 = vmatprep.subr.mxu0 0.0
        %2883 = vmatpush2.xpose.msra.mxu0 0.0
        %2884 = vmatprep.subr.mxu0 0.0
        %2885 = vmatpush2.xpose.msra.mxu0 0.0
        %2886 = vmatprep.subr.mxu0 0.0
        %2887 = vmatpush2.xpose.msra.mxu0 0.0
        %2888 = vmatprep.subr.mxu0 0.0
        %2889 = vmatpush2.xpose.msra.mxu0 0.0
        %2890 = vmatprep.subr.mxu0 0.0
        %2891 = vmatpush2.xpose.msra.mxu0 0.0
        %2892 = vmatprep.subr.mxu0 0.0
        %2893 = vmatpush2.xpose.msra.mxu0 0.0
        %2894 = vmatprep.subr.mxu0 0.0
        %2895 = vmatpush2.xpose.msra.mxu0 0.0
        %2896 = vmatprep.mubr.f32.mxu0 0.0
        %2897 = vmatmul.mubr.f32.gmra.mxu0 1.0
        %v2898 = vpop.f32.mrf.mxu0
        %v2899 = vadd.f32 %v2831, %v2898
        %v2900 = vpop.f32.mrf.mxu0
        %2901 = vdwg.mxu0
        %2902 = vst [vmem:[%s288] sm:$0x1] %v2899
        %s2903 = sand.u32 %s184, 1
        %s2904 = scalar_lea.sflag [#allocation5], %s2903
        %s2905 = sand.u32 %s184, 1
        %s2906 = scalar_lea.vmem [#allocation6], %s2905
        // Predicated region
        $region53: #{tpu_custom_call.1} parent=47 // pred_check
          %p2907 = pneg %p194
        $region54: #{tpu_custom_call.1} parent=47 // pred_check_branch
          %2909 = sbr.rel (%p2907) target = $region56
        $region55: #{tpu_custom_call.1} parent=47 // pred_region
          %s2911 = ssub.s32 16, 16
          %2912 = vsyncadd %s2904, %s2911
          %s2913 = smul.addr %s24, 16
          %s2914 = scalar_lea.hbm %s7, %s2913
          %s2916 = sshll.u32 %s2906, 4
          %s2917 = int_to_ptr.vmem [resolvable:$true] %s2916
          %2919 = dma.vmem_to_hbm [thread:$0]  %s2917, 16, %s2914, %s2904
        $region56: #{tpu_custom_call.1} parent=47 // pred_fallthru
          _
      $region48: #{tpu_custom_call.1} parent=5 // pred_fallthru
        _
      %p2920 = scmp.le.s32.totalorder 2, %s19
      // Predicated region
      $region57: #{tpu_custom_call.1} parent=5 // pred_check
        %p2921 = pneg %p2920
      $region58: #{tpu_custom_call.1} parent=5 // pred_check_branch
        %2923 = sbr.rel (%p2921) target = $region60
      $region59: #{tpu_custom_call.1} parent=5 // pred_region
        %s2924 = ssub.s32 %s19, 2
        // Predicated region
        $region61: #{tpu_custom_call.1} parent=59 // pred_check
          %p2925 = pneg %p200
        $region62: #{tpu_custom_call.1} parent=59 // pred_check_branch
          %2927 = sbr.rel (%p2925) target = $region64
        $region63: #{tpu_custom_call.1} parent=59 // pred_region
          %s2928 = sand.u32 %s185, 1
          %s2929 = scalar_lea.sflag [#allocation5], %s2928
          %s2930 = sand.u32 %s185, 1
          %s2931 = scalar_lea.vmem [#allocation6], %s2930
          %2932 = dma.done %s2929, 16
        $region64: #{tpu_custom_call.1} parent=59 // pred_fallthru
          _
      $region60: #{tpu_custom_call.1} parent=5 // pred_fallthru
        _
    $region6: #{tpu_custom_call.1} parent=1 // loop_footer
      %s23 = sadd.s32 1, %s19
    $region7: #{tpu_custom_call.1} parent=1 // loop_footer_branch
      %18 = sbr.rel target = $region3
    $region8: #{tpu_custom_call.1} parent=1 // loop_exit
      _
    %2933 = vsyncpa [#allocation4], 1
    %s2934 = scalar_lea.sflag [#allocation4], 1
    %2935 = vsyncpa %s2934, 1
    %2936 = vsyncpa [#allocation5], 1
    %s2937 = scalar_lea.sflag [#allocation5], 1
    %2938 = vsyncpa %s2937, 1

</llo_original>
